<compile_context>
chip_gen: v6e
topology: v6e:2x2x1
jax: 0.10.0
libtpu: 0.0.40
codegen_flags: <defaults>
</compile_context>

<pallas_src>
import math

import jax
import jax.numpy as jnp
import numpy as np
from jax.experimental import pallas as pl
from jax.experimental.pallas import tpu as pltpu

LANE = 128  # TPU lane width


# ----------------------------------------------------------------------------
# Fused kernel: conv1 -> pool -> relu -> conv2 -> pool -> relu -> fc1 -> relu
# ----------------------------------------------------------------------------
def fused_cnn_kernel(x_ref, w1_ref, b1_ref, w2_ref, b2_ref, wf_ref, bf_ref,
                     o_ref):
    # x_ref : (Bblk*H, Cin*W)    rows = (batch, image row), lanes = (chan, col)
    # w1_ref: (Cin*W, K*2*LANE)  banded conv1 weight, cols = (kh, parity, pw1, c1)
    # b1_ref: (1, LANE)          conv1 bias tiled over pooled columns
    # w2_ref: (LANE, K*2*LANE)   banded conv2 weight, rows = pw1*C1 + ci
    # b2_ref: (1, LANE)
    # wf_ref: (PH2*LANE, n_out)  fc weight, (C,H,W) flatten order folded in
    # bf_ref: (1, n_out)
    # o_ref : (Bblk, n_out)
    Bblk = o_ref.shape[0]
    H = x_ref.shape[0] // Bblk
    TWOL = 2 * LANE
    K = w1_ref.shape[1] // TWOL
    OH1 = H - K + 1          # conv1 output rows
    PH1 = OH1 // 2           # pooled rows after conv1
    OH2 = PH1 - K + 1        # conv2 output rows
    PH2 = OH2 // 2           # pooled rows after conv2

    # ---- conv1: one banded matmul + K shifted adds over kh ----
    y1 = jnp.dot(x_ref[...], w1_ref[...], preferred_element_type=jnp.float32)
    y1 = y1.reshape(Bblk, H, K * TWOL)
    a1 = y1[:, 0:OH1, 0:TWOL]
    for kh in range(1, K):
        a1 = a1 + y1[:, kh:kh + OH1, kh * TWOL:(kh + 1) * TWOL]

    # ---- 2x2 max-pool + bias + relu (aligned lane-half maxes, no reshuffle) --
    u1 = a1.reshape(Bblk * PH1, 2 * TWOL)            # row pairs -> lane halves
    r1 = jnp.maximum(u1[:, :TWOL], u1[:, TWOL:])     # pool over rows
    h1 = jnp.maximum(                                # pool over columns + relu
        jnp.maximum(r1[:, :LANE], r1[:, LANE:]) + b1_ref[...], 0.0)

    # ---- conv2 (conv2_drop is identity in eval mode) ----
    y2 = jnp.dot(h1, w2_ref[...], preferred_element_type=jnp.float32)
    y2 = y2.reshape(Bblk, PH1, K * TWOL)
    a2 = y2[:, 0:OH2, 0:TWOL]
    for kh in range(1, K):
        a2 = a2 + y2[:, kh:kh + OH2, kh * TWOL:(kh + 1) * TWOL]

    u2 = a2.reshape(Bblk * PH2, 2 * TWOL)
    r2 = jnp.maximum(u2[:, :TWOL], u2[:, TWOL:])
    h2 = jnp.maximum(
        jnp.maximum(r2[:, :LANE], r2[:, LANE:]) + b2_ref[...], 0.0)

    # ---- fc1 + relu (flatten order already folded into wf_ref) ----
    h2f = h2.reshape(Bblk, PH2 * LANE)
    out = jnp.dot(h2f, wf_ref[...], preferred_element_type=jnp.float32)
    o_ref[...] = jnp.maximum(out + bf_ref[...], 0.0)


# ----------------------------------------------------------------------------
# One-time parameter preparation (PyTorch layouts -> banded/lane-dense layouts)
# ----------------------------------------------------------------------------
def prepare_params(params, n_input=28):
    w1, b1, w2, b2, wfc, bfc = (np.asarray(p, np.float32) for p in params)
    C1, Cin, K, _ = w1.shape            # (10, Cin, 5, 5)
    C2 = w2.shape[0]                    # 20
    n_out = wfc.shape[0]
    H = W = n_input
    OH1, OW1 = H - K + 1, W - K + 1
    # TODO(synk): odd conv-output sizes (PyTorch floor-pooling) not supported.
    assert OH1 % 2 == 0 and OW1 % 2 == 0
    PH1, PW1 = OH1 // 2, OW1 // 2
    OH2, OW2 = PH1 - K + 1, PW1 - K + 1
    assert OH2 % 2 == 0 and OW2 % 2 == 0
    PH2, PW2 = OH2 // 2, OW2 // 2
    assert PW1 * C1 <= LANE and PW2 * C2 <= LANE
    assert wfc.shape[1] == C2 * PH2 * PW2

    # conv1 banded weight: rows = ci*W + input column, cols = (kh, s, pw1, c1)
    W1b = np.zeros((Cin * W, K, 2, LANE), np.float32)
    for kh in range(K):
        for kw in range(K):
            for ow in range(OW1):
                pw, s = ow // 2, ow % 2
                for ci in range(Cin):
                    W1b[ci * W + ow + kw, kh, s,
                        pw * C1:(pw + 1) * C1] = w1[:, ci, kh, kw]
    W1b = W1b.reshape(Cin * W, K * 2 * LANE)

    b1t = np.zeros((1, LANE), np.float32)
    b1t[0, :PW1 * C1] = np.tile(b1, PW1)

    # conv2 banded weight: rows = pw1*C1 + ci, cols = (kh, s, pw2, co)
    W2b = np.zeros((LANE, K, 2, LANE), np.float32)
    for kh in range(K):
        for kw in range(K):
            blk = w2[:, :, kh, kw].T               # (ci, co)
            for pw2 in range(PW2):
                for s in range(2):
                    iw = 2 * pw2 + s + kw          # pooled conv1 column
                    W2b[iw * C1:(iw + 1) * C1, kh, s,
                        pw2 * C2:(pw2 + 1) * C2] = blk
    W2b = W2b.reshape(LANE, K * 2 * LANE)

    b2t = np.zeros((1, LANE), np.float32)
    b2t[0, :PW2 * C2] = np.tile(b2, PW2)

    # fc weight with PyTorch (C,H,W) flatten order folded into the row order:
    # kernel feature index = ph2*LANE + pw2*C2 + co.
    wfc4 = wfc.reshape(n_out, C2, PH2, PW2)        # (o, co, ph2, pw2)
    Wf = np.zeros((PH2, LANE, n_out), np.float32)
    for ph2 in range(PH2):
        for pw2 in range(PW2):
            Wf[ph2, pw2 * C2:(pw2 + 1) * C2, :] = wfc4[:, :, ph2, pw2].T
    Wf = Wf.reshape(PH2 * LANE, n_out)

    bf = bfc.reshape(1, n_out)

    return tuple(jnp.asarray(a) for a in (W1b, b1t, W2b, b2t, Wf, bf))


# ----------------------------------------------------------------------------
# Wrapper: single fused pallas_call over a batch-block grid
# ----------------------------------------------------------------------------
def cnn_forward(x_nchw, prep):
    W1b, b1t, W2b, b2t, Wf, bf = prep
    B, Cin, H, W = x_nchw.shape
    n_out = Wf.shape[1]

    # Lane-dense input layout: rows = (batch, image row), lanes = (chan, col).
    x2 = jnp.transpose(x_nchw, (0, 2, 1, 3)).reshape(B * H, Cin * W)

    # Batch rows per grid step: multiple of 8 (sublane tiling of the output
    # block) when possible; keep >=2 grid steps for larger batches (v7x TCs).
    bb = 8 if B % 8 == 0 else B
    grid = (B // bb,)

    return pl.pallas_call(
        fused_cnn_kernel,
        out_shape=jax.ShapeDtypeStruct((B, n_out), jnp.float32),
        grid_spec=pltpu.PrefetchScalarGridSpec(
            num_scalar_prefetch=0,
            grid=grid,
            in_specs=[
                pl.BlockSpec((bb * H, Cin * W), lambda i: (i, 0)),
                pl.BlockSpec(W1b.shape, lambda i: (0, 0)),
                pl.BlockSpec(b1t.shape, lambda i: (0, 0)),
                pl.BlockSpec(W2b.shape, lambda i: (0, 0)),
                pl.BlockSpec(b2t.shape, lambda i: (0, 0)),
                pl.BlockSpec(Wf.shape, lambda i: (0, 0)),
                pl.BlockSpec(bf.shape, lambda i: (0, 0)),
            ],
            out_specs=pl.BlockSpec((bb, n_out), lambda i: (i, 0)),
        ),
        compiler_params=pltpu.CompilerParams(
            dimension_semantics=("parallel",)),
    )(x2, W1b, b1t, W2b, b2t, Wf, bf)


# ----------------------------------------------------------------------------
# Pure-JAX reference (PyTorch-equivalent semantics) for the sanity check
# ----------------------------------------------------------------------------
def reference_forward(x_nchw, params):
    w1, b1, w2, b2, wfc, bfc = params

    def conv(x, w, b):
        y = jax.lax.conv_general_dilated(
            x, w, (1, 1), "VALID",
            dimension_numbers=("NCHW", "OIHW", "NCHW"))
        return y + b[None, :, None, None]

    def pool2(x):
        B, C, H, W = x.shape
        return jnp.max(x.reshape(B, C, H // 2, 2, W // 2, 2), axis=(3, 5))

    h = jax.nn.relu(pool2(conv(x_nchw, w1, b1)))
    h = jax.nn.relu(pool2(conv(h, w2, b2)))
    h = h.reshape(h.shape[0], -1)
    return jax.nn.relu(h @ wfc.T + bfc)


if __name__ == "__main__":
    # Module defaults: n_input=28, n_output=50, kernel_size=5, num_channels=1
    B, Cin, n_input, K, n_output = 16, 1, 28, 5, 50
    lin_size = math.floor((math.floor((n_input - (K - 1)) / 2) - (K - 1)) / 2)
    fc_in = lin_size ** 2 * 20   # 320

    key = jax.random.PRNGKey(0)
    k1, k2, k3, k4, k5, k6, kx = jax.random.split(key, 7)

    def uinit(k, shape, fan_in):
        bound = 1.0 / math.sqrt(fan_in)
        return jax.random.uniform(k, shape, jnp.float32, -bound, bound)

    # Deterministic synthetic parameters (PyTorch layouts)
    w1 = uinit(k1, (10, Cin, K, K), Cin * K * K)
    b1 = uinit(k2, (10,), Cin * K * K)
    w2 = uinit(k3, (20, 10, K, K), 10 * K * K)
    b2 = uinit(k4, (20,), 10 * K * K)
    wfc = uinit(k5, (n_output, fc_in), fc_in)
    bfc = uinit(k6, (n_output,), fc_in)
    params = (w1, b1, w2, b2, wfc, bfc)

    x = jax.random.normal(kx, (B, Cin, n_input, n_input), jnp.float32)

    prep = prepare_params(params, n_input=n_input)   # one-time layout prep
    fwd = jax.jit(cnn_forward)

    out = jax.block_until_ready(fwd(x, prep))
    ref = jax.block_until_ready(reference_forward(x, params))

    assert out.shape == (B, n_output), out.shape
    np.testing.assert_allclose(np.asarray(out), np.asarray(ref),
                               rtol=1e-2, atol=1e-2)
    print("KERNEL_OK")
</pallas_src>

<mosaic_0001>
module attributes {stable_mosaic.version = 11 : i64} {
  func.func @fused_cnn_kernel(%arg0: i32, %arg1: memref<224x28xf32, #tpu.memory_space<vmem>>, %arg2: memref<28x1280xf32, #tpu.memory_space<vmem>>, %arg3: memref<1x128xf32, #tpu.memory_space<vmem>>, %arg4: memref<128x1280xf32, #tpu.memory_space<vmem>>, %arg5: memref<1x128xf32, #tpu.memory_space<vmem>>, %arg6: memref<512x50xf32, #tpu.memory_space<vmem>>, %arg7: memref<1x50xf32, #tpu.memory_space<vmem>>, %arg8: memref<8x50xf32, #tpu.memory_space<vmem>>) attributes {dimension_semantics = [#tpu.dimension_semantics<parallel>], iteration_bounds = array<i64: 2>, scalar_prefetch = 0 : i64, scratch_operands = 0 : i64, tpu.core_type = #tpu.core_type<tc>, window_params = [{transform_indices = @transform_0, window_bounds = array<i64: 224, 28>}, {pipeline_mode = #tpu.pipeline_mode<synchronous>, transform_indices = @transform_1, window_bounds = array<i64: 28, 1280>}, {pipeline_mode = #tpu.pipeline_mode<synchronous>, transform_indices = @transform_2, window_bounds = array<i64: 1, 128>}, {pipeline_mode = #tpu.pipeline_mode<synchronous>, transform_indices = @transform_3, window_bounds = array<i64: 128, 1280>}, {pipeline_mode = #tpu.pipeline_mode<synchronous>, transform_indices = @transform_4, window_bounds = array<i64: 1, 128>}, {pipeline_mode = #tpu.pipeline_mode<synchronous>, transform_indices = @transform_5, window_bounds = array<i64: 512, 50>}, {pipeline_mode = #tpu.pipeline_mode<synchronous>, transform_indices = @transform_6, window_bounds = array<i64: 1, 50>}, {transform_indices = @transform_7, window_bounds = array<i64: 8, 50>}]} {
    %c0 = arith.constant 0 : index
    %c0_0 = arith.constant 0 : index
    %0 = vector.load %arg1[%c0, %c0_0] : memref<224x28xf32, #tpu.memory_space<vmem>>, vector<224x28xf32>
    %c0_1 = arith.constant 0 : index
    %c0_2 = arith.constant 0 : index
    %1 = vector.load %arg2[%c0_1, %c0_2] : memref<28x1280xf32, #tpu.memory_space<vmem>>, vector<28x1280xf32>
    %cst = arith.constant dense<0.000000e+00> : vector<224x1280xf32>
    %2 = tpu.matmul %0, %1, %cst {dimension_numbers = #tpu.dot_dimension_numbers<[1], [0], [0], [1], [0, 0, 1, 1], [], []>} : vector<224x28xf32>, vector<28x1280xf32>, vector<224x1280xf32> -> vector<224x1280xf32>
    %3 = vector.shape_cast %2 : vector<224x1280xf32> to vector<8x28x1280xf32>
    %4 = vector.extract_strided_slice %3 {offsets = [0, 0, 0], sizes = [8, 24, 256], strides = [1, 1, 1]} : vector<8x28x1280xf32> to vector<8x24x256xf32>
    %5 = vector.extract_strided_slice %3 {offsets = [0, 1, 256], sizes = [8, 24, 256], strides = [1, 1, 1]} : vector<8x28x1280xf32> to vector<8x24x256xf32>
    %6 = arith.addf %4, %5 : vector<8x24x256xf32>
    %7 = vector.extract_strided_slice %3 {offsets = [0, 2, 512], sizes = [8, 24, 256], strides = [1, 1, 1]} : vector<8x28x1280xf32> to vector<8x24x256xf32>
    %8 = arith.addf %6, %7 : vector<8x24x256xf32>
    %9 = vector.extract_strided_slice %3 {offsets = [0, 3, 768], sizes = [8, 24, 256], strides = [1, 1, 1]} : vector<8x28x1280xf32> to vector<8x24x256xf32>
    %10 = arith.addf %8, %9 : vector<8x24x256xf32>
    %11 = vector.extract_strided_slice %3 {offsets = [0, 4, 1024], sizes = [8, 24, 256], strides = [1, 1, 1]} : vector<8x28x1280xf32> to vector<8x24x256xf32>
    %12 = arith.addf %10, %11 : vector<8x24x256xf32>
    %13 = vector.shape_cast %12 : vector<8x24x256xf32> to vector<96x512xf32>
    %14 = vector.extract_strided_slice %13 {offsets = [0, 0], sizes = [96, 256], strides = [1, 1]} : vector<96x512xf32> to vector<96x256xf32>
    %15 = vector.extract_strided_slice %13 {offsets = [0, 256], sizes = [96, 256], strides = [1, 1]} : vector<96x512xf32> to vector<96x256xf32>
    %16 = arith.maximumf %14, %15 : vector<96x256xf32>
    %17 = vector.extract_strided_slice %16 {offsets = [0, 0], sizes = [96, 128], strides = [1, 1]} : vector<96x256xf32> to vector<96x128xf32>
    %18 = vector.extract_strided_slice %16 {offsets = [0, 128], sizes = [96, 128], strides = [1, 1]} : vector<96x256xf32> to vector<96x128xf32>
    %19 = arith.maximumf %17, %18 : vector<96x128xf32>
    %c0_3 = arith.constant 0 : index
    %c0_4 = arith.constant 0 : index
    %20 = vector.load %arg3[%c0_3, %c0_4] : memref<1x128xf32, #tpu.memory_space<vmem>>, vector<1x128xf32>
    %21 = vector.broadcast %20 : vector<1x128xf32> to vector<96x128xf32>
    %22 = arith.addf %19, %21 : vector<96x128xf32>
    %cst_5 = arith.constant 0.000000e+00 : f32
    %23 = vector.broadcast %cst_5 : f32 to vector<96x128xf32>
    %24 = arith.maximumf %22, %23 : vector<96x128xf32>
    %c0_6 = arith.constant 0 : index
    %c0_7 = arith.constant 0 : index
    %25 = vector.load %arg4[%c0_6, %c0_7] : memref<128x1280xf32, #tpu.memory_space<vmem>>, vector<128x1280xf32>
    %cst_8 = arith.constant dense<0.000000e+00> : vector<96x1280xf32>
    %26 = tpu.matmul %24, %25, %cst_8 {dimension_numbers = #tpu.dot_dimension_numbers<[1], [0], [0], [1], [0, 0, 1, 1], [], []>} : vector<96x128xf32>, vector<128x1280xf32>, vector<96x1280xf32> -> vector<96x1280xf32>
    %27 = vector.shape_cast %26 : vector<96x1280xf32> to vector<8x12x1280xf32>
    %28 = vector.extract_strided_slice %27 {offsets = [0, 0, 0], sizes = [8, 8, 256], strides = [1, 1, 1]} : vector<8x12x1280xf32> to vector<8x8x256xf32>
    %29 = vector.extract_strided_slice %27 {offsets = [0, 1, 256], sizes = [8, 8, 256], strides = [1, 1, 1]} : vector<8x12x1280xf32> to vector<8x8x256xf32>
    %30 = arith.addf %28, %29 : vector<8x8x256xf32>
    %31 = vector.extract_strided_slice %27 {offsets = [0, 2, 512], sizes = [8, 8, 256], strides = [1, 1, 1]} : vector<8x12x1280xf32> to vector<8x8x256xf32>
    %32 = arith.addf %30, %31 : vector<8x8x256xf32>
    %33 = vector.extract_strided_slice %27 {offsets = [0, 3, 768], sizes = [8, 8, 256], strides = [1, 1, 1]} : vector<8x12x1280xf32> to vector<8x8x256xf32>
    %34 = arith.addf %32, %33 : vector<8x8x256xf32>
    %35 = vector.extract_strided_slice %27 {offsets = [0, 4, 1024], sizes = [8, 8, 256], strides = [1, 1, 1]} : vector<8x12x1280xf32> to vector<8x8x256xf32>
    %36 = arith.addf %34, %35 : vector<8x8x256xf32>
    %37 = vector.shape_cast %36 : vector<8x8x256xf32> to vector<32x512xf32>
    %38 = vector.extract_strided_slice %37 {offsets = [0, 0], sizes = [32, 256], strides = [1, 1]} : vector<32x512xf32> to vector<32x256xf32>
    %39 = vector.extract_strided_slice %37 {offsets = [0, 256], sizes = [32, 256], strides = [1, 1]} : vector<32x512xf32> to vector<32x256xf32>
    %40 = arith.maximumf %38, %39 : vector<32x256xf32>
    %41 = vector.extract_strided_slice %40 {offsets = [0, 0], sizes = [32, 128], strides = [1, 1]} : vector<32x256xf32> to vector<32x128xf32>
    %42 = vector.extract_strided_slice %40 {offsets = [0, 128], sizes = [32, 128], strides = [1, 1]} : vector<32x256xf32> to vector<32x128xf32>
    %43 = arith.maximumf %41, %42 : vector<32x128xf32>
    %c0_9 = arith.constant 0 : index
    %c0_10 = arith.constant 0 : index
    %44 = vector.load %arg5[%c0_9, %c0_10] : memref<1x128xf32, #tpu.memory_space<vmem>>, vector<1x128xf32>
    %45 = vector.broadcast %44 : vector<1x128xf32> to vector<32x128xf32>
    %46 = arith.addf %43, %45 : vector<32x128xf32>
    %cst_11 = arith.constant 0.000000e+00 : f32
    %47 = vector.broadcast %cst_11 : f32 to vector<32x128xf32>
    %48 = arith.maximumf %46, %47 : vector<32x128xf32>
    %49 = vector.shape_cast %48 : vector<32x128xf32> to vector<8x512xf32>
    %c0_12 = arith.constant 0 : index
    %c0_13 = arith.constant 0 : index
    %50 = vector.load %arg6[%c0_12, %c0_13] : memref<512x50xf32, #tpu.memory_space<vmem>>, vector<512x50xf32>
    %cst_14 = arith.constant dense<0.000000e+00> : vector<8x50xf32>
    %51 = tpu.matmul %49, %50, %cst_14 {dimension_numbers = #tpu.dot_dimension_numbers<[1], [0], [0], [1], [0, 0, 1, 1], [], []>} : vector<8x512xf32>, vector<512x50xf32>, vector<8x50xf32> -> vector<8x50xf32>
    %c0_15 = arith.constant 0 : index
    %c0_16 = arith.constant 0 : index
    %52 = vector.load %arg7[%c0_15, %c0_16] : memref<1x50xf32, #tpu.memory_space<vmem>>, vector<1x50xf32>
    %53 = vector.broadcast %52 : vector<1x50xf32> to vector<8x50xf32>
    %54 = arith.addf %51, %53 : vector<8x50xf32>
    %cst_17 = arith.constant 0.000000e+00 : f32
    %55 = vector.broadcast %cst_17 : f32 to vector<8x50xf32>
    %56 = arith.maximumf %54, %55 : vector<8x50xf32>
    %c0_18 = arith.constant 0 : index
    %c0_19 = arith.constant 0 : index
    %57 = vector.load %arg8[%c0_18, %c0_19] : memref<8x50xf32, #tpu.memory_space<vmem>>, vector<8x50xf32>
    tpu.vector_store %arg8[%c0_18, %c0_19], %56 {strides = array<i32>} : memref<8x50xf32, #tpu.memory_space<vmem>>, vector<8x50xf32>,
    return
  }
  func.func @transform_0(%arg0: i32) -> (i32, i32) {
    %c0_i32 = arith.constant 0 : i32
    %c0_i32_0 = arith.constant 0 : i32
    return %arg0, %c0_i32 : i32, i32
  }
  func.func @transform_1(%arg0: i32) -> (i32, i32) {
    %c0_i32 = arith.constant 0 : i32
    %c0_i32_0 = arith.constant 0 : i32
    %c0_i32_1 = arith.constant 0 : i32
    return %c0_i32, %c0_i32_0 : i32, i32
  }
  func.func @transform_2(%arg0: i32) -> (i32, i32) {
    %c0_i32 = arith.constant 0 : i32
    %c0_i32_0 = arith.constant 0 : i32
    %c0_i32_1 = arith.constant 0 : i32
    return %c0_i32, %c0_i32_0 : i32, i32
  }
  func.func @transform_3(%arg0: i32) -> (i32, i32) {
    %c0_i32 = arith.constant 0 : i32
    %c0_i32_0 = arith.constant 0 : i32
    %c0_i32_1 = arith.constant 0 : i32
    return %c0_i32, %c0_i32_0 : i32, i32
  }
  func.func @transform_4(%arg0: i32) -> (i32, i32) {
    %c0_i32 = arith.constant 0 : i32
    %c0_i32_0 = arith.constant 0 : i32
    %c0_i32_1 = arith.constant 0 : i32
    return %c0_i32, %c0_i32_0 : i32, i32
  }
  func.func @transform_5(%arg0: i32) -> (i32, i32) {
    %c0_i32 = arith.constant 0 : i32
    %c0_i32_0 = arith.constant 0 : i32
    %c0_i32_1 = arith.constant 0 : i32
    return %c0_i32, %c0_i32_0 : i32, i32
  }
  func.func @transform_6(%arg0: i32) -> (i32, i32) {
    %c0_i32 = arith.constant 0 : i32
    %c0_i32_0 = arith.constant 0 : i32
    %c0_i32_1 = arith.constant 0 : i32
    return %c0_i32, %c0_i32_0 : i32, i32
  }
  func.func @transform_7(%arg0: i32) -> (i32, i32) {
    %c0_i32 = arith.constant 0 : i32
    %c0_i32_0 = arith.constant 0 : i32
    return %arg0, %c0_i32 : i32, i32
  }
}

</mosaic_0001>

<llo_original>
// kernel: cnn_forward.1
$region0: #{cnn_forward.1}
  #allocation0 [shape = 'u32[]', space=smem, size = 0x4, offset = 0x4, fixed_abs, tag = 'smem constant byte address 0x4 - core index']
  #allocation1 [shape = 'u32[144,128]{1,0:T(1,128)}', space=vmem, size = 0x12000, scoped, tag = 'internal scratch']
  %s0 = inlined_call_operand.vmem [shape: f32[448,28], index: 0, kind: input, shape index: {}]
  %s1 = inlined_call_operand.hbm [shape: f32[28,1280], index: 1, kind: input, shape index: {}]
  %s2 = inlined_call_operand.vmem [shape: f32[1,128], index: 2, kind: input, shape index: {}]
  %s3 = inlined_call_operand.hbm [shape: f32[128,1280], index: 3, kind: input, shape index: {}]
  %s4 = inlined_call_operand.vmem [shape: f32[1,128], index: 4, kind: input, shape index: {}]
  %s5 = inlined_call_operand.vmem [shape: f32[512,50], index: 5, kind: input, shape index: {}]
  %s6 = inlined_call_operand.vmem [shape: f32[1,50], index: 6, kind: input, shape index: {}]
  %s7 = inlined_call_operand.hbm [shape: f32[16,50], index: 7, kind: output, shape index: {}]
  %s8 = sld [smem:[#allocation0]]
  $region69: #{cnn_forward.1} parent=0
    _
  %s10 = ssub.s32 1, %s8
  %s11 = scalar_select 0, %s10, %s8
  $region1: #{cnn_forward.1} parent=0
    #allocation2 [shape = 'u8[163840]{0}', space=vmem, size = 0x28000, scoped, tag = 'input window, operand 1, single buffered']
    #allocation3 [shape = 's32[2]{0}', space=sflag, size = 0x8, scoped, tag = 'scoped memory for cnn_forward.1']
    #allocation4 [shape = 's32[2]{0}', space=sflag, size = 0x8, scoped, tag = 'scoped memory for cnn_forward.1']
    #allocation5 [shape = 'u8[655360]{0}', space=vmem, size = 0xa0000, scoped, tag = 'input window, operand 3, single buffered']
    #allocation6 [shape = 's32[1]{0}', space=sflag, size = 0x4, scoped, tag = 'scoped memory for cnn_forward.1']
    #allocation7 [shape = 'u8[8192]{0}', space=vmem, size = 0x2000, scoped, tag = 'output window, operand 0']
    %12 = vsyncpa [#allocation3], 0
    %13 = vsyncpa [#allocation6], 0
    %14 = vsyncpa [#allocation4], 0
    %s15 = scalar_lea.sflag [#allocation4], 1
    %16 = vsyncpa %s15, 0
    loop: start=0, step=1, limit=4
    $region2: #{cnn_forward.1} parent=1 // loop_pre_header
      _
    $region3: #{cnn_forward.1} parent=1 // loop_header
      %s18 = sphi 0, %s22
      %p19 = scmp.ge.s32.totalorder %s18, 4
      %s28 = sphi 0, %s30
      %s31 = sphi 0, %s28
      %s32 = sphi 0, %s31
      %s48 = sphi 0, %s32
      %s52 = sphi 0, %s52
      %s54 = sphi 0, %s52
      %s55 = sphi 0, %s54
      %s69 = sphi 0, %s55
      %s73 = sphi 0, %s73
      %s75 = sphi 0, %s73
      %s76 = sphi 0, %s75
      %s90 = sphi 0, %s76
      %s94 = sphi 0, %s94
      %s96 = sphi 0, %s94
      %s97 = sphi 0, %s96
      %s111 = sphi 0, %s97
      %s115 = sphi 0, %s115
      %s117 = sphi 0, %s115
      %s118 = sphi 0, %s117
      %s132 = sphi 0, %s118
      %s136 = sphi 0, %s136
      %s138 = sphi 0, %s136
      %s139 = sphi 0, %s138
      %s153 = sphi 0, %s139
      %s157 = sphi 0, %s157
      %s159 = sphi 0, %s157
      %s160 = sphi 0, %s159
      %s174 = sphi 0, %s160
      %s180 = sphi 0, %s182
      %s183 = sphi 0, %s180
      %s184 = sphi 0, %s183
      %s200 = sphi 0, %s184
    $region4: #{cnn_forward.1} parent=1 // loop_header_branch
      %21 = sbr.rel (%p19) target = $region8
    $region5: #{cnn_forward.1} parent=1 // loop_body
      %s23 = ssub.s32 %s18, 1
      %s24 = ssub.s32 %s18, 2
      %s25 = sadd.s32 %s18, 1
      %s26 = ssub.s32 %s18, %s25
      %p27 = scmp.eq.s32.totalorder %s26, 0
      %s29 = sadd.s32 %s28, 1
      %s30 = scalar_select %p27, %s28, %s29
      %p33 = pneg %p27
      %p34 = scmp.eq.s32.totalorder %s18, 1
      %p35 = por %p33, %p34
      %p36 = scmp.ne.s32.totalorder %s28, %s31
      %p37 = scmp.eq.s32.totalorder %s18, 0
      %p38 = por %p36, %p37
      %p39 = scmp.ne.s32.totalorder %s28, %s31
      %p40 = scmp.eq.s32.totalorder %s23, 1
      %p41 = por %p39, %p40
      %p42 = scmp.ne.s32.totalorder %s31, %s32
      %p43 = scmp.eq.s32.totalorder %s23, 0
      %p44 = por %p42, %p43
      %p45 = scmp.ne.s32.totalorder %s31, %s32
      %p46 = scmp.eq.s32.totalorder %s24, 1
      %p47 = por %p45, %p46
      %p49 = scmp.ne.s32.totalorder %s32, %s48
      %p50 = scmp.eq.s32.totalorder %s24, 0
      %p51 = por %p49, %p50
      %s53 = sadd.s32 %s52, 1
      %p56 = scmp.eq.s32.totalorder %s18, 1
      %p57 = scmp.ne.s32.totalorder %s52, %s54
      %p58 = scmp.eq.s32.totalorder %s18, 0
      %p59 = por %p57, %p58
      %p60 = scmp.ne.s32.totalorder %s52, %s54
      %p61 = scmp.eq.s32.totalorder %s23, 1
      %p62 = por %p60, %p61
      %p63 = scmp.ne.s32.totalorder %s54, %s55
      %p64 = scmp.eq.s32.totalorder %s23, 0
      %p65 = por %p63, %p64
      %p66 = scmp.ne.s32.totalorder %s54, %s55
      %p67 = scmp.eq.s32.totalorder %s24, 1
      %p68 = por %p66, %p67
      %p70 = scmp.ne.s32.totalorder %s55, %s69
      %p71 = scmp.eq.s32.totalorder %s24, 0
      %p72 = por %p70, %p71
      %s74 = sadd.s32 %s73, 1
      %p77 = scmp.eq.s32.totalorder %s18, 1
      %p78 = scmp.ne.s32.totalorder %s73, %s75
      %p79 = scmp.eq.s32.totalorder %s18, 0
      %p80 = por %p78, %p79
      %p81 = scmp.ne.s32.totalorder %s73, %s75
      %p82 = scmp.eq.s32.totalorder %s23, 1
      %p83 = por %p81, %p82
      %p84 = scmp.ne.s32.totalorder %s75, %s76
      %p85 = scmp.eq.s32.totalorder %s23, 0
      %p86 = por %p84, %p85
      %p87 = scmp.ne.s32.totalorder %s75, %s76
      %p88 = scmp.eq.s32.totalorder %s24, 1
      %p89 = por %p87, %p88
      %p91 = scmp.ne.s32.totalorder %s76, %s90
      %p92 = scmp.eq.s32.totalorder %s24, 0
      %p93 = por %p91, %p92
      %s95 = sadd.s32 %s94, 1
      %p98 = scmp.eq.s32.totalorder %s18, 1
      %p99 = scmp.ne.s32.totalorder %s94, %s96
      %p100 = scmp.eq.s32.totalorder %s18, 0
      %p101 = por %p99, %p100
      %p102 = scmp.ne.s32.totalorder %s94, %s96
      %p103 = scmp.eq.s32.totalorder %s23, 1
      %p104 = por %p102, %p103
      %p105 = scmp.ne.s32.totalorder %s96, %s97
      %p106 = scmp.eq.s32.totalorder %s23, 0
      %p107 = por %p105, %p106
      %p108 = scmp.ne.s32.totalorder %s96, %s97
      %p109 = scmp.eq.s32.totalorder %s24, 1
      %p110 = por %p108, %p109
      %p112 = scmp.ne.s32.totalorder %s97, %s111
      %p113 = scmp.eq.s32.totalorder %s24, 0
      %p114 = por %p112, %p113
      %s116 = sadd.s32 %s115, 1
      %p119 = scmp.eq.s32.totalorder %s18, 1
      %p120 = scmp.ne.s32.totalorder %s115, %s117
      %p121 = scmp.eq.s32.totalorder %s18, 0
      %p122 = por %p120, %p121
      %p123 = scmp.ne.s32.totalorder %s115, %s117
      %p124 = scmp.eq.s32.totalorder %s23, 1
      %p125 = por %p123, %p124
      %p126 = scmp.ne.s32.totalorder %s117, %s118
      %p127 = scmp.eq.s32.totalorder %s23, 0
      %p128 = por %p126, %p127
      %p129 = scmp.ne.s32.totalorder %s117, %s118
      %p130 = scmp.eq.s32.totalorder %s24, 1
      %p131 = por %p129, %p130
      %p133 = scmp.ne.s32.totalorder %s118, %s132
      %p134 = scmp.eq.s32.totalorder %s24, 0
      %p135 = por %p133, %p134
      %s137 = sadd.s32 %s136, 1
      %p140 = scmp.eq.s32.totalorder %s18, 1
      %p141 = scmp.ne.s32.totalorder %s136, %s138
      %p142 = scmp.eq.s32.totalorder %s18, 0
      %p143 = por %p141, %p142
      %p144 = scmp.ne.s32.totalorder %s136, %s138
      %p145 = scmp.eq.s32.totalorder %s23, 1
      %p146 = por %p144, %p145
      %p147 = scmp.ne.s32.totalorder %s138, %s139
      %p148 = scmp.eq.s32.totalorder %s23, 0
      %p149 = por %p147, %p148
      %p150 = scmp.ne.s32.totalorder %s138, %s139
      %p151 = scmp.eq.s32.totalorder %s24, 1
      %p152 = por %p150, %p151
      %p154 = scmp.ne.s32.totalorder %s139, %s153
      %p155 = scmp.eq.s32.totalorder %s24, 0
      %p156 = por %p154, %p155
      %s158 = sadd.s32 %s157, 1
      %p161 = scmp.eq.s32.totalorder %s18, 1
      %p162 = scmp.ne.s32.totalorder %s157, %s159
      %p163 = scmp.eq.s32.totalorder %s18, 0
      %p164 = por %p162, %p163
      %p165 = scmp.ne.s32.totalorder %s157, %s159
      %p166 = scmp.eq.s32.totalorder %s23, 1
      %p167 = por %p165, %p166
      %p168 = scmp.ne.s32.totalorder %s159, %s160
      %p169 = scmp.eq.s32.totalorder %s23, 0
      %p170 = por %p168, %p169
      %p171 = scmp.ne.s32.totalorder %s159, %s160
      %p172 = scmp.eq.s32.totalorder %s24, 1
      %p173 = por %p171, %p172
      %p175 = scmp.ne.s32.totalorder %s160, %s174
      %p176 = scmp.eq.s32.totalorder %s24, 0
      %p177 = por %p175, %p176
      %s178 = ssub.s32 %s18, %s25
      %p179 = scmp.eq.s32.totalorder %s178, 0
      %s181 = sadd.s32 %s180, 1
      %s182 = scalar_select %p179, %s180, %s181
      %p185 = pneg %p179
      %p186 = scmp.eq.s32.totalorder %s18, 1
      %p187 = por %p185, %p186
      %p188 = scmp.ne.s32.totalorder %s180, %s183
      %p189 = scmp.eq.s32.totalorder %s18, 0
      %p190 = por %p188, %p189
      %p191 = scmp.ne.s32.totalorder %s180, %s183
      %p192 = scmp.eq.s32.totalorder %s23, 1
      %p193 = por %p191, %p192
      %p194 = scmp.ne.s32.totalorder %s183, %s184
      %p195 = scmp.eq.s32.totalorder %s23, 0
      %p196 = por %p194, %p195
      %p197 = scmp.ne.s32.totalorder %s183, %s184
      %p198 = scmp.eq.s32.totalorder %s24, 1
      %p199 = por %p197, %p198
      %p201 = scmp.ne.s32.totalorder %s184, %s200
      %p202 = scmp.eq.s32.totalorder %s24, 0
      %p203 = por %p201, %p202
      %p204 = scmp.le.s32.totalorder 1, %s18
      %p205 = scmp.lt.s32.totalorder %s18, 3
      %p206 = pnand %p204, %p205
      %p207 = pneg %p206
      // Predicated region
      $region9: #{cnn_forward.1} parent=5 // pred_check
        _
      $region10: #{cnn_forward.1} parent=5 // pred_check_branch
        %209 = sbr.rel (%p206) target = $region12
      $region11: #{cnn_forward.1} parent=5 // pred_region
        %s210 = ssub.s32 %s18, 1
        // Predicated region
        $region13: #{cnn_forward.1} parent=11 // pred_check
          %p211 = pneg %p65
        $region14: #{cnn_forward.1} parent=11 // pred_check_branch
          %213 = sbr.rel (%p211) target = $region16
        $region15: #{cnn_forward.1} parent=11 // pred_region
          %s215 = ssub.s32 5120, 5120
          %216 = vsyncadd [#allocation3], %s215
          %s217 = sshll.u32 [#allocation2], 4
          %s218 = int_to_ptr.vmem [resolvable:$true] %s217
          %223 = dma.hbm_to_vmem [thread:$0]  %s1, 5120, %s218, [#allocation3], 1280, 1280, 80
        $region16: #{cnn_forward.1} parent=11 // pred_fallthru
          _
        // Predicated region
        $region17: #{cnn_forward.1} parent=11 // pred_check
          %p224 = pneg %p86
        $region18: #{cnn_forward.1} parent=11 // pred_check_branch
          %226 = sbr.rel (%p224) target = $region20
        $region19: #{cnn_forward.1} parent=11 // pred_region
          _
        $region20: #{cnn_forward.1} parent=11 // pred_fallthru
          _
        // Predicated region
        $region21: #{cnn_forward.1} parent=11 // pred_check
          %p227 = pneg %p107
        $region22: #{cnn_forward.1} parent=11 // pred_check_branch
          %229 = sbr.rel (%p227) target = $region24
        $region23: #{cnn_forward.1} parent=11 // pred_region
          %s231 = ssub.s32 20480, 20480
          %232 = vsyncadd [#allocation6], %s231
          %s233 = sshll.u32 [#allocation5], 4
          %s234 = int_to_ptr.vmem [resolvable:$true] %s233
          %239 = dma.hbm_to_vmem [thread:$0]  %s3, 20480, %s234, [#allocation6], 1280, 1280, 80
        $region24: #{cnn_forward.1} parent=11 // pred_fallthru
          _
        // Predicated region
        $region25: #{cnn_forward.1} parent=11 // pred_check
          %p240 = pneg %p128
        $region26: #{cnn_forward.1} parent=11 // pred_check_branch
          %242 = sbr.rel (%p240) target = $region28
        $region27: #{cnn_forward.1} parent=11 // pred_region
          _
        $region28: #{cnn_forward.1} parent=11 // pred_fallthru
          _
        // Predicated region
        $region29: #{cnn_forward.1} parent=11 // pred_check
          %p243 = pneg %p149
        $region30: #{cnn_forward.1} parent=11 // pred_check_branch
          %245 = sbr.rel (%p243) target = $region32
        $region31: #{cnn_forward.1} parent=11 // pred_region
          _
        $region32: #{cnn_forward.1} parent=11 // pred_fallthru
          _
        // Predicated region
        $region33: #{cnn_forward.1} parent=11 // pred_check
          %p246 = pneg %p170
        $region34: #{cnn_forward.1} parent=11 // pred_check_branch
          %248 = sbr.rel (%p246) target = $region36
        $region35: #{cnn_forward.1} parent=11 // pred_region
          _
        $region36: #{cnn_forward.1} parent=11 // pred_fallthru
          _
      $region12: #{cnn_forward.1} parent=5 // pred_fallthru
        _
      %p249 = scmp.lt.s32.totalorder %s18, 2
      // Predicated region
      $region37: #{cnn_forward.1} parent=5 // pred_check
        %p250 = pneg %p249
      $region38: #{cnn_forward.1} parent=5 // pred_check_branch
        %252 = sbr.rel (%p250) target = $region40
      $region39: #{cnn_forward.1} parent=5 // pred_region
        // Predicated region
        $region41: #{cnn_forward.1} parent=39 // pred_check
          %p253 = pneg %p38
        $region42: #{cnn_forward.1} parent=39 // pred_check_branch
          %255 = sbr.rel (%p253) target = $region44
        $region43: #{cnn_forward.1} parent=39 // pred_region
          %s256 = smul.u32 28, %s18
          %p257 = scmp.lt.s32.totalorder %s256, 55
          %s258 = scalar_select %p257, %s256, 55
          %s259 = smul.addr %s258, 8
          %s260 = scalar_lea.vmem %s0, %s259
          %s261 = smul.u32 28, %s18
        $region44: #{cnn_forward.1} parent=39 // pred_fallthru
          _
      $region40: #{cnn_forward.1} parent=5 // pred_fallthru
        _
      %p262 = scmp.le.s32.totalorder 1, %s18
      %p263 = scmp.lt.s32.totalorder %s18, 3
      %p264 = pnand %p262, %p263
      %p265 = pneg %p264
      // Predicated region
      $region45: #{cnn_forward.1} parent=5 // pred_check
        _
      $region46: #{cnn_forward.1} parent=5 // pred_check_branch
        %267 = sbr.rel (%p264) target = $region48
      $region47: #{cnn_forward.1} parent=5 // pred_region
        %s268 = ssub.s32 %s18, 1
        // Predicated region
        $region49: #{cnn_forward.1} parent=47 // pred_check
          %p269 = pneg %p65
        $region50: #{cnn_forward.1} parent=47 // pred_check_branch
          %271 = sbr.rel (%p269) target = $region52
        $region51: #{cnn_forward.1} parent=47 // pred_region
          %272 = dma.done [#allocation3], 5120
        $region52: #{cnn_forward.1} parent=47 // pred_fallthru
          _
        // Predicated region
        $region53: #{cnn_forward.1} parent=47 // pred_check
          %p273 = pneg %p107
        $region54: #{cnn_forward.1} parent=47 // pred_check_branch
          %275 = sbr.rel (%p273) target = $region56
        $region55: #{cnn_forward.1} parent=47 // pred_region
          %276 = dma.done [#allocation6], 20480
        $region56: #{cnn_forward.1} parent=47 // pred_fallthru
          _
        %s277 = smul.u32 28, %s23
        %p278 = scmp.lt.s32.totalorder %s277, 55
        %s279 = scalar_select %p278, %s277, 55
        %s280 = smul.addr %s279, 8
        %s281 = scalar_lea.vmem %s0, %s280
        %p282 = pneg %p44
        %p283 = pneg %p41
        %p284 = pneg %p65
        %p285 = pneg %p62
        %p286 = pneg %p86
        %p287 = pneg %p83
        %p288 = pneg %p107
        %p289 = pneg %p104
        %p290 = pneg %p128
        %p291 = pneg %p125
        %p292 = pneg %p149
        %p293 = pneg %p146
        %p294 = pneg %p170
        %p295 = pneg %p167
        %p296 = pneg %p196
        %p297 = pneg %p193
        %s298 = sand.u32 %s183, 1
        %s299 = scalar_lea.sflag [#allocation4], %s298
        %s300 = sand.u32 %s183, 1
        %s301 = smul.addr %s300, 8
        %s302 = scalar_lea.vmem [#allocation7], %s301
        %s303 = smul.u32 28, %s23
        %p304 = scmp.lt.s32.totalorder %s303, 55
        %s305 = scalar_select %p304, %s303, 55
        %s306 = smul.addr %s305, 8
        %s307 = scalar_lea.vmem %s0, %s306
        %s308 = smul.u32 28, %s23
        %v309 = vld [vmem:[%s307] sm:$0xff]
        %v310 = vld [vmem:[%s307 + $0x8] sm:$0xff]
        %v311 = vld [vmem:[%s307 + $0x10] sm:$0xff]
        %v312 = vld [vmem:[%s307 + $0x18] sm:$0xff]
        %v313 = vld [vmem:[%s307 + $0x20] sm:$0xff]
        %v314 = vld [vmem:[%s307 + $0x28] sm:$0xff]
        %v315 = vld [vmem:[%s307 + $0x30] sm:$0xff]
        %v316 = vld [vmem:[%s307 + $0x38] sm:$0xff]
        %v317 = vld [vmem:[%s307 + $0x40] sm:$0xff]
        %v318 = vld [vmem:[%s307 + $0x48] sm:$0xff]
        %v319 = vld [vmem:[%s307 + $0x50] sm:$0xff]
        %v320 = vld [vmem:[%s307 + $0x58] sm:$0xff]
        %v321 = vld [vmem:[%s307 + $0x60] sm:$0xff]
        %v322 = vld [vmem:[%s307 + $0x68] sm:$0xff]
        %v323 = vld [vmem:[%s307 + $0x70] sm:$0xff]
        %v324 = vld [vmem:[%s307 + $0x78] sm:$0xff]
        %v325 = vld [vmem:[%s307 + $0x80] sm:$0xff]
        %v326 = vld [vmem:[%s307 + $0x88] sm:$0xff]
        %v327 = vld [vmem:[%s307 + $0x90] sm:$0xff]
        %v328 = vld [vmem:[%s307 + $0x98] sm:$0xff]
        %v329 = vld [vmem:[%s307 + $0xa0] sm:$0xff]
        %v330 = vld [vmem:[%s307 + $0xa8] sm:$0xff]
        %v331 = vld [vmem:[%s307 + $0xb0] sm:$0xff]
        %v332 = vld [vmem:[%s307 + $0xb8] sm:$0xff]
        %v333 = vld [vmem:[%s307 + $0xc0] sm:$0xff]
        %v334 = vld [vmem:[%s307 + $0xc8] sm:$0xff]
        %v335 = vld [vmem:[%s307 + $0xd0] sm:$0xff]
        %v336 = vld [vmem:[%s307 + $0xd8] sm:$0xff]
        %v337 = vld [vmem:[#allocation2] sm:$0xff]
        %v338 = vld [vmem:[#allocation2 + $0x8] sm:$0xff]
        %v339 = vld [vmem:[#allocation2 + $0x10] sm:$0xff]
        %v340 = vld [vmem:[#allocation2 + $0x18] sm:$0xff]
        %v341 = vld [vmem:[#allocation2 + $0x20] sm:$0xff]
        %v342 = vld [vmem:[#allocation2 + $0x28] sm:$0xff]
        %v343 = vld [vmem:[#allocation2 + $0x30] sm:$0xff]
        %v344 = vld [vmem:[#allocation2 + $0x38] sm:$0xff]
        %v345 = vld [vmem:[#allocation2 + $0x40] sm:$0xff]
        %v346 = vld [vmem:[#allocation2 + $0x48] sm:$0xff]
        %v347 = vld [vmem:[#allocation2 + $0x50] sm:$0xff]
        %v348 = vld [vmem:[#allocation2 + $0x58] sm:$0xff]
        %v349 = vld [vmem:[#allocation2 + $0x60] sm:$0xff]
        %v350 = vld [vmem:[#allocation2 + $0x68] sm:$0xff]
        %v351 = vld [vmem:[#allocation2 + $0x70] sm:$0xff]
        %v352 = vld [vmem:[#allocation2 + $0x78] sm:$0xff]
        %v353 = vld [vmem:[#allocation2 + $0x80] sm:$0xff]
        %v354 = vld [vmem:[#allocation2 + $0x88] sm:$0xff]
        %v355 = vld [vmem:[#allocation2 + $0x90] sm:$0xff]
        %v356 = vld [vmem:[#allocation2 + $0x98] sm:$0xff]
        %v357 = vld [vmem:[#allocation2 + $0xa0] sm:$0xff]
        %v358 = vld [vmem:[#allocation2 + $0xa8] sm:$0xff]
        %v359 = vld [vmem:[#allocation2 + $0xb0] sm:$0xff]
        %v360 = vld [vmem:[#allocation2 + $0xb8] sm:$0xff]
        %v361 = vld [vmem:[#allocation2 + $0xc0] sm:$0xff]
        %v362 = vld [vmem:[#allocation2 + $0xc8] sm:$0xff]
        %v363 = vld [vmem:[#allocation2 + $0xd0] sm:$0xff]
        %v364 = vld [vmem:[#allocation2 + $0xd8] sm:$0xff]
        %v365 = vld [vmem:[#allocation2 + $0xe0] sm:$0xff]
        %v366 = vld [vmem:[#allocation2 + $0xe8] sm:$0xff]
        %v367 = vld [vmem:[#allocation2 + $0xf0] sm:$0xf]
        %v368 = vld [vmem:[#allocation2 + $0xf8] sm:$0xf]
        %v369 = vld [vmem:[#allocation2 + $0x100] sm:$0xf]
        %v370 = vld [vmem:[#allocation2 + $0x108] sm:$0xf]
        %v371 = vld [vmem:[#allocation2 + $0x110] sm:$0xf]
        %v372 = vld [vmem:[#allocation2 + $0x118] sm:$0xf]
        %v373 = vld [vmem:[#allocation2 + $0x120] sm:$0xf]
        %v374 = vld [vmem:[#allocation2 + $0x128] sm:$0xf]
        %v375 = vld [vmem:[#allocation2 + $0x130] sm:$0xf]
        %v376 = vld [vmem:[#allocation2 + $0x138] sm:$0xf]
        %vm377 = vcmask 228352
        %v379 = vsel %vm377, %v309, 0
        %v382 = vsel %vm377, %v310, 0
        %v385 = vsel %vm377, %v311, 0
        %v388 = vsel %vm377, %v312, 0
        %v391 = vsel %vm377, %v313, 0
        %v394 = vsel %vm377, %v314, 0
        %v397 = vsel %vm377, %v315, 0
        %v400 = vsel %vm377, %v316, 0
        %v403 = vsel %vm377, %v317, 0
        %v406 = vsel %vm377, %v318, 0
        %v409 = vsel %vm377, %v319, 0
        %v412 = vsel %vm377, %v320, 0
        %v415 = vsel %vm377, %v321, 0
        %v418 = vsel %vm377, %v322, 0
        %v421 = vsel %vm377, %v323, 0
        %v424 = vsel %vm377, %v324, 0
        %v427 = vsel %vm377, %v325, 0
        %v430 = vsel %vm377, %v326, 0
        %v433 = vsel %vm377, %v327, 0
        %v436 = vsel %vm377, %v328, 0
        %v439 = vsel %vm377, %v329, 0
        %v442 = vsel %vm377, %v330, 0
        %v445 = vsel %vm377, %v331, 0
        %v448 = vsel %vm377, %v332, 0
        %v451 = vsel %vm377, %v333, 0
        %v454 = vsel %vm377, %v334, 0
        %v457 = vsel %vm377, %v335, 0
        %v460 = vsel %vm377, %v336, 0
        %vm462 = vcmask 1043456
        %v464 = vsel %vm462, %v367, 0
        %v467 = vsel %vm462, %v368, 0
        %v470 = vsel %vm462, %v369, 0
        %v473 = vsel %vm462, %v370, 0
        %v476 = vsel %vm462, %v371, 0
        %v479 = vsel %vm462, %v372, 0
        %v482 = vsel %vm462, %v373, 0
        %v485 = vsel %vm462, %v374, 0
        %v488 = vsel %vm462, %v375, 0
        %v491 = vsel %vm462, %v376, 0
        %493 = vmatprep.subr.mxu0 0.0
        %494 = vmatpush1.msra.mxu0 0.0
        %495 = vmatprep.subr.mxu0 0.0
        %496 = vmatpush1.msra.mxu0 0.0
        %497 = vmatprep.subr.mxu0 0.0
        %498 = vmatpush1.msra.mxu0 0.0
        %499 = vmatprep.subr.mxu0 0.0
        %500 = vmatpush1.msra.mxu0 0.0
        %501 = vmatprep.subr.mxu0 0.0
        %502 = vmatpush1.msra.mxu0 0.0
        %503 = vmatprep.subr.mxu0 0.0
        %504 = vmatpush1.msra.mxu0 0.0
        %505 = vmatprep.subr.mxu0 0.0
        %506 = vmatpush1.msra.mxu0 0.0
        %507 = vmatprep.subr.mxu0 0.0
        %508 = vmatpush1.msra.mxu0 0.0
        %509 = vmatprep.subr.mxu0 0.0
        %510 = vmatpush1.msra.mxu0 0.0
        %511 = vmatprep.subr.mxu0 0.0
        %512 = vmatpush1.msra.mxu0 0.0
        %513 = vmatprep.subr.mxu0 0.0
        %514 = vmatpush1.msra.mxu0 0.0
        %515 = vmatprep.subr.mxu0 0.0
        %516 = vmatpush1.msra.mxu0 0.0
        %517 = vmatprep.subr.mxu0 %v467
        %518 = vmatpush1.msra.mxu0 %v464
        %519 = vmatprep.subr.mxu0 %v358
        %520 = vmatpush1.msra.mxu0 %v357
        %521 = vmatprep.subr.mxu0 %v348
        %522 = vmatpush1.msra.mxu0 %v347
        %523 = vmatprep.subr.mxu0 %v338
        %524 = vmatpush1.msra.mxu0 %v337
        %525 = vmatprep.subr.mxu0 0.0
        %526 = vmatpush2.msra.mxu0 0.0
        %527 = vmatprep.subr.mxu0 0.0
        %528 = vmatpush2.msra.mxu0 0.0
        %529 = vmatprep.subr.mxu0 0.0
        %530 = vmatpush2.msra.mxu0 0.0
        %531 = vmatprep.subr.mxu0 0.0
        %532 = vmatpush2.msra.mxu0 0.0
        %533 = vmatprep.subr.mxu0 0.0
        %534 = vmatpush2.msra.mxu0 0.0
        %535 = vmatprep.subr.mxu0 0.0
        %536 = vmatpush2.msra.mxu0 0.0
        %537 = vmatprep.subr.mxu0 0.0
        %538 = vmatpush2.msra.mxu0 0.0
        %539 = vmatprep.subr.mxu0 0.0
        %540 = vmatpush2.msra.mxu0 0.0
        %541 = vmatprep.subr.mxu0 0.0
        %542 = vmatpush2.msra.mxu0 0.0
        %543 = vmatprep.subr.mxu0 0.0
        %544 = vmatpush2.msra.mxu0 0.0
        %545 = vmatprep.subr.mxu0 0.0
        %546 = vmatpush2.msra.mxu0 0.0
        %547 = vmatprep.subr.mxu0 0.0
        %548 = vmatpush2.msra.mxu0 0.0
        %549 = vmatprep.subr.mxu0 0.0
        %550 = vmatpush2.msra.mxu0 0.0
        %551 = vmatprep.subr.mxu0 0.0
        %552 = vmatpush2.msra.mxu0 0.0
        %553 = vmatprep.subr.mxu0 0.0
        %554 = vmatpush2.msra.mxu0 0.0
        %555 = vmatprep.subr.mxu0 0.0
        %556 = vmatpush2.msra.mxu0 0.0
        %557 = vmatprep.mubr.f32.mxu0 0.0
        %558 = vmatmul.mubr.f32.gmra.mxu0 %v379
        %v559 = vpop.f32.mrf.mxu0
        %v560 = vadd.f32 0.0, %v559
        %v561 = vpop.f32.mrf.mxu0
        %v562 = vadd.f32 0.0, %v561
        %563 = vmatprep.mubr.f32.mxu0 0.0
        %564 = vmatmul.mubr.f32.gmra.mxu0 %v382
        %v565 = vpop.f32.mrf.mxu0
        %v566 = vadd.f32 0.0, %v565
        %v567 = vpop.f32.mrf.mxu0
        %v568 = vadd.f32 0.0, %v567
        %569 = vmatprep.mubr.f32.mxu0 0.0
        %570 = vmatmul.mubr.f32.gmra.mxu0 %v385
        %v571 = vpop.f32.mrf.mxu0
        %v572 = vadd.f32 0.0, %v571
        %v573 = vpop.f32.mrf.mxu0
        %v574 = vadd.f32 0.0, %v573
        %575 = vmatprep.mubr.f32.mxu0 0.0
        %576 = vmatmul.mubr.f32.gmra.mxu0 %v388
        %v577 = vpop.f32.mrf.mxu0
        %v578 = vadd.f32 0.0, %v577
        %v579 = vpop.f32.mrf.mxu0
        %v580 = vadd.f32 0.0, %v579
        %581 = vmatprep.mubr.f32.mxu0 0.0
        %582 = vmatmul.mubr.f32.gmra.mxu0 %v391
        %v583 = vpop.f32.mrf.mxu0
        %v584 = vadd.f32 0.0, %v583
        %v585 = vpop.f32.mrf.mxu0
        %v586 = vadd.f32 0.0, %v585
        %587 = vmatprep.mubr.f32.mxu0 0.0
        %588 = vmatmul.mubr.f32.gmra.mxu0 %v394
        %v589 = vpop.f32.mrf.mxu0
        %v590 = vadd.f32 0.0, %v589
        %v591 = vpop.f32.mrf.mxu0
        %v592 = vadd.f32 0.0, %v591
        %593 = vmatprep.mubr.f32.mxu0 0.0
        %594 = vmatmul.mubr.f32.gmra.mxu0 %v397
        %v595 = vpop.f32.mrf.mxu0
        %v596 = vadd.f32 0.0, %v595
        %v597 = vpop.f32.mrf.mxu0
        %v598 = vadd.f32 0.0, %v597
        %599 = vmatprep.mubr.f32.mxu0 0.0
        %600 = vmatmul.mubr.f32.gmra.mxu0 %v400
        %v601 = vpop.f32.mrf.mxu0
        %v602 = vadd.f32 0.0, %v601
        %v603 = vpop.f32.mrf.mxu0
        %v604 = vadd.f32 0.0, %v603
        %605 = vmatprep.mubr.f32.mxu0 0.0
        %606 = vmatmul.mubr.f32.gmra.mxu0 %v403
        %v607 = vpop.f32.mrf.mxu0
        %v608 = vadd.f32 0.0, %v607
        %v609 = vpop.f32.mrf.mxu0
        %v610 = vadd.f32 0.0, %v609
        %611 = vmatprep.mubr.f32.mxu0 0.0
        %612 = vmatmul.mubr.f32.gmra.mxu0 %v406
        %v613 = vpop.f32.mrf.mxu0
        %v614 = vadd.f32 0.0, %v613
        %v615 = vpop.f32.mrf.mxu0
        %v616 = vadd.f32 0.0, %v615
        %617 = vmatprep.mubr.f32.mxu0 0.0
        %618 = vmatmul.mubr.f32.gmra.mxu0 %v409
        %v619 = vpop.f32.mrf.mxu0
        %v620 = vadd.f32 0.0, %v619
        %v621 = vpop.f32.mrf.mxu0
        %v622 = vadd.f32 0.0, %v621
        %623 = vmatprep.mubr.f32.mxu0 0.0
        %624 = vmatmul.mubr.f32.gmra.mxu0 %v412
        %v625 = vpop.f32.mrf.mxu0
        %v626 = vadd.f32 0.0, %v625
        %v627 = vpop.f32.mrf.mxu0
        %v628 = vadd.f32 0.0, %v627
        %629 = vmatprep.mubr.f32.mxu0 0.0
        %630 = vmatmul.mubr.f32.gmra.mxu0 %v415
        %v631 = vpop.f32.mrf.mxu0
        %v632 = vadd.f32 0.0, %v631
        %v633 = vpop.f32.mrf.mxu0
        %v634 = vadd.f32 0.0, %v633
        %635 = vmatprep.mubr.f32.mxu0 0.0
        %636 = vmatmul.mubr.f32.gmra.mxu0 %v418
        %v637 = vpop.f32.mrf.mxu0
        %v638 = vadd.f32 0.0, %v637
        %v639 = vpop.f32.mrf.mxu0
        %v640 = vadd.f32 0.0, %v639
        %641 = vmatprep.mubr.f32.mxu0 0.0
        %642 = vmatmul.mubr.f32.gmra.mxu0 %v421
        %v643 = vpop.f32.mrf.mxu0
        %v644 = vadd.f32 0.0, %v643
        %v645 = vpop.f32.mrf.mxu0
        %v646 = vadd.f32 0.0, %v645
        %647 = vmatprep.mubr.f32.mxu0 0.0
        %648 = vmatmul.mubr.f32.gmra.mxu0 %v424
        %v649 = vpop.f32.mrf.mxu0
        %v650 = vadd.f32 0.0, %v649
        %v651 = vpop.f32.mrf.mxu0
        %v652 = vadd.f32 0.0, %v651
        %653 = vmatprep.mubr.f32.mxu0 0.0
        %654 = vmatmul.mubr.f32.gmra.mxu0 %v427
        %v655 = vpop.f32.mrf.mxu0
        %v656 = vadd.f32 0.0, %v655
        %v657 = vpop.f32.mrf.mxu0
        %v658 = vadd.f32 0.0, %v657
        %659 = vmatprep.mubr.f32.mxu0 0.0
        %660 = vmatmul.mubr.f32.gmra.mxu0 %v430
        %v661 = vpop.f32.mrf.mxu0
        %v662 = vadd.f32 0.0, %v661
        %v663 = vpop.f32.mrf.mxu0
        %v664 = vadd.f32 0.0, %v663
        %665 = vmatprep.mubr.f32.mxu0 0.0
        %666 = vmatmul.mubr.f32.gmra.mxu0 %v433
        %v667 = vpop.f32.mrf.mxu0
        %v668 = vadd.f32 0.0, %v667
        %v669 = vpop.f32.mrf.mxu0
        %v670 = vadd.f32 0.0, %v669
        %671 = vmatprep.mubr.f32.mxu0 0.0
        %672 = vmatmul.mubr.f32.gmra.mxu0 %v436
        %v673 = vpop.f32.mrf.mxu0
        %v674 = vadd.f32 0.0, %v673
        %v675 = vpop.f32.mrf.mxu0
        %v676 = vadd.f32 0.0, %v675
        %677 = vmatprep.mubr.f32.mxu0 0.0
        %678 = vmatmul.mubr.f32.gmra.mxu0 %v439
        %v679 = vpop.f32.mrf.mxu0
        %v680 = vadd.f32 0.0, %v679
        %v681 = vpop.f32.mrf.mxu0
        %v682 = vadd.f32 0.0, %v681
        %683 = vmatprep.mubr.f32.mxu0 0.0
        %684 = vmatmul.mubr.f32.gmra.mxu0 %v442
        %v685 = vpop.f32.mrf.mxu0
        %v686 = vadd.f32 0.0, %v685
        %v687 = vpop.f32.mrf.mxu0
        %v688 = vadd.f32 0.0, %v687
        %689 = vmatprep.mubr.f32.mxu0 0.0
        %690 = vmatmul.mubr.f32.gmra.mxu0 %v445
        %v691 = vpop.f32.mrf.mxu0
        %v692 = vadd.f32 0.0, %v691
        %v693 = vpop.f32.mrf.mxu0
        %v694 = vadd.f32 0.0, %v693
        %695 = vmatprep.mubr.f32.mxu0 0.0
        %696 = vmatmul.mubr.f32.gmra.mxu0 %v448
        %v697 = vpop.f32.mrf.mxu0
        %v698 = vadd.f32 0.0, %v697
        %v699 = vpop.f32.mrf.mxu0
        %v700 = vadd.f32 0.0, %v699
        %701 = vmatprep.mubr.f32.mxu0 0.0
        %702 = vmatmul.mubr.f32.gmra.mxu0 %v451
        %v703 = vpop.f32.mrf.mxu0
        %v704 = vadd.f32 0.0, %v703
        %v705 = vpop.f32.mrf.mxu0
        %v706 = vadd.f32 0.0, %v705
        %707 = vmatprep.mubr.f32.mxu0 0.0
        %708 = vmatmul.mubr.f32.gmra.mxu0 %v454
        %v709 = vpop.f32.mrf.mxu0
        %v710 = vadd.f32 0.0, %v709
        %v711 = vpop.f32.mrf.mxu0
        %v712 = vadd.f32 0.0, %v711
        %713 = vmatprep.mubr.f32.mxu0 0.0
        %714 = vmatmul.mubr.f32.gmra.mxu0 %v457
        %v715 = vpop.f32.mrf.mxu0
        %v716 = vadd.f32 0.0, %v715
        %v717 = vpop.f32.mrf.mxu0
        %v718 = vadd.f32 0.0, %v717
        %719 = vmatprep.mubr.f32.mxu0 0.0
        %720 = vmatmul.mubr.f32.gmra.mxu0 %v460
        %v721 = vpop.f32.mrf.mxu0
        %v722 = vadd.f32 0.0, %v721
        %v723 = vpop.f32.mrf.mxu0
        %v724 = vadd.f32 0.0, %v723
        %725 = vdwg.mxu0
        %726 = vmatprep.subr.mxu0 0.0
        %727 = vmatpush1.msra.mxu0 0.0
        %728 = vmatprep.subr.mxu0 0.0
        %729 = vmatpush1.msra.mxu0 0.0
        %730 = vmatprep.subr.mxu0 0.0
        %731 = vmatpush1.msra.mxu0 0.0
        %732 = vmatprep.subr.mxu0 0.0
        %733 = vmatpush1.msra.mxu0 0.0
        %734 = vmatprep.subr.mxu0 0.0
        %735 = vmatpush1.msra.mxu0 0.0
        %736 = vmatprep.subr.mxu0 0.0
        %737 = vmatpush1.msra.mxu0 0.0
        %738 = vmatprep.subr.mxu0 0.0
        %739 = vmatpush1.msra.mxu0 0.0
        %740 = vmatprep.subr.mxu0 0.0
        %741 = vmatpush1.msra.mxu0 0.0
        %742 = vmatprep.subr.mxu0 0.0
        %743 = vmatpush1.msra.mxu0 0.0
        %744 = vmatprep.subr.mxu0 0.0
        %745 = vmatpush1.msra.mxu0 0.0
        %746 = vmatprep.subr.mxu0 0.0
        %747 = vmatpush1.msra.mxu0 0.0
        %748 = vmatprep.subr.mxu0 0.0
        %749 = vmatpush1.msra.mxu0 0.0
        %750 = vmatprep.subr.mxu0 %v473
        %751 = vmatpush1.msra.mxu0 %v470
        %752 = vmatprep.subr.mxu0 %v360
        %753 = vmatpush1.msra.mxu0 %v359
        %754 = vmatprep.subr.mxu0 %v350
        %755 = vmatpush1.msra.mxu0 %v349
        %756 = vmatprep.subr.mxu0 %v340
        %757 = vmatpush1.msra.mxu0 %v339
        %758 = vmatprep.subr.mxu0 0.0
        %759 = vmatpush2.msra.mxu0 0.0
        %760 = vmatprep.subr.mxu0 0.0
        %761 = vmatpush2.msra.mxu0 0.0
        %762 = vmatprep.subr.mxu0 0.0
        %763 = vmatpush2.msra.mxu0 0.0
        %764 = vmatprep.subr.mxu0 0.0
        %765 = vmatpush2.msra.mxu0 0.0
        %766 = vmatprep.subr.mxu0 0.0
        %767 = vmatpush2.msra.mxu0 0.0
        %768 = vmatprep.subr.mxu0 0.0
        %769 = vmatpush2.msra.mxu0 0.0
        %770 = vmatprep.subr.mxu0 0.0
        %771 = vmatpush2.msra.mxu0 0.0
        %772 = vmatprep.subr.mxu0 0.0
        %773 = vmatpush2.msra.mxu0 0.0
        %774 = vmatprep.subr.mxu0 0.0
        %775 = vmatpush2.msra.mxu0 0.0
        %776 = vmatprep.subr.mxu0 0.0
        %777 = vmatpush2.msra.mxu0 0.0
        %778 = vmatprep.subr.mxu0 0.0
        %779 = vmatpush2.msra.mxu0 0.0
        %780 = vmatprep.subr.mxu0 0.0
        %781 = vmatpush2.msra.mxu0 0.0
        %782 = vmatprep.subr.mxu0 0.0
        %783 = vmatpush2.msra.mxu0 0.0
        %784 = vmatprep.subr.mxu0 0.0
        %785 = vmatpush2.msra.mxu0 0.0
        %786 = vmatprep.subr.mxu0 0.0
        %787 = vmatpush2.msra.mxu0 0.0
        %788 = vmatprep.subr.mxu0 0.0
        %789 = vmatpush2.msra.mxu0 0.0
        %790 = vmatprep.mubr.f32.mxu0 0.0
        %791 = vmatmul.mubr.f32.gmra.mxu0 %v379
        %v792 = vpop.f32.mrf.mxu0
        %v793 = vadd.f32 0.0, %v792
        %v794 = vpop.f32.mrf.mxu0
        %v795 = vadd.f32 0.0, %v794
        %796 = vmatprep.mubr.f32.mxu0 0.0
        %797 = vmatmul.mubr.f32.gmra.mxu0 %v382
        %v798 = vpop.f32.mrf.mxu0
        %v799 = vadd.f32 0.0, %v798
        %v800 = vpop.f32.mrf.mxu0
        %v801 = vadd.f32 0.0, %v800
        %802 = vmatprep.mubr.f32.mxu0 0.0
        %803 = vmatmul.mubr.f32.gmra.mxu0 %v385
        %v804 = vpop.f32.mrf.mxu0
        %v805 = vadd.f32 0.0, %v804
        %v806 = vpop.f32.mrf.mxu0
        %v807 = vadd.f32 0.0, %v806
        %808 = vmatprep.mubr.f32.mxu0 0.0
        %809 = vmatmul.mubr.f32.gmra.mxu0 %v388
        %v810 = vpop.f32.mrf.mxu0
        %v811 = vadd.f32 0.0, %v810
        %v812 = vpop.f32.mrf.mxu0
        %v813 = vadd.f32 0.0, %v812
        %814 = vmatprep.mubr.f32.mxu0 0.0
        %815 = vmatmul.mubr.f32.gmra.mxu0 %v391
        %v816 = vpop.f32.mrf.mxu0
        %v817 = vadd.f32 0.0, %v816
        %v818 = vpop.f32.mrf.mxu0
        %v819 = vadd.f32 0.0, %v818
        %820 = vmatprep.mubr.f32.mxu0 0.0
        %821 = vmatmul.mubr.f32.gmra.mxu0 %v394
        %v822 = vpop.f32.mrf.mxu0
        %v823 = vadd.f32 0.0, %v822
        %v824 = vpop.f32.mrf.mxu0
        %v825 = vadd.f32 0.0, %v824
        %826 = vmatprep.mubr.f32.mxu0 0.0
        %827 = vmatmul.mubr.f32.gmra.mxu0 %v397
        %v828 = vpop.f32.mrf.mxu0
        %v829 = vadd.f32 0.0, %v828
        %v830 = vpop.f32.mrf.mxu0
        %v831 = vadd.f32 0.0, %v830
        %832 = vmatprep.mubr.f32.mxu0 0.0
        %833 = vmatmul.mubr.f32.gmra.mxu0 %v400
        %v834 = vpop.f32.mrf.mxu0
        %v835 = vadd.f32 0.0, %v834
        %v836 = vpop.f32.mrf.mxu0
        %v837 = vadd.f32 0.0, %v836
        %838 = vmatprep.mubr.f32.mxu0 0.0
        %839 = vmatmul.mubr.f32.gmra.mxu0 %v403
        %v840 = vpop.f32.mrf.mxu0
        %v841 = vadd.f32 0.0, %v840
        %v842 = vpop.f32.mrf.mxu0
        %v843 = vadd.f32 0.0, %v842
        %844 = vmatprep.mubr.f32.mxu0 0.0
        %845 = vmatmul.mubr.f32.gmra.mxu0 %v406
        %v846 = vpop.f32.mrf.mxu0
        %v847 = vadd.f32 0.0, %v846
        %v848 = vpop.f32.mrf.mxu0
        %v849 = vadd.f32 0.0, %v848
        %850 = vmatprep.mubr.f32.mxu0 0.0
        %851 = vmatmul.mubr.f32.gmra.mxu0 %v409
        %v852 = vpop.f32.mrf.mxu0
        %v853 = vadd.f32 0.0, %v852
        %v854 = vpop.f32.mrf.mxu0
        %v855 = vadd.f32 0.0, %v854
        %856 = vmatprep.mubr.f32.mxu0 0.0
        %857 = vmatmul.mubr.f32.gmra.mxu0 %v412
        %v858 = vpop.f32.mrf.mxu0
        %v859 = vadd.f32 0.0, %v858
        %v860 = vpop.f32.mrf.mxu0
        %v861 = vadd.f32 0.0, %v860
        %862 = vmatprep.mubr.f32.mxu0 0.0
        %863 = vmatmul.mubr.f32.gmra.mxu0 %v415
        %v864 = vpop.f32.mrf.mxu0
        %v865 = vadd.f32 0.0, %v864
        %v866 = vpop.f32.mrf.mxu0
        %v867 = vadd.f32 0.0, %v866
        %868 = vmatprep.mubr.f32.mxu0 0.0
        %869 = vmatmul.mubr.f32.gmra.mxu0 %v418
        %v870 = vpop.f32.mrf.mxu0
        %v871 = vadd.f32 0.0, %v870
        %v872 = vpop.f32.mrf.mxu0
        %v873 = vadd.f32 0.0, %v872
        %874 = vmatprep.mubr.f32.mxu0 0.0
        %875 = vmatmul.mubr.f32.gmra.mxu0 %v421
        %v876 = vpop.f32.mrf.mxu0
        %v877 = vadd.f32 0.0, %v876
        %v878 = vpop.f32.mrf.mxu0
        %v879 = vadd.f32 0.0, %v878
        %880 = vmatprep.mubr.f32.mxu0 0.0
        %881 = vmatmul.mubr.f32.gmra.mxu0 %v424
        %v882 = vpop.f32.mrf.mxu0
        %v883 = vadd.f32 0.0, %v882
        %v884 = vpop.f32.mrf.mxu0
        %v885 = vadd.f32 0.0, %v884
        %886 = vmatprep.mubr.f32.mxu0 0.0
        %887 = vmatmul.mubr.f32.gmra.mxu0 %v427
        %v888 = vpop.f32.mrf.mxu0
        %v889 = vadd.f32 0.0, %v888
        %v890 = vpop.f32.mrf.mxu0
        %v891 = vadd.f32 0.0, %v890
        %892 = vmatprep.mubr.f32.mxu0 0.0
        %893 = vmatmul.mubr.f32.gmra.mxu0 %v430
        %v894 = vpop.f32.mrf.mxu0
        %v895 = vadd.f32 0.0, %v894
        %v896 = vpop.f32.mrf.mxu0
        %v897 = vadd.f32 0.0, %v896
        %898 = vmatprep.mubr.f32.mxu0 0.0
        %899 = vmatmul.mubr.f32.gmra.mxu0 %v433
        %v900 = vpop.f32.mrf.mxu0
        %v901 = vadd.f32 0.0, %v900
        %v902 = vpop.f32.mrf.mxu0
        %v903 = vadd.f32 0.0, %v902
        %904 = vmatprep.mubr.f32.mxu0 0.0
        %905 = vmatmul.mubr.f32.gmra.mxu0 %v436
        %v906 = vpop.f32.mrf.mxu0
        %v907 = vadd.f32 0.0, %v906
        %v908 = vpop.f32.mrf.mxu0
        %v909 = vadd.f32 0.0, %v908
        %910 = vmatprep.mubr.f32.mxu0 0.0
        %911 = vmatmul.mubr.f32.gmra.mxu0 %v439
        %v912 = vpop.f32.mrf.mxu0
        %v913 = vadd.f32 0.0, %v912
        %v914 = vpop.f32.mrf.mxu0
        %v915 = vadd.f32 0.0, %v914
        %916 = vmatprep.mubr.f32.mxu0 0.0
        %917 = vmatmul.mubr.f32.gmra.mxu0 %v442
        %v918 = vpop.f32.mrf.mxu0
        %v919 = vadd.f32 0.0, %v918
        %v920 = vpop.f32.mrf.mxu0
        %v921 = vadd.f32 0.0, %v920
        %922 = vmatprep.mubr.f32.mxu0 0.0
        %923 = vmatmul.mubr.f32.gmra.mxu0 %v445
        %v924 = vpop.f32.mrf.mxu0
        %v925 = vadd.f32 0.0, %v924
        %v926 = vpop.f32.mrf.mxu0
        %v927 = vadd.f32 0.0, %v926
        %928 = vmatprep.mubr.f32.mxu0 0.0
        %929 = vmatmul.mubr.f32.gmra.mxu0 %v448
        %v930 = vpop.f32.mrf.mxu0
        %v931 = vadd.f32 0.0, %v930
        %v932 = vpop.f32.mrf.mxu0
        %v933 = vadd.f32 0.0, %v932
        %934 = vmatprep.mubr.f32.mxu0 0.0
        %935 = vmatmul.mubr.f32.gmra.mxu0 %v451
        %v936 = vpop.f32.mrf.mxu0
        %v937 = vadd.f32 0.0, %v936
        %v938 = vpop.f32.mrf.mxu0
        %v939 = vadd.f32 0.0, %v938
        %940 = vmatprep.mubr.f32.mxu0 0.0
        %941 = vmatmul.mubr.f32.gmra.mxu0 %v454
        %v942 = vpop.f32.mrf.mxu0
        %v943 = vadd.f32 0.0, %v942
        %v944 = vpop.f32.mrf.mxu0
        %v945 = vadd.f32 0.0, %v944
        %946 = vmatprep.mubr.f32.mxu0 0.0
        %947 = vmatmul.mubr.f32.gmra.mxu0 %v457
        %v948 = vpop.f32.mrf.mxu0
        %v949 = vadd.f32 0.0, %v948
        %v950 = vpop.f32.mrf.mxu0
        %v951 = vadd.f32 0.0, %v950
        %952 = vmatprep.mubr.f32.mxu0 0.0
        %953 = vmatmul.mubr.f32.gmra.mxu0 %v460
        %v954 = vpop.f32.mrf.mxu0
        %v955 = vadd.f32 0.0, %v954
        %v956 = vpop.f32.mrf.mxu0
        %v957 = vadd.f32 0.0, %v956
        %958 = vdwg.mxu0
        %959 = vmatprep.subr.mxu0 0.0
        %960 = vmatpush1.msra.mxu0 0.0
        %961 = vmatprep.subr.mxu0 0.0
        %962 = vmatpush1.msra.mxu0 0.0
        %963 = vmatprep.subr.mxu0 0.0
        %964 = vmatpush1.msra.mxu0 0.0
        %965 = vmatprep.subr.mxu0 0.0
        %966 = vmatpush1.msra.mxu0 0.0
        %967 = vmatprep.subr.mxu0 0.0
        %968 = vmatpush1.msra.mxu0 0.0
        %969 = vmatprep.subr.mxu0 0.0
        %970 = vmatpush1.msra.mxu0 0.0
        %971 = vmatprep.subr.mxu0 0.0
        %972 = vmatpush1.msra.mxu0 0.0
        %973 = vmatprep.subr.mxu0 0.0
        %974 = vmatpush1.msra.mxu0 0.0
        %975 = vmatprep.subr.mxu0 0.0
        %976 = vmatpush1.msra.mxu0 0.0
        %977 = vmatprep.subr.mxu0 0.0
        %978 = vmatpush1.msra.mxu0 0.0
        %979 = vmatprep.subr.mxu0 0.0
        %980 = vmatpush1.msra.mxu0 0.0
        %981 = vmatprep.subr.mxu0 0.0
        %982 = vmatpush1.msra.mxu0 0.0
        %983 = vmatprep.subr.mxu0 %v479
        %984 = vmatpush1.msra.mxu0 %v476
        %985 = vmatprep.subr.mxu0 %v362
        %986 = vmatpush1.msra.mxu0 %v361
        %987 = vmatprep.subr.mxu0 %v352
        %988 = vmatpush1.msra.mxu0 %v351
        %989 = vmatprep.subr.mxu0 %v342
        %990 = vmatpush1.msra.mxu0 %v341
        %991 = vmatprep.subr.mxu0 0.0
        %992 = vmatpush2.msra.mxu0 0.0
        %993 = vmatprep.subr.mxu0 0.0
        %994 = vmatpush2.msra.mxu0 0.0
        %995 = vmatprep.subr.mxu0 0.0
        %996 = vmatpush2.msra.mxu0 0.0
        %997 = vmatprep.subr.mxu0 0.0
        %998 = vmatpush2.msra.mxu0 0.0
        %999 = vmatprep.subr.mxu0 0.0
        %1000 = vmatpush2.msra.mxu0 0.0
        %1001 = vmatprep.subr.mxu0 0.0
        %1002 = vmatpush2.msra.mxu0 0.0
        %1003 = vmatprep.subr.mxu0 0.0
        %1004 = vmatpush2.msra.mxu0 0.0
        %1005 = vmatprep.subr.mxu0 0.0
        %1006 = vmatpush2.msra.mxu0 0.0
        %1007 = vmatprep.subr.mxu0 0.0
        %1008 = vmatpush2.msra.mxu0 0.0
        %1009 = vmatprep.subr.mxu0 0.0
        %1010 = vmatpush2.msra.mxu0 0.0
        %1011 = vmatprep.subr.mxu0 0.0
        %1012 = vmatpush2.msra.mxu0 0.0
        %1013 = vmatprep.subr.mxu0 0.0
        %1014 = vmatpush2.msra.mxu0 0.0
        %1015 = vmatprep.subr.mxu0 0.0
        %1016 = vmatpush2.msra.mxu0 0.0
        %1017 = vmatprep.subr.mxu0 0.0
        %1018 = vmatpush2.msra.mxu0 0.0
        %1019 = vmatprep.subr.mxu0 0.0
        %1020 = vmatpush2.msra.mxu0 0.0
        %1021 = vmatprep.subr.mxu0 0.0
        %1022 = vmatpush2.msra.mxu0 0.0
        %1023 = vmatprep.mubr.f32.mxu0 0.0
        %1024 = vmatmul.mubr.f32.gmra.mxu0 %v379
        %v1025 = vpop.f32.mrf.mxu0
        %v1026 = vadd.f32 0.0, %v1025
        %v1027 = vpop.f32.mrf.mxu0
        %v1028 = vadd.f32 0.0, %v1027
        %1029 = vmatprep.mubr.f32.mxu0 0.0
        %1030 = vmatmul.mubr.f32.gmra.mxu0 %v382
        %v1031 = vpop.f32.mrf.mxu0
        %v1032 = vadd.f32 0.0, %v1031
        %v1033 = vpop.f32.mrf.mxu0
        %v1034 = vadd.f32 0.0, %v1033
        %1035 = vmatprep.mubr.f32.mxu0 0.0
        %1036 = vmatmul.mubr.f32.gmra.mxu0 %v385
        %v1037 = vpop.f32.mrf.mxu0
        %v1038 = vadd.f32 0.0, %v1037
        %v1039 = vpop.f32.mrf.mxu0
        %v1040 = vadd.f32 0.0, %v1039
        %1041 = vmatprep.mubr.f32.mxu0 0.0
        %1042 = vmatmul.mubr.f32.gmra.mxu0 %v388
        %v1043 = vpop.f32.mrf.mxu0
        %v1044 = vadd.f32 0.0, %v1043
        %v1045 = vpop.f32.mrf.mxu0
        %v1046 = vadd.f32 0.0, %v1045
        %1047 = vmatprep.mubr.f32.mxu0 0.0
        %1048 = vmatmul.mubr.f32.gmra.mxu0 %v391
        %v1049 = vpop.f32.mrf.mxu0
        %v1050 = vadd.f32 0.0, %v1049
        %v1051 = vpop.f32.mrf.mxu0
        %v1052 = vadd.f32 0.0, %v1051
        %1053 = vmatprep.mubr.f32.mxu0 0.0
        %1054 = vmatmul.mubr.f32.gmra.mxu0 %v394
        %v1055 = vpop.f32.mrf.mxu0
        %v1056 = vadd.f32 0.0, %v1055
        %v1057 = vpop.f32.mrf.mxu0
        %v1058 = vadd.f32 0.0, %v1057
        %1059 = vmatprep.mubr.f32.mxu0 0.0
        %1060 = vmatmul.mubr.f32.gmra.mxu0 %v397
        %v1061 = vpop.f32.mrf.mxu0
        %v1062 = vadd.f32 0.0, %v1061
        %v1063 = vpop.f32.mrf.mxu0
        %v1064 = vadd.f32 0.0, %v1063
        %1065 = vmatprep.mubr.f32.mxu0 0.0
        %1066 = vmatmul.mubr.f32.gmra.mxu0 %v400
        %v1067 = vpop.f32.mrf.mxu0
        %v1068 = vadd.f32 0.0, %v1067
        %v1069 = vpop.f32.mrf.mxu0
        %v1070 = vadd.f32 0.0, %v1069
        %1071 = vmatprep.mubr.f32.mxu0 0.0
        %1072 = vmatmul.mubr.f32.gmra.mxu0 %v403
        %v1073 = vpop.f32.mrf.mxu0
        %v1074 = vadd.f32 0.0, %v1073
        %v1075 = vpop.f32.mrf.mxu0
        %v1076 = vadd.f32 0.0, %v1075
        %1077 = vmatprep.mubr.f32.mxu0 0.0
        %1078 = vmatmul.mubr.f32.gmra.mxu0 %v406
        %v1079 = vpop.f32.mrf.mxu0
        %v1080 = vadd.f32 0.0, %v1079
        %v1081 = vpop.f32.mrf.mxu0
        %v1082 = vadd.f32 0.0, %v1081
        %1083 = vmatprep.mubr.f32.mxu0 0.0
        %1084 = vmatmul.mubr.f32.gmra.mxu0 %v409
        %v1085 = vpop.f32.mrf.mxu0
        %v1086 = vadd.f32 0.0, %v1085
        %v1087 = vpop.f32.mrf.mxu0
        %v1088 = vadd.f32 0.0, %v1087
        %1089 = vmatprep.mubr.f32.mxu0 0.0
        %1090 = vmatmul.mubr.f32.gmra.mxu0 %v412
        %v1091 = vpop.f32.mrf.mxu0
        %v1092 = vadd.f32 0.0, %v1091
        %v1093 = vpop.f32.mrf.mxu0
        %v1094 = vadd.f32 0.0, %v1093
        %1095 = vmatprep.mubr.f32.mxu0 0.0
        %1096 = vmatmul.mubr.f32.gmra.mxu0 %v415
        %v1097 = vpop.f32.mrf.mxu0
        %v1098 = vadd.f32 0.0, %v1097
        %v1099 = vpop.f32.mrf.mxu0
        %v1100 = vadd.f32 0.0, %v1099
        %1101 = vmatprep.mubr.f32.mxu0 0.0
        %1102 = vmatmul.mubr.f32.gmra.mxu0 %v418
        %v1103 = vpop.f32.mrf.mxu0
        %v1104 = vadd.f32 0.0, %v1103
        %v1105 = vpop.f32.mrf.mxu0
        %v1106 = vadd.f32 0.0, %v1105
        %1107 = vmatprep.mubr.f32.mxu0 0.0
        %1108 = vmatmul.mubr.f32.gmra.mxu0 %v421
        %v1109 = vpop.f32.mrf.mxu0
        %v1110 = vadd.f32 0.0, %v1109
        %v1111 = vpop.f32.mrf.mxu0
        %v1112 = vadd.f32 0.0, %v1111
        %1113 = vmatprep.mubr.f32.mxu0 0.0
        %1114 = vmatmul.mubr.f32.gmra.mxu0 %v424
        %v1115 = vpop.f32.mrf.mxu0
        %v1116 = vadd.f32 0.0, %v1115
        %v1117 = vpop.f32.mrf.mxu0
        %v1118 = vadd.f32 0.0, %v1117
        %1119 = vmatprep.mubr.f32.mxu0 0.0
        %1120 = vmatmul.mubr.f32.gmra.mxu0 %v427
        %v1121 = vpop.f32.mrf.mxu0
        %v1122 = vadd.f32 0.0, %v1121
        %v1123 = vpop.f32.mrf.mxu0
        %v1124 = vadd.f32 0.0, %v1123
        %1125 = vmatprep.mubr.f32.mxu0 0.0
        %1126 = vmatmul.mubr.f32.gmra.mxu0 %v430
        %v1127 = vpop.f32.mrf.mxu0
        %v1128 = vadd.f32 0.0, %v1127
        %v1129 = vpop.f32.mrf.mxu0
        %v1130 = vadd.f32 0.0, %v1129
        %1131 = vmatprep.mubr.f32.mxu0 0.0
        %1132 = vmatmul.mubr.f32.gmra.mxu0 %v433
        %v1133 = vpop.f32.mrf.mxu0
        %v1134 = vadd.f32 0.0, %v1133
        %v1135 = vpop.f32.mrf.mxu0
        %v1136 = vadd.f32 0.0, %v1135
        %1137 = vmatprep.mubr.f32.mxu0 0.0
        %1138 = vmatmul.mubr.f32.gmra.mxu0 %v436
        %v1139 = vpop.f32.mrf.mxu0
        %v1140 = vadd.f32 0.0, %v1139
        %v1141 = vpop.f32.mrf.mxu0
        %v1142 = vadd.f32 0.0, %v1141
        %1143 = vmatprep.mubr.f32.mxu0 0.0
        %1144 = vmatmul.mubr.f32.gmra.mxu0 %v439
        %v1145 = vpop.f32.mrf.mxu0
        %v1146 = vadd.f32 0.0, %v1145
        %v1147 = vpop.f32.mrf.mxu0
        %v1148 = vadd.f32 0.0, %v1147
        %1149 = vmatprep.mubr.f32.mxu0 0.0
        %1150 = vmatmul.mubr.f32.gmra.mxu0 %v442
        %v1151 = vpop.f32.mrf.mxu0
        %v1152 = vadd.f32 0.0, %v1151
        %v1153 = vpop.f32.mrf.mxu0
        %v1154 = vadd.f32 0.0, %v1153
        %1155 = vmatprep.mubr.f32.mxu0 0.0
        %1156 = vmatmul.mubr.f32.gmra.mxu0 %v445
        %v1157 = vpop.f32.mrf.mxu0
        %v1158 = vadd.f32 0.0, %v1157
        %v1159 = vpop.f32.mrf.mxu0
        %v1160 = vadd.f32 0.0, %v1159
        %1161 = vmatprep.mubr.f32.mxu0 0.0
        %1162 = vmatmul.mubr.f32.gmra.mxu0 %v448
        %v1163 = vpop.f32.mrf.mxu0
        %v1164 = vadd.f32 0.0, %v1163
        %v1165 = vpop.f32.mrf.mxu0
        %v1166 = vadd.f32 0.0, %v1165
        %1167 = vmatprep.mubr.f32.mxu0 0.0
        %1168 = vmatmul.mubr.f32.gmra.mxu0 %v451
        %v1169 = vpop.f32.mrf.mxu0
        %v1170 = vadd.f32 0.0, %v1169
        %v1171 = vpop.f32.mrf.mxu0
        %v1172 = vadd.f32 0.0, %v1171
        %1173 = vmatprep.mubr.f32.mxu0 0.0
        %1174 = vmatmul.mubr.f32.gmra.mxu0 %v454
        %v1175 = vpop.f32.mrf.mxu0
        %v1176 = vadd.f32 0.0, %v1175
        %v1177 = vpop.f32.mrf.mxu0
        %v1178 = vadd.f32 0.0, %v1177
        %1179 = vmatprep.mubr.f32.mxu0 0.0
        %1180 = vmatmul.mubr.f32.gmra.mxu0 %v457
        %v1181 = vpop.f32.mrf.mxu0
        %v1182 = vadd.f32 0.0, %v1181
        %v1183 = vpop.f32.mrf.mxu0
        %v1184 = vadd.f32 0.0, %v1183
        %1185 = vmatprep.mubr.f32.mxu0 0.0
        %1186 = vmatmul.mubr.f32.gmra.mxu0 %v460
        %v1187 = vpop.f32.mrf.mxu0
        %v1188 = vadd.f32 0.0, %v1187
        %v1189 = vpop.f32.mrf.mxu0
        %v1190 = vadd.f32 0.0, %v1189
        %1191 = vdwg.mxu0
        %1192 = vmatprep.subr.mxu0 0.0
        %1193 = vmatpush1.msra.mxu0 0.0
        %1194 = vmatprep.subr.mxu0 0.0
        %1195 = vmatpush1.msra.mxu0 0.0
        %1196 = vmatprep.subr.mxu0 0.0
        %1197 = vmatpush1.msra.mxu0 0.0
        %1198 = vmatprep.subr.mxu0 0.0
        %1199 = vmatpush1.msra.mxu0 0.0
        %1200 = vmatprep.subr.mxu0 0.0
        %1201 = vmatpush1.msra.mxu0 0.0
        %1202 = vmatprep.subr.mxu0 0.0
        %1203 = vmatpush1.msra.mxu0 0.0
        %1204 = vmatprep.subr.mxu0 0.0
        %1205 = vmatpush1.msra.mxu0 0.0
        %1206 = vmatprep.subr.mxu0 0.0
        %1207 = vmatpush1.msra.mxu0 0.0
        %1208 = vmatprep.subr.mxu0 0.0
        %1209 = vmatpush1.msra.mxu0 0.0
        %1210 = vmatprep.subr.mxu0 0.0
        %1211 = vmatpush1.msra.mxu0 0.0
        %1212 = vmatprep.subr.mxu0 0.0
        %1213 = vmatpush1.msra.mxu0 0.0
        %1214 = vmatprep.subr.mxu0 0.0
        %1215 = vmatpush1.msra.mxu0 0.0
        %1216 = vmatprep.subr.mxu0 %v485
        %1217 = vmatpush1.msra.mxu0 %v482
        %1218 = vmatprep.subr.mxu0 %v364
        %1219 = vmatpush1.msra.mxu0 %v363
        %1220 = vmatprep.subr.mxu0 %v354
        %1221 = vmatpush1.msra.mxu0 %v353
        %1222 = vmatprep.subr.mxu0 %v344
        %1223 = vmatpush1.msra.mxu0 %v343
        %1224 = vmatprep.subr.mxu0 0.0
        %1225 = vmatpush2.msra.mxu0 0.0
        %1226 = vmatprep.subr.mxu0 0.0
        %1227 = vmatpush2.msra.mxu0 0.0
        %1228 = vmatprep.subr.mxu0 0.0
        %1229 = vmatpush2.msra.mxu0 0.0
        %1230 = vmatprep.subr.mxu0 0.0
        %1231 = vmatpush2.msra.mxu0 0.0
        %1232 = vmatprep.subr.mxu0 0.0
        %1233 = vmatpush2.msra.mxu0 0.0
        %1234 = vmatprep.subr.mxu0 0.0
        %1235 = vmatpush2.msra.mxu0 0.0
        %1236 = vmatprep.subr.mxu0 0.0
        %1237 = vmatpush2.msra.mxu0 0.0
        %1238 = vmatprep.subr.mxu0 0.0
        %1239 = vmatpush2.msra.mxu0 0.0
        %1240 = vmatprep.subr.mxu0 0.0
        %1241 = vmatpush2.msra.mxu0 0.0
        %1242 = vmatprep.subr.mxu0 0.0
        %1243 = vmatpush2.msra.mxu0 0.0
        %1244 = vmatprep.subr.mxu0 0.0
        %1245 = vmatpush2.msra.mxu0 0.0
        %1246 = vmatprep.subr.mxu0 0.0
        %1247 = vmatpush2.msra.mxu0 0.0
        %1248 = vmatprep.subr.mxu0 0.0
        %1249 = vmatpush2.msra.mxu0 0.0
        %1250 = vmatprep.subr.mxu0 0.0
        %1251 = vmatpush2.msra.mxu0 0.0
        %1252 = vmatprep.subr.mxu0 0.0
        %1253 = vmatpush2.msra.mxu0 0.0
        %1254 = vmatprep.subr.mxu0 0.0
        %1255 = vmatpush2.msra.mxu0 0.0
        %1256 = vmatprep.mubr.f32.mxu0 0.0
        %1257 = vmatmul.mubr.f32.gmra.mxu0 %v379
        %v1258 = vpop.f32.mrf.mxu0
        %v1259 = vadd.f32 0.0, %v1258
        %v1260 = vpop.f32.mrf.mxu0
        %v1261 = vadd.f32 0.0, %v1260
        %1262 = vmatprep.mubr.f32.mxu0 0.0
        %1263 = vmatmul.mubr.f32.gmra.mxu0 %v382
        %v1264 = vpop.f32.mrf.mxu0
        %v1265 = vadd.f32 0.0, %v1264
        %v1266 = vpop.f32.mrf.mxu0
        %v1267 = vadd.f32 0.0, %v1266
        %1268 = vmatprep.mubr.f32.mxu0 0.0
        %1269 = vmatmul.mubr.f32.gmra.mxu0 %v385
        %v1270 = vpop.f32.mrf.mxu0
        %v1271 = vadd.f32 0.0, %v1270
        %v1272 = vpop.f32.mrf.mxu0
        %v1273 = vadd.f32 0.0, %v1272
        %1274 = vmatprep.mubr.f32.mxu0 0.0
        %1275 = vmatmul.mubr.f32.gmra.mxu0 %v388
        %v1276 = vpop.f32.mrf.mxu0
        %v1277 = vadd.f32 0.0, %v1276
        %v1278 = vpop.f32.mrf.mxu0
        %v1279 = vadd.f32 0.0, %v1278
        %1280 = vmatprep.mubr.f32.mxu0 0.0
        %1281 = vmatmul.mubr.f32.gmra.mxu0 %v391
        %v1282 = vpop.f32.mrf.mxu0
        %v1283 = vadd.f32 0.0, %v1282
        %v1284 = vpop.f32.mrf.mxu0
        %v1285 = vadd.f32 0.0, %v1284
        %1286 = vmatprep.mubr.f32.mxu0 0.0
        %1287 = vmatmul.mubr.f32.gmra.mxu0 %v394
        %v1288 = vpop.f32.mrf.mxu0
        %v1289 = vadd.f32 0.0, %v1288
        %v1290 = vpop.f32.mrf.mxu0
        %v1291 = vadd.f32 0.0, %v1290
        %1292 = vmatprep.mubr.f32.mxu0 0.0
        %1293 = vmatmul.mubr.f32.gmra.mxu0 %v397
        %v1294 = vpop.f32.mrf.mxu0
        %v1295 = vadd.f32 0.0, %v1294
        %v1296 = vpop.f32.mrf.mxu0
        %v1297 = vadd.f32 0.0, %v1296
        %1298 = vmatprep.mubr.f32.mxu0 0.0
        %1299 = vmatmul.mubr.f32.gmra.mxu0 %v400
        %v1300 = vpop.f32.mrf.mxu0
        %v1301 = vadd.f32 0.0, %v1300
        %v1302 = vpop.f32.mrf.mxu0
        %v1303 = vadd.f32 0.0, %v1302
        %1304 = vmatprep.mubr.f32.mxu0 0.0
        %1305 = vmatmul.mubr.f32.gmra.mxu0 %v403
        %v1306 = vpop.f32.mrf.mxu0
        %v1307 = vadd.f32 0.0, %v1306
        %v1308 = vpop.f32.mrf.mxu0
        %v1309 = vadd.f32 0.0, %v1308
        %1310 = vmatprep.mubr.f32.mxu0 0.0
        %1311 = vmatmul.mubr.f32.gmra.mxu0 %v406
        %v1312 = vpop.f32.mrf.mxu0
        %v1313 = vadd.f32 0.0, %v1312
        %v1314 = vpop.f32.mrf.mxu0
        %v1315 = vadd.f32 0.0, %v1314
        %1316 = vmatprep.mubr.f32.mxu0 0.0
        %1317 = vmatmul.mubr.f32.gmra.mxu0 %v409
        %v1318 = vpop.f32.mrf.mxu0
        %v1319 = vadd.f32 0.0, %v1318
        %v1320 = vpop.f32.mrf.mxu0
        %v1321 = vadd.f32 0.0, %v1320
        %1322 = vmatprep.mubr.f32.mxu0 0.0
        %1323 = vmatmul.mubr.f32.gmra.mxu0 %v412
        %v1324 = vpop.f32.mrf.mxu0
        %v1325 = vadd.f32 0.0, %v1324
        %v1326 = vpop.f32.mrf.mxu0
        %v1327 = vadd.f32 0.0, %v1326
        %1328 = vmatprep.mubr.f32.mxu0 0.0
        %1329 = vmatmul.mubr.f32.gmra.mxu0 %v415
        %v1330 = vpop.f32.mrf.mxu0
        %v1331 = vadd.f32 0.0, %v1330
        %v1332 = vpop.f32.mrf.mxu0
        %v1333 = vadd.f32 0.0, %v1332
        %1334 = vmatprep.mubr.f32.mxu0 0.0
        %1335 = vmatmul.mubr.f32.gmra.mxu0 %v418
        %v1336 = vpop.f32.mrf.mxu0
        %v1337 = vadd.f32 0.0, %v1336
        %v1338 = vpop.f32.mrf.mxu0
        %v1339 = vadd.f32 0.0, %v1338
        %1340 = vmatprep.mubr.f32.mxu0 0.0
        %1341 = vmatmul.mubr.f32.gmra.mxu0 %v421
        %v1342 = vpop.f32.mrf.mxu0
        %v1343 = vadd.f32 0.0, %v1342
        %v1344 = vpop.f32.mrf.mxu0
        %v1345 = vadd.f32 0.0, %v1344
        %1346 = vmatprep.mubr.f32.mxu0 0.0
        %1347 = vmatmul.mubr.f32.gmra.mxu0 %v424
        %v1348 = vpop.f32.mrf.mxu0
        %v1349 = vadd.f32 0.0, %v1348
        %v1350 = vpop.f32.mrf.mxu0
        %v1351 = vadd.f32 0.0, %v1350
        %1352 = vmatprep.mubr.f32.mxu0 0.0
        %1353 = vmatmul.mubr.f32.gmra.mxu0 %v427
        %v1354 = vpop.f32.mrf.mxu0
        %v1355 = vadd.f32 0.0, %v1354
        %v1356 = vpop.f32.mrf.mxu0
        %v1357 = vadd.f32 0.0, %v1356
        %1358 = vmatprep.mubr.f32.mxu0 0.0
        %1359 = vmatmul.mubr.f32.gmra.mxu0 %v430
        %v1360 = vpop.f32.mrf.mxu0
        %v1361 = vadd.f32 0.0, %v1360
        %v1362 = vpop.f32.mrf.mxu0
        %v1363 = vadd.f32 0.0, %v1362
        %1364 = vmatprep.mubr.f32.mxu0 0.0
        %1365 = vmatmul.mubr.f32.gmra.mxu0 %v433
        %v1366 = vpop.f32.mrf.mxu0
        %v1367 = vadd.f32 0.0, %v1366
        %v1368 = vpop.f32.mrf.mxu0
        %v1369 = vadd.f32 0.0, %v1368
        %1370 = vmatprep.mubr.f32.mxu0 0.0
        %1371 = vmatmul.mubr.f32.gmra.mxu0 %v436
        %v1372 = vpop.f32.mrf.mxu0
        %v1373 = vadd.f32 0.0, %v1372
        %v1374 = vpop.f32.mrf.mxu0
        %v1375 = vadd.f32 0.0, %v1374
        %1376 = vmatprep.mubr.f32.mxu0 0.0
        %1377 = vmatmul.mubr.f32.gmra.mxu0 %v439
        %v1378 = vpop.f32.mrf.mxu0
        %v1379 = vadd.f32 0.0, %v1378
        %v1380 = vpop.f32.mrf.mxu0
        %v1381 = vadd.f32 0.0, %v1380
        %1382 = vmatprep.mubr.f32.mxu0 0.0
        %1383 = vmatmul.mubr.f32.gmra.mxu0 %v442
        %v1384 = vpop.f32.mrf.mxu0
        %v1385 = vadd.f32 0.0, %v1384
        %v1386 = vpop.f32.mrf.mxu0
        %v1387 = vadd.f32 0.0, %v1386
        %1388 = vmatprep.mubr.f32.mxu0 0.0
        %1389 = vmatmul.mubr.f32.gmra.mxu0 %v445
        %v1390 = vpop.f32.mrf.mxu0
        %v1391 = vadd.f32 0.0, %v1390
        %v1392 = vpop.f32.mrf.mxu0
        %v1393 = vadd.f32 0.0, %v1392
        %1394 = vmatprep.mubr.f32.mxu0 0.0
        %1395 = vmatmul.mubr.f32.gmra.mxu0 %v448
        %v1396 = vpop.f32.mrf.mxu0
        %v1397 = vadd.f32 0.0, %v1396
        %v1398 = vpop.f32.mrf.mxu0
        %v1399 = vadd.f32 0.0, %v1398
        %1400 = vmatprep.mubr.f32.mxu0 0.0
        %1401 = vmatmul.mubr.f32.gmra.mxu0 %v451
        %v1402 = vpop.f32.mrf.mxu0
        %v1403 = vadd.f32 0.0, %v1402
        %v1404 = vpop.f32.mrf.mxu0
        %v1405 = vadd.f32 0.0, %v1404
        %1406 = vmatprep.mubr.f32.mxu0 0.0
        %1407 = vmatmul.mubr.f32.gmra.mxu0 %v454
        %v1408 = vpop.f32.mrf.mxu0
        %v1409 = vadd.f32 0.0, %v1408
        %v1410 = vpop.f32.mrf.mxu0
        %v1411 = vadd.f32 0.0, %v1410
        %1412 = vmatprep.mubr.f32.mxu0 0.0
        %1413 = vmatmul.mubr.f32.gmra.mxu0 %v457
        %v1414 = vpop.f32.mrf.mxu0
        %v1415 = vadd.f32 0.0, %v1414
        %v1416 = vpop.f32.mrf.mxu0
        %v1417 = vadd.f32 0.0, %v1416
        %1418 = vmatprep.mubr.f32.mxu0 0.0
        %1419 = vmatmul.mubr.f32.gmra.mxu0 %v460
        %v1420 = vpop.f32.mrf.mxu0
        %v1421 = vadd.f32 0.0, %v1420
        %v1422 = vpop.f32.mrf.mxu0
        %v1423 = vadd.f32 0.0, %v1422
        %1424 = vdwg.mxu0
        %1425 = vmatprep.subr.mxu0 0.0
        %1426 = vmatpush1.msra.mxu0 0.0
        %1427 = vmatprep.subr.mxu0 0.0
        %1428 = vmatpush1.msra.mxu0 0.0
        %1429 = vmatprep.subr.mxu0 0.0
        %1430 = vmatpush1.msra.mxu0 0.0
        %1431 = vmatprep.subr.mxu0 0.0
        %1432 = vmatpush1.msra.mxu0 0.0
        %1433 = vmatprep.subr.mxu0 0.0
        %1434 = vmatpush1.msra.mxu0 0.0
        %1435 = vmatprep.subr.mxu0 0.0
        %1436 = vmatpush1.msra.mxu0 0.0
        %1437 = vmatprep.subr.mxu0 0.0
        %1438 = vmatpush1.msra.mxu0 0.0
        %1439 = vmatprep.subr.mxu0 0.0
        %1440 = vmatpush1.msra.mxu0 0.0
        %1441 = vmatprep.subr.mxu0 0.0
        %1442 = vmatpush1.msra.mxu0 0.0
        %1443 = vmatprep.subr.mxu0 0.0
        %1444 = vmatpush1.msra.mxu0 0.0
        %1445 = vmatprep.subr.mxu0 0.0
        %1446 = vmatpush1.msra.mxu0 0.0
        %1447 = vmatprep.subr.mxu0 0.0
        %1448 = vmatpush1.msra.mxu0 0.0
        %1449 = vmatprep.subr.mxu0 %v491
        %1450 = vmatpush1.msra.mxu0 %v488
        %1451 = vmatprep.subr.mxu0 %v366
        %1452 = vmatpush1.msra.mxu0 %v365
        %1453 = vmatprep.subr.mxu0 %v356
        %1454 = vmatpush1.msra.mxu0 %v355
        %1455 = vmatprep.subr.mxu0 %v346
        %1456 = vmatpush1.msra.mxu0 %v345
        %1457 = vmatprep.subr.mxu0 0.0
        %1458 = vmatpush2.msra.mxu0 0.0
        %1459 = vmatprep.subr.mxu0 0.0
        %1460 = vmatpush2.msra.mxu0 0.0
        %1461 = vmatprep.subr.mxu0 0.0
        %1462 = vmatpush2.msra.mxu0 0.0
        %1463 = vmatprep.subr.mxu0 0.0
        %1464 = vmatpush2.msra.mxu0 0.0
        %1465 = vmatprep.subr.mxu0 0.0
        %1466 = vmatpush2.msra.mxu0 0.0
        %1467 = vmatprep.subr.mxu0 0.0
        %1468 = vmatpush2.msra.mxu0 0.0
        %1469 = vmatprep.subr.mxu0 0.0
        %1470 = vmatpush2.msra.mxu0 0.0
        %1471 = vmatprep.subr.mxu0 0.0
        %1472 = vmatpush2.msra.mxu0 0.0
        %1473 = vmatprep.subr.mxu0 0.0
        %1474 = vmatpush2.msra.mxu0 0.0
        %1475 = vmatprep.subr.mxu0 0.0
        %1476 = vmatpush2.msra.mxu0 0.0
        %1477 = vmatprep.subr.mxu0 0.0
        %1478 = vmatpush2.msra.mxu0 0.0
        %1479 = vmatprep.subr.mxu0 0.0
        %1480 = vmatpush2.msra.mxu0 0.0
        %1481 = vmatprep.subr.mxu0 0.0
        %1482 = vmatpush2.msra.mxu0 0.0
        %1483 = vmatprep.subr.mxu0 0.0
        %1484 = vmatpush2.msra.mxu0 0.0
        %1485 = vmatprep.subr.mxu0 0.0
        %1486 = vmatpush2.msra.mxu0 0.0
        %1487 = vmatprep.subr.mxu0 0.0
        %1488 = vmatpush2.msra.mxu0 0.0
        %1489 = vmatprep.mubr.f32.mxu0 0.0
        %1490 = vmatmul.mubr.f32.gmra.mxu0 %v379
        %v1491 = vpop.f32.mrf.mxu0
        %v1492 = vadd.f32 0.0, %v1491
        %v1493 = vpop.f32.mrf.mxu0
        %v1494 = vadd.f32 0.0, %v1493
        %1495 = vmatprep.mubr.f32.mxu0 0.0
        %1496 = vmatmul.mubr.f32.gmra.mxu0 %v382
        %v1497 = vpop.f32.mrf.mxu0
        %v1498 = vadd.f32 0.0, %v1497
        %v1499 = vpop.f32.mrf.mxu0
        %v1500 = vadd.f32 0.0, %v1499
        %1501 = vmatprep.mubr.f32.mxu0 0.0
        %1502 = vmatmul.mubr.f32.gmra.mxu0 %v385
        %v1503 = vpop.f32.mrf.mxu0
        %v1504 = vadd.f32 0.0, %v1503
        %v1505 = vpop.f32.mrf.mxu0
        %v1506 = vadd.f32 0.0, %v1505
        %1507 = vmatprep.mubr.f32.mxu0 0.0
        %1508 = vmatmul.mubr.f32.gmra.mxu0 %v388
        %v1509 = vpop.f32.mrf.mxu0
        %v1510 = vadd.f32 0.0, %v1509
        %v1511 = vpop.f32.mrf.mxu0
        %v1512 = vadd.f32 0.0, %v1511
        %1513 = vmatprep.mubr.f32.mxu0 0.0
        %1514 = vmatmul.mubr.f32.gmra.mxu0 %v391
        %v1515 = vpop.f32.mrf.mxu0
        %v1516 = vadd.f32 0.0, %v1515
        %v1517 = vpop.f32.mrf.mxu0
        %v1518 = vadd.f32 0.0, %v1517
        %1519 = vmatprep.mubr.f32.mxu0 0.0
        %1520 = vmatmul.mubr.f32.gmra.mxu0 %v394
        %v1521 = vpop.f32.mrf.mxu0
        %v1522 = vadd.f32 0.0, %v1521
        %v1523 = vpop.f32.mrf.mxu0
        %v1524 = vadd.f32 0.0, %v1523
        %1525 = vmatprep.mubr.f32.mxu0 0.0
        %1526 = vmatmul.mubr.f32.gmra.mxu0 %v397
        %v1527 = vpop.f32.mrf.mxu0
        %v1528 = vadd.f32 0.0, %v1527
        %v1529 = vpop.f32.mrf.mxu0
        %v1530 = vadd.f32 0.0, %v1529
        %1531 = vmatprep.mubr.f32.mxu0 0.0
        %1532 = vmatmul.mubr.f32.gmra.mxu0 %v400
        %v1533 = vpop.f32.mrf.mxu0
        %v1534 = vadd.f32 0.0, %v1533
        %v1535 = vpop.f32.mrf.mxu0
        %v1536 = vadd.f32 0.0, %v1535
        %1537 = vmatprep.mubr.f32.mxu0 0.0
        %1538 = vmatmul.mubr.f32.gmra.mxu0 %v403
        %v1539 = vpop.f32.mrf.mxu0
        %v1540 = vadd.f32 0.0, %v1539
        %v1541 = vpop.f32.mrf.mxu0
        %v1542 = vadd.f32 0.0, %v1541
        %1543 = vmatprep.mubr.f32.mxu0 0.0
        %1544 = vmatmul.mubr.f32.gmra.mxu0 %v406
        %v1545 = vpop.f32.mrf.mxu0
        %v1546 = vadd.f32 0.0, %v1545
        %v1547 = vpop.f32.mrf.mxu0
        %v1548 = vadd.f32 0.0, %v1547
        %1549 = vmatprep.mubr.f32.mxu0 0.0
        %1550 = vmatmul.mubr.f32.gmra.mxu0 %v409
        %v1551 = vpop.f32.mrf.mxu0
        %v1552 = vadd.f32 0.0, %v1551
        %v1553 = vpop.f32.mrf.mxu0
        %v1554 = vadd.f32 0.0, %v1553
        %1555 = vmatprep.mubr.f32.mxu0 0.0
        %1556 = vmatmul.mubr.f32.gmra.mxu0 %v412
        %v1557 = vpop.f32.mrf.mxu0
        %v1558 = vadd.f32 0.0, %v1557
        %v1559 = vpop.f32.mrf.mxu0
        %v1560 = vadd.f32 0.0, %v1559
        %1561 = vmatprep.mubr.f32.mxu0 0.0
        %1562 = vmatmul.mubr.f32.gmra.mxu0 %v415
        %v1563 = vpop.f32.mrf.mxu0
        %v1564 = vadd.f32 0.0, %v1563
        %v1565 = vpop.f32.mrf.mxu0
        %v1566 = vadd.f32 0.0, %v1565
        %1567 = vmatprep.mubr.f32.mxu0 0.0
        %1568 = vmatmul.mubr.f32.gmra.mxu0 %v418
        %v1569 = vpop.f32.mrf.mxu0
        %v1570 = vadd.f32 0.0, %v1569
        %v1571 = vpop.f32.mrf.mxu0
        %v1572 = vadd.f32 0.0, %v1571
        %1573 = vmatprep.mubr.f32.mxu0 0.0
        %1574 = vmatmul.mubr.f32.gmra.mxu0 %v421
        %v1575 = vpop.f32.mrf.mxu0
        %v1576 = vadd.f32 0.0, %v1575
        %v1577 = vpop.f32.mrf.mxu0
        %v1578 = vadd.f32 0.0, %v1577
        %1579 = vmatprep.mubr.f32.mxu0 0.0
        %1580 = vmatmul.mubr.f32.gmra.mxu0 %v424
        %v1581 = vpop.f32.mrf.mxu0
        %v1582 = vadd.f32 0.0, %v1581
        %v1583 = vpop.f32.mrf.mxu0
        %v1584 = vadd.f32 0.0, %v1583
        %1585 = vmatprep.mubr.f32.mxu0 0.0
        %1586 = vmatmul.mubr.f32.gmra.mxu0 %v427
        %v1587 = vpop.f32.mrf.mxu0
        %v1588 = vadd.f32 0.0, %v1587
        %v1589 = vpop.f32.mrf.mxu0
        %v1590 = vadd.f32 0.0, %v1589
        %1591 = vmatprep.mubr.f32.mxu0 0.0
        %1592 = vmatmul.mubr.f32.gmra.mxu0 %v430
        %v1593 = vpop.f32.mrf.mxu0
        %v1594 = vadd.f32 0.0, %v1593
        %v1595 = vpop.f32.mrf.mxu0
        %v1596 = vadd.f32 0.0, %v1595
        %1597 = vmatprep.mubr.f32.mxu0 0.0
        %1598 = vmatmul.mubr.f32.gmra.mxu0 %v433
        %v1599 = vpop.f32.mrf.mxu0
        %v1600 = vadd.f32 0.0, %v1599
        %v1601 = vpop.f32.mrf.mxu0
        %v1602 = vadd.f32 0.0, %v1601
        %1603 = vmatprep.mubr.f32.mxu0 0.0
        %1604 = vmatmul.mubr.f32.gmra.mxu0 %v436
        %v1605 = vpop.f32.mrf.mxu0
        %v1606 = vadd.f32 0.0, %v1605
        %v1607 = vpop.f32.mrf.mxu0
        %v1608 = vadd.f32 0.0, %v1607
        %1609 = vmatprep.mubr.f32.mxu0 0.0
        %1610 = vmatmul.mubr.f32.gmra.mxu0 %v439
        %v1611 = vpop.f32.mrf.mxu0
        %v1612 = vadd.f32 0.0, %v1611
        %v1613 = vpop.f32.mrf.mxu0
        %v1614 = vadd.f32 0.0, %v1613
        %1615 = vmatprep.mubr.f32.mxu0 0.0
        %1616 = vmatmul.mubr.f32.gmra.mxu0 %v442
        %v1617 = vpop.f32.mrf.mxu0
        %v1618 = vadd.f32 0.0, %v1617
        %v1619 = vpop.f32.mrf.mxu0
        %v1620 = vadd.f32 0.0, %v1619
        %1621 = vmatprep.mubr.f32.mxu0 0.0
        %1622 = vmatmul.mubr.f32.gmra.mxu0 %v445
        %v1623 = vpop.f32.mrf.mxu0
        %v1624 = vadd.f32 0.0, %v1623
        %v1625 = vpop.f32.mrf.mxu0
        %v1626 = vadd.f32 0.0, %v1625
        %1627 = vmatprep.mubr.f32.mxu0 0.0
        %1628 = vmatmul.mubr.f32.gmra.mxu0 %v448
        %v1629 = vpop.f32.mrf.mxu0
        %v1630 = vadd.f32 0.0, %v1629
        %v1631 = vpop.f32.mrf.mxu0
        %v1632 = vadd.f32 0.0, %v1631
        %1633 = vmatprep.mubr.f32.mxu0 0.0
        %1634 = vmatmul.mubr.f32.gmra.mxu0 %v451
        %v1635 = vpop.f32.mrf.mxu0
        %v1636 = vadd.f32 0.0, %v1635
        %v1637 = vpop.f32.mrf.mxu0
        %v1638 = vadd.f32 0.0, %v1637
        %1639 = vmatprep.mubr.f32.mxu0 0.0
        %1640 = vmatmul.mubr.f32.gmra.mxu0 %v454
        %v1641 = vpop.f32.mrf.mxu0
        %v1642 = vadd.f32 0.0, %v1641
        %v1643 = vpop.f32.mrf.mxu0
        %v1644 = vadd.f32 0.0, %v1643
        %1645 = vmatprep.mubr.f32.mxu0 0.0
        %1646 = vmatmul.mubr.f32.gmra.mxu0 %v457
        %v1647 = vpop.f32.mrf.mxu0
        %v1648 = vadd.f32 0.0, %v1647
        %v1649 = vpop.f32.mrf.mxu0
        %v1650 = vadd.f32 0.0, %v1649
        %1651 = vmatprep.mubr.f32.mxu0 0.0
        %1652 = vmatmul.mubr.f32.gmra.mxu0 %v460
        %v1653 = vpop.f32.mrf.mxu0
        %v1654 = vadd.f32 0.0, %v1653
        %v1655 = vpop.f32.mrf.mxu0
        %v1656 = vadd.f32 0.0, %v1655
        %1657 = vdwg.mxu0
        %v1938 = vcombine.low %v560, %v562
        %v1939 = vcombine.high %v560, %v562
        %v1940 = vcombine.low %v793, %v795
        %v1941 = vcombine.high %v793, %v795
        %v1942 = vcombine.low %v1026, %v1028
        %v1943 = vcombine.high %v1026, %v1028
        %v1944 = vcombine.low %v1259, %v1261
        %v1945 = vcombine.high %v1259, %v1261
        %v1946 = vcombine.high %v1492, %v1494
        %v1947 = vcombine.low %v566, %v568
        %v1948 = vcombine.high %v566, %v568
        %v1949 = vcombine.low %v799, %v801
        %v1950 = vcombine.high %v799, %v801
        %v1951 = vcombine.low %v1032, %v1034
        %v1952 = vcombine.high %v1032, %v1034
        %v1953 = vcombine.low %v1265, %v1267
        %v1954 = vcombine.high %v1265, %v1267
        %v1955 = vcombine.low %v1498, %v1500
        %v1956 = vcombine.high %v1498, %v1500
        %v1957 = vcombine.low %v572, %v574
        %v1958 = vcombine.high %v572, %v574
        %v1959 = vcombine.low %v805, %v807
        %v1960 = vcombine.high %v805, %v807
        %v1961 = vcombine.low %v1038, %v1040
        %v1962 = vcombine.high %v1038, %v1040
        %v1963 = vcombine.low %v1271, %v1273
        %v1964 = vcombine.high %v1271, %v1273
        %v1965 = vcombine.low %v1504, %v1506
        %v1966 = vcombine.high %v1504, %v1506
        %v1967 = vcombine.high %v578, %v580
        %v1968 = vcombine.low %v811, %v813
        %v1969 = vcombine.high %v811, %v813
        %v1970 = vcombine.low %v1044, %v1046
        %v1971 = vcombine.high %v1044, %v1046
        %v1972 = vcombine.low %v1277, %v1279
        %v1973 = vcombine.high %v1277, %v1279
        %v1974 = vcombine.low %v1510, %v1512
        %v1975 = vcombine.low %v584, %v586
        %v1976 = vcombine.high %v584, %v586
        %v1977 = vcombine.low %v817, %v819
        %v1978 = vcombine.high %v817, %v819
        %v1979 = vcombine.low %v1050, %v1052
        %v1980 = vcombine.high %v1050, %v1052
        %v1981 = vcombine.low %v1283, %v1285
        %v1982 = vcombine.high %v1283, %v1285
        %v1983 = vcombine.low %v1516, %v1518
        %v1984 = vcombine.high %v1516, %v1518
        %v1985 = vcombine.low %v590, %v592
        %v1986 = vcombine.high %v590, %v592
        %v1987 = vcombine.low %v823, %v825
        %v1988 = vcombine.high %v823, %v825
        %v1989 = vcombine.low %v1056, %v1058
        %v1990 = vcombine.high %v1056, %v1058
        %v1991 = vcombine.low %v1289, %v1291
        %v1992 = vcombine.high %v1289, %v1291
        %v1993 = vcombine.low %v1522, %v1524
        %v1994 = vcombine.high %v1522, %v1524
        %v1995 = vcombine.low %v596, %v598
        %v1996 = vcombine.low %v829, %v831
        %v1997 = vcombine.high %v829, %v831
        %v1998 = vcombine.low %v1062, %v1064
        %v1999 = vcombine.high %v1062, %v1064
        %v2000 = vcombine.low %v1295, %v1297
        %v2001 = vcombine.high %v1295, %v1297
        %v2002 = vcombine.low %v1528, %v1530
        %v2003 = vcombine.high %v1528, %v1530
        %v2004 = vcombine.low %v602, %v604
        %v2005 = vcombine.high %v602, %v604
        %v2006 = vcombine.low %v835, %v837
        %v2007 = vcombine.high %v835, %v837
        %v2008 = vcombine.low %v1068, %v1070
        %v2009 = vcombine.high %v1068, %v1070
        %v2010 = vcombine.low %v1301, %v1303
        %v2011 = vcombine.high %v1301, %v1303
        %v2012 = vcombine.high %v1534, %v1536
        %v2013 = vcombine.low %v608, %v610
        %v2014 = vcombine.high %v608, %v610
        %v2015 = vcombine.low %v841, %v843
        %v2016 = vcombine.high %v841, %v843
        %v2017 = vcombine.low %v1074, %v1076
        %v2018 = vcombine.high %v1074, %v1076
        %v2019 = vcombine.low %v1307, %v1309
        %v2020 = vcombine.high %v1307, %v1309
        %v2021 = vcombine.low %v1540, %v1542
        %v2022 = vcombine.high %v1540, %v1542
        %v2023 = vcombine.low %v614, %v616
        %v2024 = vcombine.high %v614, %v616
        %v2025 = vcombine.low %v847, %v849
        %v2026 = vcombine.high %v847, %v849
        %v2027 = vcombine.low %v1080, %v1082
        %v2028 = vcombine.high %v1080, %v1082
        %v2029 = vcombine.low %v1313, %v1315
        %v2030 = vcombine.high %v1313, %v1315
        %v2031 = vcombine.low %v1546, %v1548
        %v2032 = vcombine.high %v1546, %v1548
        %v2033 = vcombine.high %v620, %v622
        %v2034 = vcombine.low %v853, %v855
        %v2035 = vcombine.high %v853, %v855
        %v2036 = vcombine.low %v1086, %v1088
        %v2037 = vcombine.high %v1086, %v1088
        %v2038 = vcombine.low %v1319, %v1321
        %v2039 = vcombine.high %v1319, %v1321
        %v2040 = vcombine.low %v1552, %v1554
        %v2041 = vcombine.low %v626, %v628
        %v2042 = vcombine.high %v626, %v628
        %v2043 = vcombine.low %v859, %v861
        %v2044 = vcombine.high %v859, %v861
        %v2045 = vcombine.low %v1092, %v1094
        %v2046 = vcombine.high %v1092, %v1094
        %v2047 = vcombine.low %v1325, %v1327
        %v2048 = vcombine.high %v1325, %v1327
        %v2049 = vcombine.low %v1558, %v1560
        %v2050 = vcombine.high %v1558, %v1560
        %v2051 = vcombine.low %v632, %v634
        %v2052 = vcombine.high %v632, %v634
        %v2053 = vcombine.low %v865, %v867
        %v2054 = vcombine.high %v865, %v867
        %v2055 = vcombine.low %v1098, %v1100
        %v2056 = vcombine.high %v1098, %v1100
        %v2057 = vcombine.low %v1331, %v1333
        %v2058 = vcombine.high %v1331, %v1333
        %v2059 = vcombine.low %v1564, %v1566
        %v2060 = vcombine.high %v1564, %v1566
        %v2061 = vcombine.low %v638, %v640
        %v2062 = vcombine.low %v871, %v873
        %v2063 = vcombine.high %v871, %v873
        %v2064 = vcombine.low %v1104, %v1106
        %v2065 = vcombine.high %v1104, %v1106
        %v2066 = vcombine.low %v1337, %v1339
        %v2067 = vcombine.high %v1337, %v1339
        %v2068 = vcombine.low %v1570, %v1572
        %v2069 = vcombine.high %v1570, %v1572
        %v2070 = vcombine.low %v644, %v646
        %v2071 = vcombine.high %v644, %v646
        %v2072 = vcombine.low %v877, %v879
        %v2073 = vcombine.high %v877, %v879
        %v2074 = vcombine.low %v1110, %v1112
        %v2075 = vcombine.high %v1110, %v1112
        %v2076 = vcombine.low %v1343, %v1345
        %v2077 = vcombine.high %v1343, %v1345
        %v2078 = vcombine.high %v1576, %v1578
        %v2079 = vcombine.low %v650, %v652
        %v2080 = vcombine.high %v650, %v652
        %v2081 = vcombine.low %v883, %v885
        %v2082 = vcombine.high %v883, %v885
        %v2083 = vcombine.low %v1116, %v1118
        %v2084 = vcombine.high %v1116, %v1118
        %v2085 = vcombine.low %v1349, %v1351
        %v2086 = vcombine.high %v1349, %v1351
        %v2087 = vcombine.low %v1582, %v1584
        %v2088 = vcombine.high %v1582, %v1584
        %v2089 = vcombine.low %v656, %v658
        %v2090 = vcombine.high %v656, %v658
        %v2091 = vcombine.low %v889, %v891
        %v2092 = vcombine.high %v889, %v891
        %v2093 = vcombine.low %v1122, %v1124
        %v2094 = vcombine.high %v1122, %v1124
        %v2095 = vcombine.low %v1355, %v1357
        %v2096 = vcombine.high %v1355, %v1357
        %v2097 = vcombine.low %v1588, %v1590
        %v2098 = vcombine.high %v1588, %v1590
        %v2099 = vcombine.high %v662, %v664
        %v2100 = vcombine.low %v895, %v897
        %v2101 = vcombine.high %v895, %v897
        %v2102 = vcombine.low %v1128, %v1130
        %v2103 = vcombine.high %v1128, %v1130
        %v2104 = vcombine.low %v1361, %v1363
        %v2105 = vcombine.high %v1361, %v1363
        %v2106 = vcombine.low %v1594, %v1596
        %v2107 = vcombine.low %v668, %v670
        %v2108 = vcombine.high %v668, %v670
        %v2109 = vcombine.low %v901, %v903
        %v2110 = vcombine.high %v901, %v903
        %v2111 = vcombine.low %v1134, %v1136
        %v2112 = vcombine.high %v1134, %v1136
        %v2113 = vcombine.low %v1367, %v1369
        %v2114 = vcombine.high %v1367, %v1369
        %v2115 = vcombine.low %v1600, %v1602
        %v2116 = vcombine.high %v1600, %v1602
        %v2117 = vcombine.low %v674, %v676
        %v2118 = vcombine.high %v674, %v676
        %v2119 = vcombine.low %v907, %v909
        %v2120 = vcombine.high %v907, %v909
        %v2121 = vcombine.low %v1140, %v1142
        %v2122 = vcombine.high %v1140, %v1142
        %v2123 = vcombine.low %v1373, %v1375
        %v2124 = vcombine.high %v1373, %v1375
        %v2125 = vcombine.low %v1606, %v1608
        %v2126 = vcombine.high %v1606, %v1608
        %v2127 = vcombine.low %v680, %v682
        %v2128 = vcombine.low %v913, %v915
        %v2129 = vcombine.high %v913, %v915
        %v2130 = vcombine.low %v1146, %v1148
        %v2131 = vcombine.high %v1146, %v1148
        %v2132 = vcombine.low %v1379, %v1381
        %v2133 = vcombine.high %v1379, %v1381
        %v2134 = vcombine.low %v1612, %v1614
        %v2135 = vcombine.high %v1612, %v1614
        %v2136 = vcombine.low %v686, %v688
        %v2137 = vcombine.high %v686, %v688
        %v2138 = vcombine.low %v919, %v921
        %v2139 = vcombine.high %v919, %v921
        %v2140 = vcombine.low %v1152, %v1154
        %v2141 = vcombine.high %v1152, %v1154
        %v2142 = vcombine.low %v1385, %v1387
        %v2143 = vcombine.high %v1385, %v1387
        %v2144 = vcombine.high %v1618, %v1620
        %v2145 = vcombine.low %v692, %v694
        %v2146 = vcombine.high %v692, %v694
        %v2147 = vcombine.low %v925, %v927
        %v2148 = vcombine.high %v925, %v927
        %v2149 = vcombine.low %v1158, %v1160
        %v2150 = vcombine.high %v1158, %v1160
        %v2151 = vcombine.low %v1391, %v1393
        %v2152 = vcombine.high %v1391, %v1393
        %v2153 = vcombine.low %v1624, %v1626
        %v2154 = vcombine.high %v1624, %v1626
        %v2155 = vcombine.low %v698, %v700
        %v2156 = vcombine.high %v698, %v700
        %v2157 = vcombine.low %v931, %v933
        %v2158 = vcombine.high %v931, %v933
        %v2159 = vcombine.low %v1164, %v1166
        %v2160 = vcombine.high %v1164, %v1166
        %v2161 = vcombine.low %v1397, %v1399
        %v2162 = vcombine.high %v1397, %v1399
        %v2163 = vcombine.low %v1630, %v1632
        %v2164 = vcombine.high %v1630, %v1632
        %v2165 = vcombine.high %v704, %v706
        %v2166 = vcombine.low %v937, %v939
        %v2167 = vcombine.high %v937, %v939
        %v2168 = vcombine.low %v1170, %v1172
        %v2169 = vcombine.high %v1170, %v1172
        %v2170 = vcombine.low %v1403, %v1405
        %v2171 = vcombine.high %v1403, %v1405
        %v2172 = vcombine.low %v1636, %v1638
        %v2173 = vcombine.low %v710, %v712
        %v2174 = vcombine.high %v710, %v712
        %v2175 = vcombine.low %v943, %v945
        %v2176 = vcombine.high %v943, %v945
        %v2177 = vcombine.low %v1176, %v1178
        %v2178 = vcombine.high %v1176, %v1178
        %v2179 = vcombine.low %v1409, %v1411
        %v2180 = vcombine.high %v1409, %v1411
        %v2181 = vcombine.low %v1642, %v1644
        %v2182 = vcombine.high %v1642, %v1644
        %v2183 = vcombine.low %v716, %v718
        %v2184 = vcombine.high %v716, %v718
        %v2185 = vcombine.low %v949, %v951
        %v2186 = vcombine.high %v949, %v951
        %v2187 = vcombine.low %v1182, %v1184
        %v2188 = vcombine.high %v1182, %v1184
        %v2189 = vcombine.low %v1415, %v1417
        %v2190 = vcombine.high %v1415, %v1417
        %v2191 = vcombine.low %v1648, %v1650
        %v2192 = vcombine.high %v1648, %v1650
        %v2193 = vcombine.low %v722, %v724
        %v2194 = vcombine.low %v955, %v957
        %v2195 = vcombine.high %v955, %v957
        %v2196 = vcombine.low %v1188, %v1190
        %v2197 = vcombine.high %v1188, %v1190
        %v2198 = vcombine.low %v1421, %v1423
        %v2199 = vcombine.high %v1421, %v1423
        %v2200 = vcombine.low %v1654, %v1656
        %v2201 = vcombine.high %v1654, %v1656
        %vm2298 = vcmask 1042432
        %vm2299 = vcmask 1046532
        %vm2300 = vmor %vm2298, %vm2299
        %v2301 = vrot.slane %v1940, 5
        %v2302 = vrot.slane %v2301, 4
        %v2303 = vrot.slane %v1941, 5
        %v2304 = vsel %vm2300, %v2302, %v2303
        %v2305 = vrot.slane %v2303, 4
        %v2306 = vrot.slane %v1949, 5
        %v2307 = vsel %vm2300, %v2305, %v2306
        %v2308 = vrot.slane %v2306, 4
        %v2309 = vrot.slane %v1950, 5
        %v2310 = vsel %vm2300, %v2308, %v2309
        %v2311 = vrot.slane %v2309, 4
        %v2312 = vrot.slane %v1959, 5
        %v2313 = vsel %vm2300, %v2311, %v2312
        %v2314 = vrot.slane %v2312, 4
        %v2315 = vrot.slane %v1960, 5
        %v2316 = vsel %vm2300, %v2314, %v2315
        %v2317 = vrot.slane %v2315, 4
        %v2318 = vrot.slane %v1968, 5
        %v2319 = vsel %vm2300, %v2317, %v2318
        %v2320 = vrot.slane %v1969, 5
        %v2321 = vrot.slane %v2320, 4
        %v2322 = vrot.slane %v1977, 5
        %v2323 = vsel %vm2300, %v2321, %v2322
        %v2324 = vrot.slane %v2322, 4
        %v2325 = vrot.slane %v1978, 5
        %v2326 = vsel %vm2300, %v2324, %v2325
        %v2327 = vrot.slane %v2325, 4
        %v2328 = vrot.slane %v1987, 5
        %v2329 = vsel %vm2300, %v2327, %v2328
        %v2330 = vrot.slane %v2328, 4
        %v2331 = vrot.slane %v1988, 5
        %v2332 = vsel %vm2300, %v2330, %v2331
        %v2333 = vrot.slane %v2331, 4
        %v2334 = vrot.slane %v1996, 5
        %v2335 = vsel %vm2300, %v2333, %v2334
        %v2336 = vrot.slane %v2334, 4
        %v2337 = vrot.slane %v1997, 5
        %v2338 = vsel %vm2300, %v2336, %v2337
        %v2339 = vrot.slane %v2006, 5
        %v2340 = vrot.slane %v2339, 4
        %v2341 = vrot.slane %v2007, 5
        %v2342 = vsel %vm2300, %v2340, %v2341
        %v2343 = vrot.slane %v2341, 4
        %v2344 = vrot.slane %v2015, 5
        %v2345 = vsel %vm2300, %v2343, %v2344
        %v2346 = vrot.slane %v2344, 4
        %v2347 = vrot.slane %v2016, 5
        %v2348 = vsel %vm2300, %v2346, %v2347
        %v2349 = vrot.slane %v2347, 4
        %v2350 = vrot.slane %v2025, 5
        %v2351 = vsel %vm2300, %v2349, %v2350
        %v2352 = vrot.slane %v2350, 4
        %v2353 = vrot.slane %v2026, 5
        %v2354 = vsel %vm2300, %v2352, %v2353
        %v2355 = vrot.slane %v2353, 4
        %v2356 = vrot.slane %v2034, 5
        %v2357 = vsel %vm2300, %v2355, %v2356
        %v2358 = vrot.slane %v2035, 5
        %v2359 = vrot.slane %v2358, 4
        %v2360 = vrot.slane %v2043, 5
        %v2361 = vsel %vm2300, %v2359, %v2360
        %v2362 = vrot.slane %v2360, 4
        %v2363 = vrot.slane %v2044, 5
        %v2364 = vsel %vm2300, %v2362, %v2363
        %v2365 = vrot.slane %v2363, 4
        %v2366 = vrot.slane %v2053, 5
        %v2367 = vsel %vm2300, %v2365, %v2366
        %v2368 = vrot.slane %v2366, 4
        %v2369 = vrot.slane %v2054, 5
        %v2370 = vsel %vm2300, %v2368, %v2369
        %v2371 = vrot.slane %v2369, 4
        %v2372 = vrot.slane %v2062, 5
        %v2373 = vsel %vm2300, %v2371, %v2372
        %v2374 = vrot.slane %v2372, 4
        %v2375 = vrot.slane %v2063, 5
        %v2376 = vsel %vm2300, %v2374, %v2375
        %v2377 = vrot.slane %v2072, 5
        %v2378 = vrot.slane %v2377, 4
        %v2379 = vrot.slane %v2073, 5
        %v2380 = vsel %vm2300, %v2378, %v2379
        %v2381 = vrot.slane %v2379, 4
        %v2382 = vrot.slane %v2081, 5
        %v2383 = vsel %vm2300, %v2381, %v2382
        %v2384 = vrot.slane %v2382, 4
        %v2385 = vrot.slane %v2082, 5
        %v2386 = vsel %vm2300, %v2384, %v2385
        %v2387 = vrot.slane %v2385, 4
        %v2388 = vrot.slane %v2091, 5
        %v2389 = vsel %vm2300, %v2387, %v2388
        %v2390 = vrot.slane %v2388, 4
        %v2391 = vrot.slane %v2092, 5
        %v2392 = vsel %vm2300, %v2390, %v2391
        %v2393 = vrot.slane %v2391, 4
        %v2394 = vrot.slane %v2100, 5
        %v2395 = vsel %vm2300, %v2393, %v2394
        %v2396 = vrot.slane %v2101, 5
        %v2397 = vrot.slane %v2396, 4
        %v2398 = vrot.slane %v2109, 5
        %v2399 = vsel %vm2300, %v2397, %v2398
        %v2400 = vrot.slane %v2398, 4
        %v2401 = vrot.slane %v2110, 5
        %v2402 = vsel %vm2300, %v2400, %v2401
        %v2403 = vrot.slane %v2401, 4
        %v2404 = vrot.slane %v2119, 5
        %v2405 = vsel %vm2300, %v2403, %v2404
        %v2406 = vrot.slane %v2404, 4
        %v2407 = vrot.slane %v2120, 5
        %v2408 = vsel %vm2300, %v2406, %v2407
        %v2409 = vrot.slane %v2407, 4
        %v2410 = vrot.slane %v2128, 5
        %v2411 = vsel %vm2300, %v2409, %v2410
        %v2412 = vrot.slane %v2410, 4
        %v2413 = vrot.slane %v2129, 5
        %v2414 = vsel %vm2300, %v2412, %v2413
        %v2415 = vrot.slane %v2138, 5
        %v2416 = vrot.slane %v2415, 4
        %v2417 = vrot.slane %v2139, 5
        %v2418 = vsel %vm2300, %v2416, %v2417
        %v2419 = vrot.slane %v2417, 4
        %v2420 = vrot.slane %v2147, 5
        %v2421 = vsel %vm2300, %v2419, %v2420
        %v2422 = vrot.slane %v2420, 4
        %v2423 = vrot.slane %v2148, 5
        %v2424 = vsel %vm2300, %v2422, %v2423
        %v2425 = vrot.slane %v2423, 4
        %v2426 = vrot.slane %v2157, 5
        %v2427 = vsel %vm2300, %v2425, %v2426
        %v2428 = vrot.slane %v2426, 4
        %v2429 = vrot.slane %v2158, 5
        %v2430 = vsel %vm2300, %v2428, %v2429
        %v2431 = vrot.slane %v2429, 4
        %v2432 = vrot.slane %v2166, 5
        %v2433 = vsel %vm2300, %v2431, %v2432
        %v2434 = vrot.slane %v2167, 5
        %v2435 = vrot.slane %v2434, 4
        %v2436 = vrot.slane %v2175, 5
        %v2437 = vsel %vm2300, %v2435, %v2436
        %v2438 = vrot.slane %v2436, 4
        %v2439 = vrot.slane %v2176, 5
        %v2440 = vsel %vm2300, %v2438, %v2439
        %v2441 = vrot.slane %v2439, 4
        %v2442 = vrot.slane %v2185, 5
        %v2443 = vsel %vm2300, %v2441, %v2442
        %v2444 = vrot.slane %v2442, 4
        %v2445 = vrot.slane %v2186, 5
        %v2446 = vsel %vm2300, %v2444, %v2445
        %v2447 = vrot.slane %v2445, 4
        %v2448 = vrot.slane %v2194, 5
        %v2449 = vsel %vm2300, %v2447, %v2448
        %v2450 = vrot.slane %v2448, 4
        %v2451 = vrot.slane %v2195, 5
        %v2452 = vsel %vm2300, %v2450, %v2451
        %v2501 = vadd.f32 %v1938, %v2304
        %v2502 = vadd.f32 %v1939, %v2307
        %v2503 = vadd.f32 %v1947, %v2310
        %v2504 = vadd.f32 %v1948, %v2313
        %v2505 = vadd.f32 %v1957, %v2316
        %v2506 = vadd.f32 %v1958, %v2319
        %v2507 = vadd.f32 %v1967, %v2323
        %v2508 = vadd.f32 %v1975, %v2326
        %v2509 = vadd.f32 %v1976, %v2329
        %v2510 = vadd.f32 %v1985, %v2332
        %v2511 = vadd.f32 %v1986, %v2335
        %v2512 = vadd.f32 %v1995, %v2338
        %v2513 = vadd.f32 %v2004, %v2342
        %v2514 = vadd.f32 %v2005, %v2345
        %v2515 = vadd.f32 %v2013, %v2348
        %v2516 = vadd.f32 %v2014, %v2351
        %v2517 = vadd.f32 %v2023, %v2354
        %v2518 = vadd.f32 %v2024, %v2357
        %v2519 = vadd.f32 %v2033, %v2361
        %v2520 = vadd.f32 %v2041, %v2364
        %v2521 = vadd.f32 %v2042, %v2367
        %v2522 = vadd.f32 %v2051, %v2370
        %v2523 = vadd.f32 %v2052, %v2373
        %v2524 = vadd.f32 %v2061, %v2376
        %v2525 = vadd.f32 %v2070, %v2380
        %v2526 = vadd.f32 %v2071, %v2383
        %v2527 = vadd.f32 %v2079, %v2386
        %v2528 = vadd.f32 %v2080, %v2389
        %v2529 = vadd.f32 %v2089, %v2392
        %v2530 = vadd.f32 %v2090, %v2395
        %v2531 = vadd.f32 %v2099, %v2399
        %v2532 = vadd.f32 %v2107, %v2402
        %v2533 = vadd.f32 %v2108, %v2405
        %v2534 = vadd.f32 %v2117, %v2408
        %v2535 = vadd.f32 %v2118, %v2411
        %v2536 = vadd.f32 %v2127, %v2414
        %v2537 = vadd.f32 %v2136, %v2418
        %v2538 = vadd.f32 %v2137, %v2421
        %v2539 = vadd.f32 %v2145, %v2424
        %v2540 = vadd.f32 %v2146, %v2427
        %v2541 = vadd.f32 %v2155, %v2430
        %v2542 = vadd.f32 %v2156, %v2433
        %v2543 = vadd.f32 %v2165, %v2437
        %v2544 = vadd.f32 %v2173, %v2440
        %v2545 = vadd.f32 %v2174, %v2443
        %v2546 = vadd.f32 %v2183, %v2446
        %v2547 = vadd.f32 %v2184, %v2449
        %v2548 = vadd.f32 %v2193, %v2452
        %vm2549 = vcmask 1041408
        %vm2550 = vcmask 1045508
        %vm2551 = vmor %vm2549, %vm2550
        %v2552 = vrot.slane %v1942, 6
        %v2553 = vrot.slane %v2552, 4
        %v2554 = vrot.slane %v1943, 6
        %v2555 = vsel %vm2551, %v2553, %v2554
        %v2556 = vrot.slane %v2554, 4
        %v2557 = vrot.slane %v1951, 6
        %v2558 = vsel %vm2551, %v2556, %v2557
        %v2559 = vrot.slane %v2557, 4
        %v2560 = vrot.slane %v1952, 6
        %v2561 = vsel %vm2551, %v2559, %v2560
        %v2562 = vrot.slane %v2560, 4
        %v2563 = vrot.slane %v1961, 6
        %v2564 = vsel %vm2551, %v2562, %v2563
        %v2565 = vrot.slane %v2563, 4
        %v2566 = vrot.slane %v1962, 6
        %v2567 = vsel %vm2551, %v2565, %v2566
        %v2568 = vrot.slane %v2566, 4
        %v2569 = vrot.slane %v1970, 6
        %v2570 = vsel %vm2551, %v2568, %v2569
        %v2571 = vrot.slane %v1971, 6
        %v2572 = vrot.slane %v2571, 4
        %v2573 = vrot.slane %v1979, 6
        %v2574 = vsel %vm2551, %v2572, %v2573
        %v2575 = vrot.slane %v2573, 4
        %v2576 = vrot.slane %v1980, 6
        %v2577 = vsel %vm2551, %v2575, %v2576
        %v2578 = vrot.slane %v2576, 4
        %v2579 = vrot.slane %v1989, 6
        %v2580 = vsel %vm2551, %v2578, %v2579
        %v2581 = vrot.slane %v2579, 4
        %v2582 = vrot.slane %v1990, 6
        %v2583 = vsel %vm2551, %v2581, %v2582
        %v2584 = vrot.slane %v2582, 4
        %v2585 = vrot.slane %v1998, 6
        %v2586 = vsel %vm2551, %v2584, %v2585
        %v2587 = vrot.slane %v2585, 4
        %v2588 = vrot.slane %v1999, 6
        %v2589 = vsel %vm2551, %v2587, %v2588
        %v2590 = vrot.slane %v2008, 6
        %v2591 = vrot.slane %v2590, 4
        %v2592 = vrot.slane %v2009, 6
        %v2593 = vsel %vm2551, %v2591, %v2592
        %v2594 = vrot.slane %v2592, 4
        %v2595 = vrot.slane %v2017, 6
        %v2596 = vsel %vm2551, %v2594, %v2595
        %v2597 = vrot.slane %v2595, 4
        %v2598 = vrot.slane %v2018, 6
        %v2599 = vsel %vm2551, %v2597, %v2598
        %v2600 = vrot.slane %v2598, 4
        %v2601 = vrot.slane %v2027, 6
        %v2602 = vsel %vm2551, %v2600, %v2601
        %v2603 = vrot.slane %v2601, 4
        %v2604 = vrot.slane %v2028, 6
        %v2605 = vsel %vm2551, %v2603, %v2604
        %v2606 = vrot.slane %v2604, 4
        %v2607 = vrot.slane %v2036, 6
        %v2608 = vsel %vm2551, %v2606, %v2607
        %v2609 = vrot.slane %v2037, 6
        %v2610 = vrot.slane %v2609, 4
        %v2611 = vrot.slane %v2045, 6
        %v2612 = vsel %vm2551, %v2610, %v2611
        %v2613 = vrot.slane %v2611, 4
        %v2614 = vrot.slane %v2046, 6
        %v2615 = vsel %vm2551, %v2613, %v2614
        %v2616 = vrot.slane %v2614, 4
        %v2617 = vrot.slane %v2055, 6
        %v2618 = vsel %vm2551, %v2616, %v2617
        %v2619 = vrot.slane %v2617, 4
        %v2620 = vrot.slane %v2056, 6
        %v2621 = vsel %vm2551, %v2619, %v2620
        %v2622 = vrot.slane %v2620, 4
        %v2623 = vrot.slane %v2064, 6
        %v2624 = vsel %vm2551, %v2622, %v2623
        %v2625 = vrot.slane %v2623, 4
        %v2626 = vrot.slane %v2065, 6
        %v2627 = vsel %vm2551, %v2625, %v2626
        %v2628 = vrot.slane %v2074, 6
        %v2629 = vrot.slane %v2628, 4
        %v2630 = vrot.slane %v2075, 6
        %v2631 = vsel %vm2551, %v2629, %v2630
        %v2632 = vrot.slane %v2630, 4
        %v2633 = vrot.slane %v2083, 6
        %v2634 = vsel %vm2551, %v2632, %v2633
        %v2635 = vrot.slane %v2633, 4
        %v2636 = vrot.slane %v2084, 6
        %v2637 = vsel %vm2551, %v2635, %v2636
        %v2638 = vrot.slane %v2636, 4
        %v2639 = vrot.slane %v2093, 6
        %v2640 = vsel %vm2551, %v2638, %v2639
        %v2641 = vrot.slane %v2639, 4
        %v2642 = vrot.slane %v2094, 6
        %v2643 = vsel %vm2551, %v2641, %v2642
        %v2644 = vrot.slane %v2642, 4
        %v2645 = vrot.slane %v2102, 6
        %v2646 = vsel %vm2551, %v2644, %v2645
        %v2647 = vrot.slane %v2103, 6
        %v2648 = vrot.slane %v2647, 4
        %v2649 = vrot.slane %v2111, 6
        %v2650 = vsel %vm2551, %v2648, %v2649
        %v2651 = vrot.slane %v2649, 4
        %v2652 = vrot.slane %v2112, 6
        %v2653 = vsel %vm2551, %v2651, %v2652
        %v2654 = vrot.slane %v2652, 4
        %v2655 = vrot.slane %v2121, 6
        %v2656 = vsel %vm2551, %v2654, %v2655
        %v2657 = vrot.slane %v2655, 4
        %v2658 = vrot.slane %v2122, 6
        %v2659 = vsel %vm2551, %v2657, %v2658
        %v2660 = vrot.slane %v2658, 4
        %v2661 = vrot.slane %v2130, 6
        %v2662 = vsel %vm2551, %v2660, %v2661
        %v2663 = vrot.slane %v2661, 4
        %v2664 = vrot.slane %v2131, 6
        %v2665 = vsel %vm2551, %v2663, %v2664
        %v2666 = vrot.slane %v2140, 6
        %v2667 = vrot.slane %v2666, 4
        %v2668 = vrot.slane %v2141, 6
        %v2669 = vsel %vm2551, %v2667, %v2668
        %v2670 = vrot.slane %v2668, 4
        %v2671 = vrot.slane %v2149, 6
        %v2672 = vsel %vm2551, %v2670, %v2671
        %v2673 = vrot.slane %v2671, 4
        %v2674 = vrot.slane %v2150, 6
        %v2675 = vsel %vm2551, %v2673, %v2674
        %v2676 = vrot.slane %v2674, 4
        %v2677 = vrot.slane %v2159, 6
        %v2678 = vsel %vm2551, %v2676, %v2677
        %v2679 = vrot.slane %v2677, 4
        %v2680 = vrot.slane %v2160, 6
        %v2681 = vsel %vm2551, %v2679, %v2680
        %v2682 = vrot.slane %v2680, 4
        %v2683 = vrot.slane %v2168, 6
        %v2684 = vsel %vm2551, %v2682, %v2683
        %v2685 = vrot.slane %v2169, 6
        %v2686 = vrot.slane %v2685, 4
        %v2687 = vrot.slane %v2177, 6
        %v2688 = vsel %vm2551, %v2686, %v2687
        %v2689 = vrot.slane %v2687, 4
        %v2690 = vrot.slane %v2178, 6
        %v2691 = vsel %vm2551, %v2689, %v2690
        %v2692 = vrot.slane %v2690, 4
        %v2693 = vrot.slane %v2187, 6
        %v2694 = vsel %vm2551, %v2692, %v2693
        %v2695 = vrot.slane %v2693, 4
        %v2696 = vrot.slane %v2188, 6
        %v2697 = vsel %vm2551, %v2695, %v2696
        %v2698 = vrot.slane %v2696, 4
        %v2699 = vrot.slane %v2196, 6
        %v2700 = vsel %vm2551, %v2698, %v2699
        %v2701 = vrot.slane %v2699, 4
        %v2702 = vrot.slane %v2197, 6
        %v2703 = vsel %vm2551, %v2701, %v2702
        %v2752 = vadd.f32 %v2501, %v2555
        %v2753 = vadd.f32 %v2502, %v2558
        %v2754 = vadd.f32 %v2503, %v2561
        %v2755 = vadd.f32 %v2504, %v2564
        %v2756 = vadd.f32 %v2505, %v2567
        %v2757 = vadd.f32 %v2506, %v2570
        %v2758 = vadd.f32 %v2507, %v2574
        %v2759 = vadd.f32 %v2508, %v2577
        %v2760 = vadd.f32 %v2509, %v2580
        %v2761 = vadd.f32 %v2510, %v2583
        %v2762 = vadd.f32 %v2511, %v2586
        %v2763 = vadd.f32 %v2512, %v2589
        %v2764 = vadd.f32 %v2513, %v2593
        %v2765 = vadd.f32 %v2514, %v2596
        %v2766 = vadd.f32 %v2515, %v2599
        %v2767 = vadd.f32 %v2516, %v2602
        %v2768 = vadd.f32 %v2517, %v2605
        %v2769 = vadd.f32 %v2518, %v2608
        %v2770 = vadd.f32 %v2519, %v2612
        %v2771 = vadd.f32 %v2520, %v2615
        %v2772 = vadd.f32 %v2521, %v2618
        %v2773 = vadd.f32 %v2522, %v2621
        %v2774 = vadd.f32 %v2523, %v2624
        %v2775 = vadd.f32 %v2524, %v2627
        %v2776 = vadd.f32 %v2525, %v2631
        %v2777 = vadd.f32 %v2526, %v2634
        %v2778 = vadd.f32 %v2527, %v2637
        %v2779 = vadd.f32 %v2528, %v2640
        %v2780 = vadd.f32 %v2529, %v2643
        %v2781 = vadd.f32 %v2530, %v2646
        %v2782 = vadd.f32 %v2531, %v2650
        %v2783 = vadd.f32 %v2532, %v2653
        %v2784 = vadd.f32 %v2533, %v2656
        %v2785 = vadd.f32 %v2534, %v2659
        %v2786 = vadd.f32 %v2535, %v2662
        %v2787 = vadd.f32 %v2536, %v2665
        %v2788 = vadd.f32 %v2537, %v2669
        %v2789 = vadd.f32 %v2538, %v2672
        %v2790 = vadd.f32 %v2539, %v2675
        %v2791 = vadd.f32 %v2540, %v2678
        %v2792 = vadd.f32 %v2541, %v2681
        %v2793 = vadd.f32 %v2542, %v2684
        %v2794 = vadd.f32 %v2543, %v2688
        %v2795 = vadd.f32 %v2544, %v2691
        %v2796 = vadd.f32 %v2545, %v2694
        %v2797 = vadd.f32 %v2546, %v2697
        %v2798 = vadd.f32 %v2547, %v2700
        %v2799 = vadd.f32 %v2548, %v2703
        %vm2800 = vcmask 1040384
        %vm2801 = vcmask 1044484
        %vm2802 = vmor %vm2800, %vm2801
        %v2803 = vrot.slane %v1944, 7
        %v2804 = vrot.slane %v2803, 4
        %v2805 = vrot.slane %v1945, 7
        %v2806 = vsel %vm2802, %v2804, %v2805
        %v2807 = vrot.slane %v2805, 4
        %v2808 = vrot.slane %v1953, 7
        %v2809 = vsel %vm2802, %v2807, %v2808
        %v2810 = vrot.slane %v2808, 4
        %v2811 = vrot.slane %v1954, 7
        %v2812 = vsel %vm2802, %v2810, %v2811
        %v2813 = vrot.slane %v2811, 4
        %v2814 = vrot.slane %v1963, 7
        %v2815 = vsel %vm2802, %v2813, %v2814
        %v2816 = vrot.slane %v2814, 4
        %v2817 = vrot.slane %v1964, 7
        %v2818 = vsel %vm2802, %v2816, %v2817
        %v2819 = vrot.slane %v2817, 4
        %v2820 = vrot.slane %v1972, 7
        %v2821 = vsel %vm2802, %v2819, %v2820
        %v2822 = vrot.slane %v1973, 7
        %v2823 = vrot.slane %v2822, 4
        %v2824 = vrot.slane %v1981, 7
        %v2825 = vsel %vm2802, %v2823, %v2824
        %v2826 = vrot.slane %v2824, 4
        %v2827 = vrot.slane %v1982, 7
        %v2828 = vsel %vm2802, %v2826, %v2827
        %v2829 = vrot.slane %v2827, 4
        %v2830 = vrot.slane %v1991, 7
        %v2831 = vsel %vm2802, %v2829, %v2830
        %v2832 = vrot.slane %v2830, 4
        %v2833 = vrot.slane %v1992, 7
        %v2834 = vsel %vm2802, %v2832, %v2833
        %v2835 = vrot.slane %v2833, 4
        %v2836 = vrot.slane %v2000, 7
        %v2837 = vsel %vm2802, %v2835, %v2836
        %v2838 = vrot.slane %v2836, 4
        %v2839 = vrot.slane %v2001, 7
        %v2840 = vsel %vm2802, %v2838, %v2839
        %v2841 = vrot.slane %v2010, 7
        %v2842 = vrot.slane %v2841, 4
        %v2843 = vrot.slane %v2011, 7
        %v2844 = vsel %vm2802, %v2842, %v2843
        %v2845 = vrot.slane %v2843, 4
        %v2846 = vrot.slane %v2019, 7
        %v2847 = vsel %vm2802, %v2845, %v2846
        %v2848 = vrot.slane %v2846, 4
        %v2849 = vrot.slane %v2020, 7
        %v2850 = vsel %vm2802, %v2848, %v2849
        %v2851 = vrot.slane %v2849, 4
        %v2852 = vrot.slane %v2029, 7
        %v2853 = vsel %vm2802, %v2851, %v2852
        %v2854 = vrot.slane %v2852, 4
        %v2855 = vrot.slane %v2030, 7
        %v2856 = vsel %vm2802, %v2854, %v2855
        %v2857 = vrot.slane %v2855, 4
        %v2858 = vrot.slane %v2038, 7
        %v2859 = vsel %vm2802, %v2857, %v2858
        %v2860 = vrot.slane %v2039, 7
        %v2861 = vrot.slane %v2860, 4
        %v2862 = vrot.slane %v2047, 7
        %v2863 = vsel %vm2802, %v2861, %v2862
        %v2864 = vrot.slane %v2862, 4
        %v2865 = vrot.slane %v2048, 7
        %v2866 = vsel %vm2802, %v2864, %v2865
        %v2867 = vrot.slane %v2865, 4
        %v2868 = vrot.slane %v2057, 7
        %v2869 = vsel %vm2802, %v2867, %v2868
        %v2870 = vrot.slane %v2868, 4
        %v2871 = vrot.slane %v2058, 7
        %v2872 = vsel %vm2802, %v2870, %v2871
        %v2873 = vrot.slane %v2871, 4
        %v2874 = vrot.slane %v2066, 7
        %v2875 = vsel %vm2802, %v2873, %v2874
        %v2876 = vrot.slane %v2874, 4
        %v2877 = vrot.slane %v2067, 7
        %v2878 = vsel %vm2802, %v2876, %v2877
        %v2879 = vrot.slane %v2076, 7
        %v2880 = vrot.slane %v2879, 4
        %v2881 = vrot.slane %v2077, 7
        %v2882 = vsel %vm2802, %v2880, %v2881
        %v2883 = vrot.slane %v2881, 4
        %v2884 = vrot.slane %v2085, 7
        %v2885 = vsel %vm2802, %v2883, %v2884
        %v2886 = vrot.slane %v2884, 4
        %v2887 = vrot.slane %v2086, 7
        %v2888 = vsel %vm2802, %v2886, %v2887
        %v2889 = vrot.slane %v2887, 4
        %v2890 = vrot.slane %v2095, 7
        %v2891 = vsel %vm2802, %v2889, %v2890
        %v2892 = vrot.slane %v2890, 4
        %v2893 = vrot.slane %v2096, 7
        %v2894 = vsel %vm2802, %v2892, %v2893
        %v2895 = vrot.slane %v2893, 4
        %v2896 = vrot.slane %v2104, 7
        %v2897 = vsel %vm2802, %v2895, %v2896
        %v2898 = vrot.slane %v2105, 7
        %v2899 = vrot.slane %v2898, 4
        %v2900 = vrot.slane %v2113, 7
        %v2901 = vsel %vm2802, %v2899, %v2900
        %v2902 = vrot.slane %v2900, 4
        %v2903 = vrot.slane %v2114, 7
        %v2904 = vsel %vm2802, %v2902, %v2903
        %v2905 = vrot.slane %v2903, 4
        %v2906 = vrot.slane %v2123, 7
        %v2907 = vsel %vm2802, %v2905, %v2906
        %v2908 = vrot.slane %v2906, 4
        %v2909 = vrot.slane %v2124, 7
        %v2910 = vsel %vm2802, %v2908, %v2909
        %v2911 = vrot.slane %v2909, 4
        %v2912 = vrot.slane %v2132, 7
        %v2913 = vsel %vm2802, %v2911, %v2912
        %v2914 = vrot.slane %v2912, 4
        %v2915 = vrot.slane %v2133, 7
        %v2916 = vsel %vm2802, %v2914, %v2915
        %v2917 = vrot.slane %v2142, 7
        %v2918 = vrot.slane %v2917, 4
        %v2919 = vrot.slane %v2143, 7
        %v2920 = vsel %vm2802, %v2918, %v2919
        %v2921 = vrot.slane %v2919, 4
        %v2922 = vrot.slane %v2151, 7
        %v2923 = vsel %vm2802, %v2921, %v2922
        %v2924 = vrot.slane %v2922, 4
        %v2925 = vrot.slane %v2152, 7
        %v2926 = vsel %vm2802, %v2924, %v2925
        %v2927 = vrot.slane %v2925, 4
        %v2928 = vrot.slane %v2161, 7
        %v2929 = vsel %vm2802, %v2927, %v2928
        %v2930 = vrot.slane %v2928, 4
        %v2931 = vrot.slane %v2162, 7
        %v2932 = vsel %vm2802, %v2930, %v2931
        %v2933 = vrot.slane %v2931, 4
        %v2934 = vrot.slane %v2170, 7
        %v2935 = vsel %vm2802, %v2933, %v2934
        %v2936 = vrot.slane %v2171, 7
        %v2937 = vrot.slane %v2936, 4
        %v2938 = vrot.slane %v2179, 7
        %v2939 = vsel %vm2802, %v2937, %v2938
        %v2940 = vrot.slane %v2938, 4
        %v2941 = vrot.slane %v2180, 7
        %v2942 = vsel %vm2802, %v2940, %v2941
        %v2943 = vrot.slane %v2941, 4
        %v2944 = vrot.slane %v2189, 7
        %v2945 = vsel %vm2802, %v2943, %v2944
        %v2946 = vrot.slane %v2944, 4
        %v2947 = vrot.slane %v2190, 7
        %v2948 = vsel %vm2802, %v2946, %v2947
        %v2949 = vrot.slane %v2947, 4
        %v2950 = vrot.slane %v2198, 7
        %v2951 = vsel %vm2802, %v2949, %v2950
        %v2952 = vrot.slane %v2950, 4
        %v2953 = vrot.slane %v2199, 7
        %v2954 = vsel %vm2802, %v2952, %v2953
        %v3003 = vadd.f32 %v2752, %v2806
        %v3004 = vadd.f32 %v2753, %v2809
        %v3005 = vadd.f32 %v2754, %v2812
        %v3006 = vadd.f32 %v2755, %v2815
        %v3007 = vadd.f32 %v2756, %v2818
        %v3008 = vadd.f32 %v2757, %v2821
        %v3009 = vadd.f32 %v2758, %v2825
        %v3010 = vadd.f32 %v2759, %v2828
        %v3011 = vadd.f32 %v2760, %v2831
        %v3012 = vadd.f32 %v2761, %v2834
        %v3013 = vadd.f32 %v2762, %v2837
        %v3014 = vadd.f32 %v2763, %v2840
        %v3015 = vadd.f32 %v2764, %v2844
        %v3016 = vadd.f32 %v2765, %v2847
        %v3017 = vadd.f32 %v2766, %v2850
        %v3018 = vadd.f32 %v2767, %v2853
        %v3019 = vadd.f32 %v2768, %v2856
        %v3020 = vadd.f32 %v2769, %v2859
        %v3021 = vadd.f32 %v2770, %v2863
        %v3022 = vadd.f32 %v2771, %v2866
        %v3023 = vadd.f32 %v2772, %v2869
        %v3024 = vadd.f32 %v2773, %v2872
        %v3025 = vadd.f32 %v2774, %v2875
        %v3026 = vadd.f32 %v2775, %v2878
        %v3027 = vadd.f32 %v2776, %v2882
        %v3028 = vadd.f32 %v2777, %v2885
        %v3029 = vadd.f32 %v2778, %v2888
        %v3030 = vadd.f32 %v2779, %v2891
        %v3031 = vadd.f32 %v2780, %v2894
        %v3032 = vadd.f32 %v2781, %v2897
        %v3033 = vadd.f32 %v2782, %v2901
        %v3034 = vadd.f32 %v2783, %v2904
        %v3035 = vadd.f32 %v2784, %v2907
        %v3036 = vadd.f32 %v2785, %v2910
        %v3037 = vadd.f32 %v2786, %v2913
        %v3038 = vadd.f32 %v2787, %v2916
        %v3039 = vadd.f32 %v2788, %v2920
        %v3040 = vadd.f32 %v2789, %v2923
        %v3041 = vadd.f32 %v2790, %v2926
        %v3042 = vadd.f32 %v2791, %v2929
        %v3043 = vadd.f32 %v2792, %v2932
        %v3044 = vadd.f32 %v2793, %v2935
        %v3045 = vadd.f32 %v2794, %v2939
        %v3046 = vadd.f32 %v2795, %v2942
        %v3047 = vadd.f32 %v2796, %v2945
        %v3048 = vadd.f32 %v2797, %v2948
        %v3049 = vadd.f32 %v2798, %v2951
        %v3050 = vadd.f32 %v2799, %v2954
        %v3051 = vadd.f32 %v3003, %v1946
        %v3052 = vadd.f32 %v3004, %v1955
        %v3053 = vadd.f32 %v3005, %v1956
        %v3054 = vadd.f32 %v3006, %v1965
        %v3055 = vadd.f32 %v3007, %v1966
        %v3056 = vadd.f32 %v3008, %v1974
        %v3057 = vadd.f32 %v3009, %v1983
        %v3058 = vadd.f32 %v3010, %v1984
        %v3059 = vadd.f32 %v3011, %v1993
        %v3060 = vadd.f32 %v3012, %v1994
        %v3061 = vadd.f32 %v3013, %v2002
        %v3062 = vadd.f32 %v3014, %v2003
        %v3063 = vadd.f32 %v3015, %v2012
        %v3064 = vadd.f32 %v3016, %v2021
        %v3065 = vadd.f32 %v3017, %v2022
        %v3066 = vadd.f32 %v3018, %v2031
        %v3067 = vadd.f32 %v3019, %v2032
        %v3068 = vadd.f32 %v3020, %v2040
        %v3069 = vadd.f32 %v3021, %v2049
        %v3070 = vadd.f32 %v3022, %v2050
        %v3071 = vadd.f32 %v3023, %v2059
        %v3072 = vadd.f32 %v3024, %v2060
        %v3073 = vadd.f32 %v3025, %v2068
        %v3074 = vadd.f32 %v3026, %v2069
        %v3075 = vadd.f32 %v3027, %v2078
        %v3076 = vadd.f32 %v3028, %v2087
        %v3077 = vadd.f32 %v3029, %v2088
        %v3078 = vadd.f32 %v3030, %v2097
        %v3079 = vadd.f32 %v3031, %v2098
        %v3080 = vadd.f32 %v3032, %v2106
        %v3081 = vadd.f32 %v3033, %v2115
        %v3082 = vadd.f32 %v3034, %v2116
        %v3083 = vadd.f32 %v3035, %v2125
        %v3084 = vadd.f32 %v3036, %v2126
        %v3085 = vadd.f32 %v3037, %v2134
        %v3086 = vadd.f32 %v3038, %v2135
        %v3087 = vadd.f32 %v3039, %v2144
        %v3088 = vadd.f32 %v3040, %v2153
        %v3089 = vadd.f32 %v3041, %v2154
        %v3090 = vadd.f32 %v3042, %v2163
        %v3091 = vadd.f32 %v3043, %v2164
        %v3092 = vadd.f32 %v3044, %v2172
        %v3093 = vadd.f32 %v3045, %v2181
        %v3094 = vadd.f32 %v3046, %v2182
        %v3095 = vadd.f32 %v3047, %v2191
        %v3096 = vadd.f32 %v3048, %v2192
        %v3097 = vadd.f32 %v3049, %v2200
        %v3098 = vadd.f32 %v3050, %v2201
        %v3100 = vunpack.c.l.s4 1966171168
        %v3101 = vunpack.c.0.s8 %v3100
        %v3102 = vlaneseq
        %v3103 = vshrl.u32 %v3102, 7
        %v3104 = vsub.s32 %v3101, %v3103
        %v3105 = vrot.slane %v3051, %v3104
        %v3107 = vunpack.c.l.s4 1966171168
        %v3108 = vunpack.c.0.s8 %v3107
        %v3109 = vlaneseq
        %v3110 = vshrl.u32 %v3109, 7
        %v3111 = vsub.s32 %v3108, %v3110
        %v3112 = vrot.slane %v3052, %v3111
        %v3114 = vunpack.c.l.s4 1966171168
        %v3115 = vunpack.c.0.s8 %v3114
        %v3116 = vlaneseq
        %v3117 = vshrl.u32 %v3116, 7
        %v3118 = vsub.s32 %v3115, %v3117
        %v3119 = vrot.slane %v3053, %v3118
        %v3121 = vunpack.c.l.s4 1966171168
        %v3122 = vunpack.c.0.s8 %v3121
        %v3123 = vlaneseq
        %v3124 = vshrl.u32 %v3123, 7
        %v3125 = vsub.s32 %v3122, %v3124
        %v3126 = vrot.slane %v3054, %v3125
        %v3128 = vunpack.c.l.s4 1966171168
        %v3129 = vunpack.c.0.s8 %v3128
        %v3130 = vlaneseq
        %v3131 = vshrl.u32 %v3130, 7
        %v3132 = vsub.s32 %v3129, %v3131
        %v3133 = vrot.slane %v3055, %v3132
        %v3135 = vunpack.c.l.s4 1966171168
        %v3136 = vunpack.c.0.s8 %v3135
        %v3137 = vlaneseq
        %v3138 = vshrl.u32 %v3137, 7
        %v3139 = vsub.s32 %v3136, %v3138
        %v3140 = vrot.slane %v3056, %v3139
        %v3142 = vunpack.c.l.s4 1966171168
        %v3143 = vunpack.c.0.s8 %v3142
        %v3144 = vlaneseq
        %v3145 = vshrl.u32 %v3144, 7
        %v3146 = vsub.s32 %v3143, %v3145
        %v3147 = vrot.slane %v3057, %v3146
        %v3149 = vunpack.c.l.s4 1966171168
        %v3150 = vunpack.c.0.s8 %v3149
        %v3151 = vlaneseq
        %v3152 = vshrl.u32 %v3151, 7
        %v3153 = vsub.s32 %v3150, %v3152
        %v3154 = vrot.slane %v3058, %v3153
        %v3156 = vunpack.c.l.s4 1966171168
        %v3157 = vunpack.c.0.s8 %v3156
        %v3158 = vlaneseq
        %v3159 = vshrl.u32 %v3158, 7
        %v3160 = vsub.s32 %v3157, %v3159
        %v3161 = vrot.slane %v3059, %v3160
        %v3163 = vunpack.c.l.s4 1966171168
        %v3164 = vunpack.c.0.s8 %v3163
        %v3165 = vlaneseq
        %v3166 = vshrl.u32 %v3165, 7
        %v3167 = vsub.s32 %v3164, %v3166
        %v3168 = vrot.slane %v3060, %v3167
        %v3170 = vunpack.c.l.s4 1966171168
        %v3171 = vunpack.c.0.s8 %v3170
        %v3172 = vlaneseq
        %v3173 = vshrl.u32 %v3172, 7
        %v3174 = vsub.s32 %v3171, %v3173
        %v3175 = vrot.slane %v3061, %v3174
        %v3177 = vunpack.c.l.s4 1966171168
        %v3178 = vunpack.c.0.s8 %v3177
        %v3179 = vlaneseq
        %v3180 = vshrl.u32 %v3179, 7
        %v3181 = vsub.s32 %v3178, %v3180
        %v3182 = vrot.slane %v3062, %v3181
        %v3184 = vunpack.c.l.s4 1966171168
        %v3185 = vunpack.c.0.s8 %v3184
        %v3186 = vlaneseq
        %v3187 = vshrl.u32 %v3186, 7
        %v3188 = vsub.s32 %v3185, %v3187
        %v3189 = vrot.slane %v3063, %v3188
        %v3191 = vunpack.c.l.s4 1966171168
        %v3192 = vunpack.c.0.s8 %v3191
        %v3193 = vlaneseq
        %v3194 = vshrl.u32 %v3193, 7
        %v3195 = vsub.s32 %v3192, %v3194
        %v3196 = vrot.slane %v3064, %v3195
        %v3198 = vunpack.c.l.s4 1966171168
        %v3199 = vunpack.c.0.s8 %v3198
        %v3200 = vlaneseq
        %v3201 = vshrl.u32 %v3200, 7
        %v3202 = vsub.s32 %v3199, %v3201
        %v3203 = vrot.slane %v3065, %v3202
        %v3205 = vunpack.c.l.s4 1966171168
        %v3206 = vunpack.c.0.s8 %v3205
        %v3207 = vlaneseq
        %v3208 = vshrl.u32 %v3207, 7
        %v3209 = vsub.s32 %v3206, %v3208
        %v3210 = vrot.slane %v3066, %v3209
        %v3212 = vunpack.c.l.s4 1966171168
        %v3213 = vunpack.c.0.s8 %v3212
        %v3214 = vlaneseq
        %v3215 = vshrl.u32 %v3214, 7
        %v3216 = vsub.s32 %v3213, %v3215
        %v3217 = vrot.slane %v3067, %v3216
        %v3219 = vunpack.c.l.s4 1966171168
        %v3220 = vunpack.c.0.s8 %v3219
        %v3221 = vlaneseq
        %v3222 = vshrl.u32 %v3221, 7
        %v3223 = vsub.s32 %v3220, %v3222
        %v3224 = vrot.slane %v3068, %v3223
        %v3226 = vunpack.c.l.s4 1966171168
        %v3227 = vunpack.c.0.s8 %v3226
        %v3228 = vlaneseq
        %v3229 = vshrl.u32 %v3228, 7
        %v3230 = vsub.s32 %v3227, %v3229
        %v3231 = vrot.slane %v3069, %v3230
        %v3233 = vunpack.c.l.s4 1966171168
        %v3234 = vunpack.c.0.s8 %v3233
        %v3235 = vlaneseq
        %v3236 = vshrl.u32 %v3235, 7
        %v3237 = vsub.s32 %v3234, %v3236
        %v3238 = vrot.slane %v3070, %v3237
        %v3240 = vunpack.c.l.s4 1966171168
        %v3241 = vunpack.c.0.s8 %v3240
        %v3242 = vlaneseq
        %v3243 = vshrl.u32 %v3242, 7
        %v3244 = vsub.s32 %v3241, %v3243
        %v3245 = vrot.slane %v3071, %v3244
        %v3247 = vunpack.c.l.s4 1966171168
        %v3248 = vunpack.c.0.s8 %v3247
        %v3249 = vlaneseq
        %v3250 = vshrl.u32 %v3249, 7
        %v3251 = vsub.s32 %v3248, %v3250
        %v3252 = vrot.slane %v3072, %v3251
        %v3254 = vunpack.c.l.s4 1966171168
        %v3255 = vunpack.c.0.s8 %v3254
        %v3256 = vlaneseq
        %v3257 = vshrl.u32 %v3256, 7
        %v3258 = vsub.s32 %v3255, %v3257
        %v3259 = vrot.slane %v3073, %v3258
        %v3261 = vunpack.c.l.s4 1966171168
        %v3262 = vunpack.c.0.s8 %v3261
        %v3263 = vlaneseq
        %v3264 = vshrl.u32 %v3263, 7
        %v3265 = vsub.s32 %v3262, %v3264
        %v3266 = vrot.slane %v3074, %v3265
        %v3268 = vunpack.c.l.s4 1966171168
        %v3269 = vunpack.c.0.s8 %v3268
        %v3270 = vlaneseq
        %v3271 = vshrl.u32 %v3270, 7
        %v3272 = vsub.s32 %v3269, %v3271
        %v3273 = vrot.slane %v3075, %v3272
        %v3275 = vunpack.c.l.s4 1966171168
        %v3276 = vunpack.c.0.s8 %v3275
        %v3277 = vlaneseq
        %v3278 = vshrl.u32 %v3277, 7
        %v3279 = vsub.s32 %v3276, %v3278
        %v3280 = vrot.slane %v3076, %v3279
        %v3282 = vunpack.c.l.s4 1966171168
        %v3283 = vunpack.c.0.s8 %v3282
        %v3284 = vlaneseq
        %v3285 = vshrl.u32 %v3284, 7
        %v3286 = vsub.s32 %v3283, %v3285
        %v3287 = vrot.slane %v3077, %v3286
        %v3289 = vunpack.c.l.s4 1966171168
        %v3290 = vunpack.c.0.s8 %v3289
        %v3291 = vlaneseq
        %v3292 = vshrl.u32 %v3291, 7
        %v3293 = vsub.s32 %v3290, %v3292
        %v3294 = vrot.slane %v3078, %v3293
        %v3296 = vunpack.c.l.s4 1966171168
        %v3297 = vunpack.c.0.s8 %v3296
        %v3298 = vlaneseq
        %v3299 = vshrl.u32 %v3298, 7
        %v3300 = vsub.s32 %v3297, %v3299
        %v3301 = vrot.slane %v3079, %v3300
        %v3303 = vunpack.c.l.s4 1966171168
        %v3304 = vunpack.c.0.s8 %v3303
        %v3305 = vlaneseq
        %v3306 = vshrl.u32 %v3305, 7
        %v3307 = vsub.s32 %v3304, %v3306
        %v3308 = vrot.slane %v3080, %v3307
        %v3310 = vunpack.c.l.s4 1966171168
        %v3311 = vunpack.c.0.s8 %v3310
        %v3312 = vlaneseq
        %v3313 = vshrl.u32 %v3312, 7
        %v3314 = vsub.s32 %v3311, %v3313
        %v3315 = vrot.slane %v3081, %v3314
        %v3317 = vunpack.c.l.s4 1966171168
        %v3318 = vunpack.c.0.s8 %v3317
        %v3319 = vlaneseq
        %v3320 = vshrl.u32 %v3319, 7
        %v3321 = vsub.s32 %v3318, %v3320
        %v3322 = vrot.slane %v3082, %v3321
        %v3324 = vunpack.c.l.s4 1966171168
        %v3325 = vunpack.c.0.s8 %v3324
        %v3326 = vlaneseq
        %v3327 = vshrl.u32 %v3326, 7
        %v3328 = vsub.s32 %v3325, %v3327
        %v3329 = vrot.slane %v3083, %v3328
        %v3331 = vunpack.c.l.s4 1966171168
        %v3332 = vunpack.c.0.s8 %v3331
        %v3333 = vlaneseq
        %v3334 = vshrl.u32 %v3333, 7
        %v3335 = vsub.s32 %v3332, %v3334
        %v3336 = vrot.slane %v3084, %v3335
        %v3338 = vunpack.c.l.s4 1966171168
        %v3339 = vunpack.c.0.s8 %v3338
        %v3340 = vlaneseq
        %v3341 = vshrl.u32 %v3340, 7
        %v3342 = vsub.s32 %v3339, %v3341
        %v3343 = vrot.slane %v3085, %v3342
        %v3345 = vunpack.c.l.s4 1966171168
        %v3346 = vunpack.c.0.s8 %v3345
        %v3347 = vlaneseq
        %v3348 = vshrl.u32 %v3347, 7
        %v3349 = vsub.s32 %v3346, %v3348
        %v3350 = vrot.slane %v3086, %v3349
        %v3352 = vunpack.c.l.s4 1966171168
        %v3353 = vunpack.c.0.s8 %v3352
        %v3354 = vlaneseq
        %v3355 = vshrl.u32 %v3354, 7
        %v3356 = vsub.s32 %v3353, %v3355
        %v3357 = vrot.slane %v3087, %v3356
        %v3359 = vunpack.c.l.s4 1966171168
        %v3360 = vunpack.c.0.s8 %v3359
        %v3361 = vlaneseq
        %v3362 = vshrl.u32 %v3361, 7
        %v3363 = vsub.s32 %v3360, %v3362
        %v3364 = vrot.slane %v3088, %v3363
        %v3366 = vunpack.c.l.s4 1966171168
        %v3367 = vunpack.c.0.s8 %v3366
        %v3368 = vlaneseq
        %v3369 = vshrl.u32 %v3368, 7
        %v3370 = vsub.s32 %v3367, %v3369
        %v3371 = vrot.slane %v3089, %v3370
        %v3373 = vunpack.c.l.s4 1966171168
        %v3374 = vunpack.c.0.s8 %v3373
        %v3375 = vlaneseq
        %v3376 = vshrl.u32 %v3375, 7
        %v3377 = vsub.s32 %v3374, %v3376
        %v3378 = vrot.slane %v3090, %v3377
        %v3380 = vunpack.c.l.s4 1966171168
        %v3381 = vunpack.c.0.s8 %v3380
        %v3382 = vlaneseq
        %v3383 = vshrl.u32 %v3382, 7
        %v3384 = vsub.s32 %v3381, %v3383
        %v3385 = vrot.slane %v3091, %v3384
        %v3387 = vunpack.c.l.s4 1966171168
        %v3388 = vunpack.c.0.s8 %v3387
        %v3389 = vlaneseq
        %v3390 = vshrl.u32 %v3389, 7
        %v3391 = vsub.s32 %v3388, %v3390
        %v3392 = vrot.slane %v3092, %v3391
        %v3394 = vunpack.c.l.s4 1966171168
        %v3395 = vunpack.c.0.s8 %v3394
        %v3396 = vlaneseq
        %v3397 = vshrl.u32 %v3396, 7
        %v3398 = vsub.s32 %v3395, %v3397
        %v3399 = vrot.slane %v3093, %v3398
        %v3401 = vunpack.c.l.s4 1966171168
        %v3402 = vunpack.c.0.s8 %v3401
        %v3403 = vlaneseq
        %v3404 = vshrl.u32 %v3403, 7
        %v3405 = vsub.s32 %v3402, %v3404
        %v3406 = vrot.slane %v3094, %v3405
        %v3408 = vunpack.c.l.s4 1966171168
        %v3409 = vunpack.c.0.s8 %v3408
        %v3410 = vlaneseq
        %v3411 = vshrl.u32 %v3410, 7
        %v3412 = vsub.s32 %v3409, %v3411
        %v3413 = vrot.slane %v3095, %v3412
        %v3415 = vunpack.c.l.s4 1966171168
        %v3416 = vunpack.c.0.s8 %v3415
        %v3417 = vlaneseq
        %v3418 = vshrl.u32 %v3417, 7
        %v3419 = vsub.s32 %v3416, %v3418
        %v3420 = vrot.slane %v3096, %v3419
        %v3422 = vunpack.c.l.s4 1966171168
        %v3423 = vunpack.c.0.s8 %v3422
        %v3424 = vlaneseq
        %v3425 = vshrl.u32 %v3424, 7
        %v3426 = vsub.s32 %v3423, %v3425
        %v3427 = vrot.slane %v3097, %v3426
        %v3429 = vunpack.c.l.s4 1966171168
        %v3430 = vunpack.c.0.s8 %v3429
        %v3431 = vlaneseq
        %v3432 = vshrl.u32 %v3431, 7
        %v3433 = vsub.s32 %v3430, %v3432
        %v3434 = vrot.slane %v3098, %v3433
        %v3483 = vrot.slane %v3105, 4
        %v3484 = vrot.slane %v3112, 4
        %v3485 = vrot.slane %v3119, 4
        %v3486 = vrot.slane %v3126, 4
        %v3487 = vrot.slane %v3133, 4
        %v3488 = vrot.slane %v3140, 4
        %v3489 = vrot.slane %v3147, 4
        %v3490 = vrot.slane %v3154, 4
        %v3491 = vrot.slane %v3161, 4
        %v3492 = vrot.slane %v3168, 4
        %v3493 = vrot.slane %v3175, 4
        %v3494 = vrot.slane %v3182, 4
        %v3495 = vrot.slane %v3189, 4
        %v3496 = vrot.slane %v3196, 4
        %v3497 = vrot.slane %v3203, 4
        %v3498 = vrot.slane %v3210, 4
        %v3499 = vrot.slane %v3217, 4
        %v3500 = vrot.slane %v3224, 4
        %v3501 = vrot.slane %v3231, 4
        %v3502 = vrot.slane %v3238, 4
        %v3503 = vrot.slane %v3245, 4
        %v3504 = vrot.slane %v3252, 4
        %v3505 = vrot.slane %v3259, 4
        %v3506 = vrot.slane %v3266, 4
        %v3507 = vrot.slane %v3273, 4
        %v3508 = vrot.slane %v3280, 4
        %v3509 = vrot.slane %v3287, 4
        %v3510 = vrot.slane %v3294, 4
        %v3511 = vrot.slane %v3301, 4
        %v3512 = vrot.slane %v3308, 4
        %v3513 = vrot.slane %v3315, 4
        %v3514 = vrot.slane %v3322, 4
        %v3515 = vrot.slane %v3329, 4
        %v3516 = vrot.slane %v3336, 4
        %v3517 = vrot.slane %v3343, 4
        %v3518 = vrot.slane %v3350, 4
        %v3519 = vrot.slane %v3357, 4
        %v3520 = vrot.slane %v3364, 4
        %v3521 = vrot.slane %v3371, 4
        %v3522 = vrot.slane %v3378, 4
        %v3523 = vrot.slane %v3385, 4
        %v3524 = vrot.slane %v3392, 4
        %v3525 = vrot.slane %v3399, 4
        %v3526 = vrot.slane %v3406, 4
        %v3527 = vrot.slane %v3413, 4
        %v3528 = vrot.slane %v3420, 4
        %v3529 = vrot.slane %v3427, 4
        %v3530 = vrot.slane %v3434, 4
        %v3579 = vmax.f32 %v3105, %v3483
        %v3580 = vmax.f32 %v3112, %v3484
        %v3581 = vmax.f32 %v3119, %v3485
        %v3582 = vmax.f32 %v3126, %v3486
        %v3583 = vmax.f32 %v3133, %v3487
        %v3584 = vmax.f32 %v3140, %v3488
        %v3585 = vmax.f32 %v3147, %v3489
        %v3586 = vmax.f32 %v3154, %v3490
        %v3587 = vmax.f32 %v3161, %v3491
        %v3588 = vmax.f32 %v3168, %v3492
        %v3589 = vmax.f32 %v3175, %v3493
        %v3590 = vmax.f32 %v3182, %v3494
        %v3591 = vmax.f32 %v3189, %v3495
        %v3592 = vmax.f32 %v3196, %v3496
        %v3593 = vmax.f32 %v3203, %v3497
        %v3594 = vmax.f32 %v3210, %v3498
        %v3595 = vmax.f32 %v3217, %v3499
        %v3596 = vmax.f32 %v3224, %v3500
        %v3597 = vmax.f32 %v3231, %v3501
        %v3598 = vmax.f32 %v3238, %v3502
        %v3599 = vmax.f32 %v3245, %v3503
        %v3600 = vmax.f32 %v3252, %v3504
        %v3601 = vmax.f32 %v3259, %v3505
        %v3602 = vmax.f32 %v3266, %v3506
        %v3603 = vmax.f32 %v3273, %v3507
        %v3604 = vmax.f32 %v3280, %v3508
        %v3605 = vmax.f32 %v3287, %v3509
        %v3606 = vmax.f32 %v3294, %v3510
        %v3607 = vmax.f32 %v3301, %v3511
        %v3608 = vmax.f32 %v3308, %v3512
        %v3609 = vmax.f32 %v3315, %v3513
        %v3610 = vmax.f32 %v3322, %v3514
        %v3611 = vmax.f32 %v3329, %v3515
        %v3612 = vmax.f32 %v3336, %v3516
        %v3613 = vmax.f32 %v3343, %v3517
        %v3614 = vmax.f32 %v3350, %v3518
        %v3615 = vmax.f32 %v3357, %v3519
        %v3616 = vmax.f32 %v3364, %v3520
        %v3617 = vmax.f32 %v3371, %v3521
        %v3618 = vmax.f32 %v3378, %v3522
        %v3619 = vmax.f32 %v3385, %v3523
        %v3620 = vmax.f32 %v3392, %v3524
        %v3621 = vmax.f32 %v3399, %v3525
        %v3622 = vmax.f32 %v3406, %v3526
        %v3623 = vmax.f32 %v3413, %v3527
        %v3624 = vmax.f32 %v3420, %v3528
        %v3625 = vmax.f32 %v3427, %v3529
        %v3626 = vmax.f32 %v3434, %v3530
        %v3675 = vrot.slane %v3579, 2
        %v3676 = vrot.slane %v3580, 2
        %v3677 = vrot.slane %v3581, 2
        %v3678 = vrot.slane %v3582, 2
        %v3679 = vrot.slane %v3583, 2
        %v3680 = vrot.slane %v3584, 2
        %v3681 = vrot.slane %v3585, 2
        %v3682 = vrot.slane %v3586, 2
        %v3683 = vrot.slane %v3587, 2
        %v3684 = vrot.slane %v3588, 2
        %v3685 = vrot.slane %v3589, 2
        %v3686 = vrot.slane %v3590, 2
        %v3687 = vrot.slane %v3591, 2
        %v3688 = vrot.slane %v3592, 2
        %v3689 = vrot.slane %v3593, 2
        %v3690 = vrot.slane %v3594, 2
        %v3691 = vrot.slane %v3595, 2
        %v3692 = vrot.slane %v3596, 2
        %v3693 = vrot.slane %v3597, 2
        %v3694 = vrot.slane %v3598, 2
        %v3695 = vrot.slane %v3599, 2
        %v3696 = vrot.slane %v3600, 2
        %v3697 = vrot.slane %v3601, 2
        %v3698 = vrot.slane %v3602, 2
        %v3699 = vrot.slane %v3603, 2
        %v3700 = vrot.slane %v3604, 2
        %v3701 = vrot.slane %v3605, 2
        %v3702 = vrot.slane %v3606, 2
        %v3703 = vrot.slane %v3607, 2
        %v3704 = vrot.slane %v3608, 2
        %v3705 = vrot.slane %v3609, 2
        %v3706 = vrot.slane %v3610, 2
        %v3707 = vrot.slane %v3611, 2
        %v3708 = vrot.slane %v3612, 2
        %v3709 = vrot.slane %v3613, 2
        %v3710 = vrot.slane %v3614, 2
        %v3711 = vrot.slane %v3615, 2
        %v3712 = vrot.slane %v3616, 2
        %v3713 = vrot.slane %v3617, 2
        %v3714 = vrot.slane %v3618, 2
        %v3715 = vrot.slane %v3619, 2
        %v3716 = vrot.slane %v3620, 2
        %v3717 = vrot.slane %v3621, 2
        %v3718 = vrot.slane %v3622, 2
        %v3719 = vrot.slane %v3623, 2
        %v3720 = vrot.slane %v3624, 2
        %v3721 = vrot.slane %v3625, 2
        %v3722 = vrot.slane %v3626, 2
        %v3771 = vmax.f32 %v3579, %v3675
        %v3772 = vmax.f32 %v3580, %v3676
        %v3773 = vmax.f32 %v3581, %v3677
        %v3774 = vmax.f32 %v3582, %v3678
        %v3775 = vmax.f32 %v3583, %v3679
        %v3776 = vmax.f32 %v3584, %v3680
        %v3777 = vmax.f32 %v3585, %v3681
        %v3778 = vmax.f32 %v3586, %v3682
        %v3779 = vmax.f32 %v3587, %v3683
        %v3780 = vmax.f32 %v3588, %v3684
        %v3781 = vmax.f32 %v3589, %v3685
        %v3782 = vmax.f32 %v3590, %v3686
        %v3783 = vmax.f32 %v3591, %v3687
        %v3784 = vmax.f32 %v3592, %v3688
        %v3785 = vmax.f32 %v3593, %v3689
        %v3786 = vmax.f32 %v3594, %v3690
        %v3787 = vmax.f32 %v3595, %v3691
        %v3788 = vmax.f32 %v3596, %v3692
        %v3789 = vmax.f32 %v3597, %v3693
        %v3790 = vmax.f32 %v3598, %v3694
        %v3791 = vmax.f32 %v3599, %v3695
        %v3792 = vmax.f32 %v3600, %v3696
        %v3793 = vmax.f32 %v3601, %v3697
        %v3794 = vmax.f32 %v3602, %v3698
        %v3795 = vmax.f32 %v3603, %v3699
        %v3796 = vmax.f32 %v3604, %v3700
        %v3797 = vmax.f32 %v3605, %v3701
        %v3798 = vmax.f32 %v3606, %v3702
        %v3799 = vmax.f32 %v3607, %v3703
        %v3800 = vmax.f32 %v3608, %v3704
        %v3801 = vmax.f32 %v3609, %v3705
        %v3802 = vmax.f32 %v3610, %v3706
        %v3803 = vmax.f32 %v3611, %v3707
        %v3804 = vmax.f32 %v3612, %v3708
        %v3805 = vmax.f32 %v3613, %v3709
        %v3806 = vmax.f32 %v3614, %v3710
        %v3807 = vmax.f32 %v3615, %v3711
        %v3808 = vmax.f32 %v3616, %v3712
        %v3809 = vmax.f32 %v3617, %v3713
        %v3810 = vmax.f32 %v3618, %v3714
        %v3811 = vmax.f32 %v3619, %v3715
        %v3812 = vmax.f32 %v3620, %v3716
        %v3813 = vmax.f32 %v3621, %v3717
        %v3814 = vmax.f32 %v3622, %v3718
        %v3815 = vmax.f32 %v3623, %v3719
        %v3816 = vmax.f32 %v3624, %v3720
        %v3817 = vmax.f32 %v3625, %v3721
        %v3818 = vmax.f32 %v3626, %v3722
        %v3819 = vld [vmem:[%s2] sm:$0x1]
        %v3821 = vlaneseq
        %v3822 = vshrl.u32 %v3821, 7
        %v3823 = vsub.s32 0, %v3822
        %v3824 = vrot.slane %v3819, %v3823
        %v3825 = vcombine.high %v3824, %v3824
        %v3827 = vunpack.c.l.s4 1983009808
        %v3828 = vunpack.c.0.s8 %v3827
        %v3829 = vlaneseq
        %v3830 = vshrl.u32 %v3829, 7
        %v3831 = vsub.s32 %v3828, %v3830
        %v3832 = vrot.slane %v3824, %v3831
        %v3834 = vunpack.c.l.s4 1983009808
        %v3835 = vunpack.c.0.s8 %v3834
        %v3836 = vlaneseq
        %v3837 = vshrl.u32 %v3836, 7
        %v3838 = vsub.s32 %v3835, %v3837
        %v3839 = vrot.slane %v3825, %v3838
        %v3840 = vcombine.high %v3832, %v3832
        %v3841 = vcombine.high %v3839, %v3839
        %v3846 = vadd.f32 %v3771, %v3832
        %v3847 = vadd.f32 %v3772, %v3840
        %v3848 = vadd.f32 %v3773, %v3839
        %v3849 = vadd.f32 %v3774, %v3841
        %v3850 = vadd.f32 %v3775, %v3832
        %v3851 = vadd.f32 %v3776, %v3840
        %v3852 = vadd.f32 %v3777, %v3839
        %v3853 = vadd.f32 %v3778, %v3841
        %v3854 = vadd.f32 %v3779, %v3832
        %v3855 = vadd.f32 %v3780, %v3840
        %v3856 = vadd.f32 %v3781, %v3839
        %v3857 = vadd.f32 %v3782, %v3841
        %v3858 = vadd.f32 %v3783, %v3832
        %v3859 = vadd.f32 %v3784, %v3840
        %v3860 = vadd.f32 %v3785, %v3839
        %v3861 = vadd.f32 %v3786, %v3841
        %v3862 = vadd.f32 %v3787, %v3832
        %v3863 = vadd.f32 %v3788, %v3840
        %v3864 = vadd.f32 %v3789, %v3839
        %v3865 = vadd.f32 %v3790, %v3841
        %v3866 = vadd.f32 %v3791, %v3832
        %v3867 = vadd.f32 %v3792, %v3840
        %v3868 = vadd.f32 %v3793, %v3839
        %v3869 = vadd.f32 %v3794, %v3841
        %v3870 = vadd.f32 %v3795, %v3832
        %v3871 = vadd.f32 %v3796, %v3840
        %v3872 = vadd.f32 %v3797, %v3839
        %v3873 = vadd.f32 %v3798, %v3841
        %v3874 = vadd.f32 %v3799, %v3832
        %v3875 = vadd.f32 %v3800, %v3840
        %v3876 = vadd.f32 %v3801, %v3839
        %v3877 = vadd.f32 %v3802, %v3841
        %v3878 = vadd.f32 %v3803, %v3832
        %v3879 = vadd.f32 %v3804, %v3840
        %v3880 = vadd.f32 %v3805, %v3839
        %v3881 = vadd.f32 %v3806, %v3841
        %v3882 = vadd.f32 %v3807, %v3832
        %v3883 = vadd.f32 %v3808, %v3840
        %v3884 = vadd.f32 %v3809, %v3839
        %v3885 = vadd.f32 %v3810, %v3841
        %v3886 = vadd.f32 %v3811, %v3832
        %v3887 = vadd.f32 %v3812, %v3840
        %v3888 = vadd.f32 %v3813, %v3839
        %v3889 = vadd.f32 %v3814, %v3841
        %v3890 = vadd.f32 %v3815, %v3832
        %v3891 = vadd.f32 %v3816, %v3840
        %v3892 = vadd.f32 %v3817, %v3839
        %v3893 = vadd.f32 %v3818, %v3841
        %v3894 = vmax.f32 %v3846, 0.0
        %v3895 = vmax.f32 %v3847, 0.0
        %v3896 = vmax.f32 %v3848, 0.0
        %v3897 = vmax.f32 %v3849, 0.0
        %v3898 = vmax.f32 %v3850, 0.0
        %v3899 = vmax.f32 %v3851, 0.0
        %v3900 = vmax.f32 %v3852, 0.0
        %v3901 = vmax.f32 %v3853, 0.0
        %v3902 = vmax.f32 %v3854, 0.0
        %v3903 = vmax.f32 %v3855, 0.0
        %v3904 = vmax.f32 %v3856, 0.0
        %v3905 = vmax.f32 %v3857, 0.0
        %v3906 = vmax.f32 %v3858, 0.0
        %v3907 = vmax.f32 %v3859, 0.0
        %v3908 = vmax.f32 %v3860, 0.0
        %v3909 = vmax.f32 %v3861, 0.0
        %v3910 = vmax.f32 %v3862, 0.0
        %v3911 = vmax.f32 %v3863, 0.0
        %v3912 = vmax.f32 %v3864, 0.0
        %v3913 = vmax.f32 %v3865, 0.0
        %v3914 = vmax.f32 %v3866, 0.0
        %v3915 = vmax.f32 %v3867, 0.0
        %v3916 = vmax.f32 %v3868, 0.0
        %v3917 = vmax.f32 %v3869, 0.0
        %v3918 = vmax.f32 %v3870, 0.0
        %v3919 = vmax.f32 %v3871, 0.0
        %v3920 = vmax.f32 %v3872, 0.0
        %v3921 = vmax.f32 %v3873, 0.0
        %v3922 = vmax.f32 %v3874, 0.0
        %v3923 = vmax.f32 %v3875, 0.0
        %v3924 = vmax.f32 %v3876, 0.0
        %v3925 = vmax.f32 %v3877, 0.0
        %v3926 = vmax.f32 %v3878, 0.0
        %v3927 = vmax.f32 %v3879, 0.0
        %v3928 = vmax.f32 %v3880, 0.0
        %v3929 = vmax.f32 %v3881, 0.0
        %v3930 = vmax.f32 %v3882, 0.0
        %v3931 = vmax.f32 %v3883, 0.0
        %v3932 = vmax.f32 %v3884, 0.0
        %v3933 = vmax.f32 %v3885, 0.0
        %v3934 = vmax.f32 %v3886, 0.0
        %v3935 = vmax.f32 %v3887, 0.0
        %v3936 = vmax.f32 %v3888, 0.0
        %v3937 = vmax.f32 %v3889, 0.0
        %v3938 = vmax.f32 %v3890, 0.0
        %v3939 = vmax.f32 %v3891, 0.0
        %v3940 = vmax.f32 %v3892, 0.0
        %v3941 = vmax.f32 %v3893, 0.0
        %v3942 = vld [vmem:[#allocation5] sm:$0xff]
        %v3943 = vld [vmem:[#allocation5 + $0x8] sm:$0xff]
        %v3944 = vld [vmem:[#allocation5 + $0x10] sm:$0xff]
        %v3945 = vld [vmem:[#allocation5 + $0x18] sm:$0xff]
        %v3946 = vld [vmem:[#allocation5 + $0x20] sm:$0xff]
        %v3947 = vld [vmem:[#allocation5 + $0x28] sm:$0xff]
        %v3948 = vld [vmem:[#allocation5 + $0x30] sm:$0xff]
        %v3949 = vld [vmem:[#allocation5 + $0x38] sm:$0xff]
        %v3950 = vld [vmem:[#allocation5 + $0x40] sm:$0xff]
        %v3951 = vld [vmem:[#allocation5 + $0x48] sm:$0xff]
        %v3952 = vld [vmem:[#allocation5 + $0x50] sm:$0xff]
        %v3953 = vld [vmem:[#allocation5 + $0x58] sm:$0xff]
        %v3954 = vld [vmem:[#allocation5 + $0x60] sm:$0xff]
        %v3955 = vld [vmem:[#allocation5 + $0x68] sm:$0xff]
        %v3956 = vld [vmem:[#allocation5 + $0x70] sm:$0xff]
        %v3957 = vld [vmem:[#allocation5 + $0x78] sm:$0xff]
        %v3958 = vld [vmem:[#allocation5 + $0x80] sm:$0xff]
        %v3959 = vld [vmem:[#allocation5 + $0x88] sm:$0xff]
        %v3960 = vld [vmem:[#allocation5 + $0x90] sm:$0xff]
        %v3961 = vld [vmem:[#allocation5 + $0x98] sm:$0xff]
        %v3962 = vld [vmem:[#allocation5 + $0xa0] sm:$0xff]
        %v3963 = vld [vmem:[#allocation5 + $0xa8] sm:$0xff]
        %v3964 = vld [vmem:[#allocation5 + $0xb0] sm:$0xff]
        %v3965 = vld [vmem:[#allocation5 + $0xb8] sm:$0xff]
        %v3966 = vld [vmem:[#allocation5 + $0xc0] sm:$0xff]
        %v3967 = vld [vmem:[#allocation5 + $0xc8] sm:$0xff]
        %v3968 = vld [vmem:[#allocation5 + $0xd0] sm:$0xff]
        %v3969 = vld [vmem:[#allocation5 + $0xd8] sm:$0xff]
        %v3970 = vld [vmem:[#allocation5 + $0xe0] sm:$0xff]
        %v3971 = vld [vmem:[#allocation5 + $0xe8] sm:$0xff]
        %v3972 = vld [vmem:[#allocation5 + $0xf0] sm:$0xff]
        %v3973 = vld [vmem:[#allocation5 + $0xf8] sm:$0xff]
        %v3974 = vld [vmem:[#allocation5 + $0x100] sm:$0xff]
        %v3975 = vld [vmem:[#allocation5 + $0x108] sm:$0xff]
        %v3976 = vld [vmem:[#allocation5 + $0x110] sm:$0xff]
        %v3977 = vld [vmem:[#allocation5 + $0x118] sm:$0xff]
        %v3978 = vld [vmem:[#allocation5 + $0x120] sm:$0xff]
        %v3979 = vld [vmem:[#allocation5 + $0x128] sm:$0xff]
        %v3980 = vld [vmem:[#allocation5 + $0x130] sm:$0xff]
        %v3981 = vld [vmem:[#allocation5 + $0x138] sm:$0xff]
        %v3982 = vld [vmem:[#allocation5 + $0x140] sm:$0xff]
        %v3983 = vld [vmem:[#allocation5 + $0x148] sm:$0xff]
        %v3984 = vld [vmem:[#allocation5 + $0x150] sm:$0xff]
        %v3985 = vld [vmem:[#allocation5 + $0x158] sm:$0xff]
        %v3986 = vld [vmem:[#allocation5 + $0x160] sm:$0xff]
        %v3987 = vld [vmem:[#allocation5 + $0x168] sm:$0xff]
        %v3988 = vld [vmem:[#allocation5 + $0x170] sm:$0xff]
        %v3989 = vld [vmem:[#allocation5 + $0x178] sm:$0xff]
        %v3990 = vld [vmem:[#allocation5 + $0x180] sm:$0xff]
        %v3991 = vld [vmem:[#allocation5 + $0x188] sm:$0xff]
        %v3992 = vld [vmem:[#allocation5 + $0x190] sm:$0xff]
        %v3993 = vld [vmem:[#allocation5 + $0x198] sm:$0xff]
        %v3994 = vld [vmem:[#allocation5 + $0x1a0] sm:$0xff]
        %v3995 = vld [vmem:[#allocation5 + $0x1a8] sm:$0xff]
        %v3996 = vld [vmem:[#allocation5 + $0x1b0] sm:$0xff]
        %v3997 = vld [vmem:[#allocation5 + $0x1b8] sm:$0xff]
        %v3998 = vld [vmem:[#allocation5 + $0x1c0] sm:$0xff]
        %v3999 = vld [vmem:[#allocation5 + $0x1c8] sm:$0xff]
        %v4000 = vld [vmem:[#allocation5 + $0x1d0] sm:$0xff]
        %v4001 = vld [vmem:[#allocation5 + $0x1d8] sm:$0xff]
        %v4002 = vld [vmem:[#allocation5 + $0x1e0] sm:$0xff]
        %v4003 = vld [vmem:[#allocation5 + $0x1e8] sm:$0xff]
        %v4004 = vld [vmem:[#allocation5 + $0x1f0] sm:$0xff]
        %v4005 = vld [vmem:[#allocation5 + $0x1f8] sm:$0xff]
        %v4006 = vld [vmem:[#allocation5 + $0x200] sm:$0xff]
        %v4007 = vld [vmem:[#allocation5 + $0x208] sm:$0xff]
        %v4008 = vld [vmem:[#allocation5 + $0x210] sm:$0xff]
        %v4009 = vld [vmem:[#allocation5 + $0x218] sm:$0xff]
        %v4010 = vld [vmem:[#allocation5 + $0x220] sm:$0xff]
        %v4011 = vld [vmem:[#allocation5 + $0x228] sm:$0xff]
        %v4012 = vld [vmem:[#allocation5 + $0x230] sm:$0xff]
        %v4013 = vld [vmem:[#allocation5 + $0x238] sm:$0xff]
        %v4014 = vld [vmem:[#allocation5 + $0x240] sm:$0xff]
        %v4015 = vld [vmem:[#allocation5 + $0x248] sm:$0xff]
        %v4016 = vld [vmem:[#allocation5 + $0x250] sm:$0xff]
        %v4017 = vld [vmem:[#allocation5 + $0x258] sm:$0xff]
        %v4018 = vld [vmem:[#allocation5 + $0x260] sm:$0xff]
        %v4019 = vld [vmem:[#allocation5 + $0x268] sm:$0xff]
        %v4020 = vld [vmem:[#allocation5 + $0x270] sm:$0xff]
        %v4021 = vld [vmem:[#allocation5 + $0x278] sm:$0xff]
        %v4022 = vld [vmem:[#allocation5 + $0x280] sm:$0xff]
        %v4023 = vld [vmem:[#allocation5 + $0x288] sm:$0xff]
        %v4024 = vld [vmem:[#allocation5 + $0x290] sm:$0xff]
        %v4025 = vld [vmem:[#allocation5 + $0x298] sm:$0xff]
        %v4026 = vld [vmem:[#allocation5 + $0x2a0] sm:$0xff]
        %v4027 = vld [vmem:[#allocation5 + $0x2a8] sm:$0xff]
        %v4028 = vld [vmem:[#allocation5 + $0x2b0] sm:$0xff]
        %v4029 = vld [vmem:[#allocation5 + $0x2b8] sm:$0xff]
        %v4030 = vld [vmem:[#allocation5 + $0x2c0] sm:$0xff]
        %v4031 = vld [vmem:[#allocation5 + $0x2c8] sm:$0xff]
        %v4032 = vld [vmem:[#allocation5 + $0x2d0] sm:$0xff]
        %v4033 = vld [vmem:[#allocation5 + $0x2d8] sm:$0xff]
        %v4034 = vld [vmem:[#allocation5 + $0x2e0] sm:$0xff]
        %v4035 = vld [vmem:[#allocation5 + $0x2e8] sm:$0xff]
        %v4036 = vld [vmem:[#allocation5 + $0x2f0] sm:$0xff]
        %v4037 = vld [vmem:[#allocation5 + $0x2f8] sm:$0xff]
        %v4038 = vld [vmem:[#allocation5 + $0x300] sm:$0xff]
        %v4039 = vld [vmem:[#allocation5 + $0x308] sm:$0xff]
        %v4040 = vld [vmem:[#allocation5 + $0x310] sm:$0xff]
        %v4041 = vld [vmem:[#allocation5 + $0x318] sm:$0xff]
        %v4042 = vld [vmem:[#allocation5 + $0x320] sm:$0xff]
        %v4043 = vld [vmem:[#allocation5 + $0x328] sm:$0xff]
        %v4044 = vld [vmem:[#allocation5 + $0x330] sm:$0xff]
        %v4045 = vld [vmem:[#allocation5 + $0x338] sm:$0xff]
        %v4046 = vld [vmem:[#allocation5 + $0x340] sm:$0xff]
        %v4047 = vld [vmem:[#allocation5 + $0x348] sm:$0xff]
        %v4048 = vld [vmem:[#allocation5 + $0x350] sm:$0xff]
        %v4049 = vld [vmem:[#allocation5 + $0x358] sm:$0xff]
        %v4050 = vld [vmem:[#allocation5 + $0x360] sm:$0xff]
        %v4051 = vld [vmem:[#allocation5 + $0x368] sm:$0xff]
        %v4052 = vld [vmem:[#allocation5 + $0x370] sm:$0xff]
        %v4053 = vld [vmem:[#allocation5 + $0x378] sm:$0xff]
        %v4054 = vld [vmem:[#allocation5 + $0x380] sm:$0xff]
        %v4055 = vld [vmem:[#allocation5 + $0x388] sm:$0xff]
        %v4056 = vld [vmem:[#allocation5 + $0x390] sm:$0xff]
        %v4057 = vld [vmem:[#allocation5 + $0x398] sm:$0xff]
        %v4058 = vld [vmem:[#allocation5 + $0x3a0] sm:$0xff]
        %v4059 = vld [vmem:[#allocation5 + $0x3a8] sm:$0xff]
        %v4060 = vld [vmem:[#allocation5 + $0x3b0] sm:$0xff]
        %v4061 = vld [vmem:[#allocation5 + $0x3b8] sm:$0xff]
        %v4062 = vld [vmem:[#allocation5 + $0x3c0] sm:$0xff]
        %v4063 = vld [vmem:[#allocation5 + $0x3c8] sm:$0xff]
        %v4064 = vld [vmem:[#allocation5 + $0x3d0] sm:$0xff]
        %v4065 = vld [vmem:[#allocation5 + $0x3d8] sm:$0xff]
        %v4066 = vld [vmem:[#allocation5 + $0x3e0] sm:$0xff]
        %v4067 = vld [vmem:[#allocation5 + $0x3e8] sm:$0xff]
        %v4068 = vld [vmem:[#allocation5 + $0x3f0] sm:$0xff]
        %v4069 = vld [vmem:[#allocation5 + $0x3f8] sm:$0xff]
        %v4070 = vld [vmem:[#allocation5 + $0x400] sm:$0xff]
        %v4071 = vld [vmem:[#allocation5 + $0x408] sm:$0xff]
        %v4072 = vld [vmem:[#allocation5 + $0x410] sm:$0xff]
        %v4073 = vld [vmem:[#allocation5 + $0x418] sm:$0xff]
        %v4074 = vld [vmem:[#allocation5 + $0x420] sm:$0xff]
        %v4075 = vld [vmem:[#allocation5 + $0x428] sm:$0xff]
        %v4076 = vld [vmem:[#allocation5 + $0x430] sm:$0xff]
        %v4077 = vld [vmem:[#allocation5 + $0x438] sm:$0xff]
        %v4078 = vld [vmem:[#allocation5 + $0x440] sm:$0xff]
        %v4079 = vld [vmem:[#allocation5 + $0x448] sm:$0xff]
        %v4080 = vld [vmem:[#allocation5 + $0x450] sm:$0xff]
        %v4081 = vld [vmem:[#allocation5 + $0x458] sm:$0xff]
        %v4082 = vld [vmem:[#allocation5 + $0x460] sm:$0xff]
        %v4083 = vld [vmem:[#allocation5 + $0x468] sm:$0xff]
        %v4084 = vld [vmem:[#allocation5 + $0x470] sm:$0xff]
        %v4085 = vld [vmem:[#allocation5 + $0x478] sm:$0xff]
        %v4086 = vld [vmem:[#allocation5 + $0x480] sm:$0xff]
        %v4087 = vld [vmem:[#allocation5 + $0x488] sm:$0xff]
        %v4088 = vld [vmem:[#allocation5 + $0x490] sm:$0xff]
        %v4089 = vld [vmem:[#allocation5 + $0x498] sm:$0xff]
        %v4090 = vld [vmem:[#allocation5 + $0x4a0] sm:$0xff]
        %v4091 = vld [vmem:[#allocation5 + $0x4a8] sm:$0xff]
        %v4092 = vld [vmem:[#allocation5 + $0x4b0] sm:$0xff]
        %v4093 = vld [vmem:[#allocation5 + $0x4b8] sm:$0xff]
        %v4094 = vld [vmem:[#allocation5 + $0x4c0] sm:$0xff]
        %v4095 = vld [vmem:[#allocation5 + $0x4c8] sm:$0xff]
        %v4096 = vld [vmem:[#allocation5 + $0x4d0] sm:$0xff]
        %v4097 = vld [vmem:[#allocation5 + $0x4d8] sm:$0xff]
        %v4098 = vld [vmem:[#allocation5 + $0x4e0] sm:$0xff]
        %v4099 = vld [vmem:[#allocation5 + $0x4e8] sm:$0xff]
        %v4100 = vld [vmem:[#allocation5 + $0x4f0] sm:$0xff]
        %v4101 = vld [vmem:[#allocation5 + $0x4f8] sm:$0xff]
        %v4150 = vcombine.low %v3894, %v3895
        %v4151 = vcombine.low %v3896, %v3897
        %v4153 = vunpack.c.l.s4 1983009808
        %v4154 = vunpack.c.0.s8 %v4153
        %v4155 = vlaneseq
        %v4156 = vshrl.u32 %v4155, 7
        %v4157 = vsub.s32 %v4154, %v4156
        %v4158 = vrot.slane %v4150, %v4157
        %v4160 = vunpack.c.l.s4 1983009808
        %v4161 = vunpack.c.0.s8 %v4160
        %v4162 = vlaneseq
        %v4163 = vshrl.u32 %v4162, 7
        %v4164 = vsub.s32 %v4161, %v4163
        %v4165 = vrot.slane %v4151, %v4164
        %v4166 = vcombine.low %v4158, %v4165
        %v4167 = vcombine.low %v3898, %v3899
        %v4168 = vcombine.low %v3900, %v3901
        %v4170 = vunpack.c.l.s4 1983009808
        %v4171 = vunpack.c.0.s8 %v4170
        %v4172 = vlaneseq
        %v4173 = vshrl.u32 %v4172, 7
        %v4174 = vsub.s32 %v4171, %v4173
        %v4175 = vrot.slane %v4167, %v4174
        %v4177 = vunpack.c.l.s4 1983009808
        %v4178 = vunpack.c.0.s8 %v4177
        %v4179 = vlaneseq
        %v4180 = vshrl.u32 %v4179, 7
        %v4181 = vsub.s32 %v4178, %v4180
        %v4182 = vrot.slane %v4168, %v4181
        %v4183 = vcombine.low %v4175, %v4182
        %v4184 = vcombine.low %v3902, %v3903
        %v4185 = vcombine.low %v3904, %v3905
        %v4187 = vunpack.c.l.s4 1983009808
        %v4188 = vunpack.c.0.s8 %v4187
        %v4189 = vlaneseq
        %v4190 = vshrl.u32 %v4189, 7
        %v4191 = vsub.s32 %v4188, %v4190
        %v4192 = vrot.slane %v4184, %v4191
        %v4194 = vunpack.c.l.s4 1983009808
        %v4195 = vunpack.c.0.s8 %v4194
        %v4196 = vlaneseq
        %v4197 = vshrl.u32 %v4196, 7
        %v4198 = vsub.s32 %v4195, %v4197
        %v4199 = vrot.slane %v4185, %v4198
        %v4200 = vcombine.low %v4192, %v4199
        %v4201 = vcombine.low %v3906, %v3907
        %v4202 = vcombine.low %v3908, %v3909
        %v4204 = vunpack.c.l.s4 1983009808
        %v4205 = vunpack.c.0.s8 %v4204
        %v4206 = vlaneseq
        %v4207 = vshrl.u32 %v4206, 7
        %v4208 = vsub.s32 %v4205, %v4207
        %v4209 = vrot.slane %v4201, %v4208
        %v4211 = vunpack.c.l.s4 1983009808
        %v4212 = vunpack.c.0.s8 %v4211
        %v4213 = vlaneseq
        %v4214 = vshrl.u32 %v4213, 7
        %v4215 = vsub.s32 %v4212, %v4214
        %v4216 = vrot.slane %v4202, %v4215
        %v4217 = vcombine.low %v4209, %v4216
        %v4218 = vcombine.low %v3910, %v3911
        %v4219 = vcombine.low %v3912, %v3913
        %v4221 = vunpack.c.l.s4 1983009808
        %v4222 = vunpack.c.0.s8 %v4221
        %v4223 = vlaneseq
        %v4224 = vshrl.u32 %v4223, 7
        %v4225 = vsub.s32 %v4222, %v4224
        %v4226 = vrot.slane %v4218, %v4225
        %v4228 = vunpack.c.l.s4 1983009808
        %v4229 = vunpack.c.0.s8 %v4228
        %v4230 = vlaneseq
        %v4231 = vshrl.u32 %v4230, 7
        %v4232 = vsub.s32 %v4229, %v4231
        %v4233 = vrot.slane %v4219, %v4232
        %v4234 = vcombine.low %v4226, %v4233
        %v4235 = vcombine.low %v3914, %v3915
        %v4236 = vcombine.low %v3916, %v3917
        %v4238 = vunpack.c.l.s4 1983009808
        %v4239 = vunpack.c.0.s8 %v4238
        %v4240 = vlaneseq
        %v4241 = vshrl.u32 %v4240, 7
        %v4242 = vsub.s32 %v4239, %v4241
        %v4243 = vrot.slane %v4235, %v4242
        %v4245 = vunpack.c.l.s4 1983009808
        %v4246 = vunpack.c.0.s8 %v4245
        %v4247 = vlaneseq
        %v4248 = vshrl.u32 %v4247, 7
        %v4249 = vsub.s32 %v4246, %v4248
        %v4250 = vrot.slane %v4236, %v4249
        %v4251 = vcombine.low %v4243, %v4250
        %v4252 = vcombine.low %v3918, %v3919
        %v4253 = vcombine.low %v3920, %v3921
        %v4255 = vunpack.c.l.s4 1983009808
        %v4256 = vunpack.c.0.s8 %v4255
        %v4257 = vlaneseq
        %v4258 = vshrl.u32 %v4257, 7
        %v4259 = vsub.s32 %v4256, %v4258
        %v4260 = vrot.slane %v4252, %v4259
        %v4262 = vunpack.c.l.s4 1983009808
        %v4263 = vunpack.c.0.s8 %v4262
        %v4264 = vlaneseq
        %v4265 = vshrl.u32 %v4264, 7
        %v4266 = vsub.s32 %v4263, %v4265
        %v4267 = vrot.slane %v4253, %v4266
        %v4268 = vcombine.low %v4260, %v4267
        %v4269 = vcombine.low %v3922, %v3923
        %v4270 = vcombine.low %v3924, %v3925
        %v4272 = vunpack.c.l.s4 1983009808
        %v4273 = vunpack.c.0.s8 %v4272
        %v4274 = vlaneseq
        %v4275 = vshrl.u32 %v4274, 7
        %v4276 = vsub.s32 %v4273, %v4275
        %v4277 = vrot.slane %v4269, %v4276
        %v4279 = vunpack.c.l.s4 1983009808
        %v4280 = vunpack.c.0.s8 %v4279
        %v4281 = vlaneseq
        %v4282 = vshrl.u32 %v4281, 7
        %v4283 = vsub.s32 %v4280, %v4282
        %v4284 = vrot.slane %v4270, %v4283
        %v4285 = vcombine.low %v4277, %v4284
        %v4286 = vcombine.low %v3926, %v3927
        %v4287 = vcombine.low %v3928, %v3929
        %v4289 = vunpack.c.l.s4 1983009808
        %v4290 = vunpack.c.0.s8 %v4289
        %v4291 = vlaneseq
        %v4292 = vshrl.u32 %v4291, 7
        %v4293 = vsub.s32 %v4290, %v4292
        %v4294 = vrot.slane %v4286, %v4293
        %v4296 = vunpack.c.l.s4 1983009808
        %v4297 = vunpack.c.0.s8 %v4296
        %v4298 = vlaneseq
        %v4299 = vshrl.u32 %v4298, 7
        %v4300 = vsub.s32 %v4297, %v4299
        %v4301 = vrot.slane %v4287, %v4300
        %v4302 = vcombine.low %v4294, %v4301
        %v4303 = vcombine.low %v3930, %v3931
        %v4304 = vcombine.low %v3932, %v3933
        %v4306 = vunpack.c.l.s4 1983009808
        %v4307 = vunpack.c.0.s8 %v4306
        %v4308 = vlaneseq
        %v4309 = vshrl.u32 %v4308, 7
        %v4310 = vsub.s32 %v4307, %v4309
        %v4311 = vrot.slane %v4303, %v4310
        %v4313 = vunpack.c.l.s4 1983009808
        %v4314 = vunpack.c.0.s8 %v4313
        %v4315 = vlaneseq
        %v4316 = vshrl.u32 %v4315, 7
        %v4317 = vsub.s32 %v4314, %v4316
        %v4318 = vrot.slane %v4304, %v4317
        %v4319 = vcombine.low %v4311, %v4318
        %v4320 = vcombine.low %v3934, %v3935
        %v4321 = vcombine.low %v3936, %v3937
        %v4323 = vunpack.c.l.s4 1983009808
        %v4324 = vunpack.c.0.s8 %v4323
        %v4325 = vlaneseq
        %v4326 = vshrl.u32 %v4325, 7
        %v4327 = vsub.s32 %v4324, %v4326
        %v4328 = vrot.slane %v4320, %v4327
        %v4330 = vunpack.c.l.s4 1983009808
        %v4331 = vunpack.c.0.s8 %v4330
        %v4332 = vlaneseq
        %v4333 = vshrl.u32 %v4332, 7
        %v4334 = vsub.s32 %v4331, %v4333
        %v4335 = vrot.slane %v4321, %v4334
        %v4336 = vcombine.low %v4328, %v4335
        %v4337 = vcombine.low %v3938, %v3939
        %v4338 = vcombine.low %v3940, %v3941
        %v4340 = vunpack.c.l.s4 1983009808
        %v4341 = vunpack.c.0.s8 %v4340
        %v4342 = vlaneseq
        %v4343 = vshrl.u32 %v4342, 7
        %v4344 = vsub.s32 %v4341, %v4343
        %v4345 = vrot.slane %v4337, %v4344
        %v4347 = vunpack.c.l.s4 1983009808
        %v4348 = vunpack.c.0.s8 %v4347
        %v4349 = vlaneseq
        %v4350 = vshrl.u32 %v4349, 7
        %v4351 = vsub.s32 %v4348, %v4350
        %v4352 = vrot.slane %v4338, %v4351
        %v4353 = vcombine.low %v4345, %v4352
        %4366 = vmatprep.subr.mxu0 %v4093
        %4367 = vmatpush1.msra.mxu0 %v4092
        %4368 = vmatprep.subr.mxu0 %v4083
        %4369 = vmatpush1.msra.mxu0 %v4082
        %4370 = vmatprep.subr.mxu0 %v4073
        %4371 = vmatpush1.msra.mxu0 %v4072
        %4372 = vmatprep.subr.mxu0 %v4063
        %4373 = vmatpush1.msra.mxu0 %v4062
        %4374 = vmatprep.subr.mxu0 %v4053
        %4375 = vmatpush1.msra.mxu0 %v4052
        %4376 = vmatprep.subr.mxu0 %v4043
        %4377 = vmatpush1.msra.mxu0 %v4042
        %4378 = vmatprep.subr.mxu0 %v4033
        %4379 = vmatpush1.msra.mxu0 %v4032
        %4380 = vmatprep.subr.mxu0 %v4023
        %4381 = vmatpush1.msra.mxu0 %v4022
        %4382 = vmatprep.subr.mxu0 %v4013
        %4383 = vmatpush1.msra.mxu0 %v4012
        %4384 = vmatprep.subr.mxu0 %v4003
        %4385 = vmatpush1.msra.mxu0 %v4002
        %4386 = vmatprep.subr.mxu0 %v3993
        %4387 = vmatpush1.msra.mxu0 %v3992
        %4388 = vmatprep.subr.mxu0 %v3983
        %4389 = vmatpush1.msra.mxu0 %v3982
        %4390 = vmatprep.subr.mxu0 %v3973
        %4391 = vmatpush1.msra.mxu0 %v3972
        %4392 = vmatprep.subr.mxu0 %v3963
        %4393 = vmatpush1.msra.mxu0 %v3962
        %4394 = vmatprep.subr.mxu0 %v3953
        %4395 = vmatpush1.msra.mxu0 %v3952
        %4396 = vmatprep.subr.mxu0 %v3943
        %4397 = vmatpush1.msra.mxu0 %v3942
        %4398 = vmatprep.subr.mxu0 0.0
        %4399 = vmatpush2.msra.mxu0 0.0
        %4400 = vmatprep.subr.mxu0 0.0
        %4401 = vmatpush2.msra.mxu0 0.0
        %4402 = vmatprep.subr.mxu0 0.0
        %4403 = vmatpush2.msra.mxu0 0.0
        %4404 = vmatprep.subr.mxu0 0.0
        %4405 = vmatpush2.msra.mxu0 0.0
        %4406 = vmatprep.subr.mxu0 0.0
        %4407 = vmatpush2.msra.mxu0 0.0
        %4408 = vmatprep.subr.mxu0 0.0
        %4409 = vmatpush2.msra.mxu0 0.0
        %4410 = vmatprep.subr.mxu0 0.0
        %4411 = vmatpush2.msra.mxu0 0.0
        %4412 = vmatprep.subr.mxu0 0.0
        %4413 = vmatpush2.msra.mxu0 0.0
        %4414 = vmatprep.subr.mxu0 0.0
        %4415 = vmatpush2.msra.mxu0 0.0
        %4416 = vmatprep.subr.mxu0 0.0
        %4417 = vmatpush2.msra.mxu0 0.0
        %4418 = vmatprep.subr.mxu0 0.0
        %4419 = vmatpush2.msra.mxu0 0.0
        %4420 = vmatprep.subr.mxu0 0.0
        %4421 = vmatpush2.msra.mxu0 0.0
        %4422 = vmatprep.subr.mxu0 0.0
        %4423 = vmatpush2.msra.mxu0 0.0
        %4424 = vmatprep.subr.mxu0 0.0
        %4425 = vmatpush2.msra.mxu0 0.0
        %4426 = vmatprep.subr.mxu0 0.0
        %4427 = vmatpush2.msra.mxu0 0.0
        %4428 = vmatprep.subr.mxu0 0.0
        %4429 = vmatpush2.msra.mxu0 0.0
        %4430 = vmatprep.mubr.f32.mxu0 0.0
        %4431 = vmatmul.mubr.f32.gmra.mxu0 %v4166
        %v4432 = vpop.f32.mrf.mxu0
        %v4433 = vadd.f32 0.0, %v4432
        %v4434 = vpop.f32.mrf.mxu0
        %v4435 = vadd.f32 0.0, %v4434
        %4436 = vmatprep.mubr.f32.mxu0 0.0
        %4437 = vmatmul.mubr.f32.gmra.mxu0 %v4183
        %v4438 = vpop.f32.mrf.mxu0
        %v4439 = vadd.f32 0.0, %v4438
        %v4440 = vpop.f32.mrf.mxu0
        %v4441 = vadd.f32 0.0, %v4440
        %4442 = vmatprep.mubr.f32.mxu0 0.0
        %4443 = vmatmul.mubr.f32.gmra.mxu0 %v4200
        %v4444 = vpop.f32.mrf.mxu0
        %v4445 = vadd.f32 0.0, %v4444
        %v4446 = vpop.f32.mrf.mxu0
        %v4447 = vadd.f32 0.0, %v4446
        %4448 = vmatprep.mubr.f32.mxu0 0.0
        %4449 = vmatmul.mubr.f32.gmra.mxu0 %v4217
        %v4450 = vpop.f32.mrf.mxu0
        %v4451 = vadd.f32 0.0, %v4450
        %v4452 = vpop.f32.mrf.mxu0
        %v4453 = vadd.f32 0.0, %v4452
        %4454 = vmatprep.mubr.f32.mxu0 0.0
        %4455 = vmatmul.mubr.f32.gmra.mxu0 %v4234
        %v4456 = vpop.f32.mrf.mxu0
        %v4457 = vadd.f32 0.0, %v4456
        %v4458 = vpop.f32.mrf.mxu0
        %v4459 = vadd.f32 0.0, %v4458
        %4460 = vmatprep.mubr.f32.mxu0 0.0
        %4461 = vmatmul.mubr.f32.gmra.mxu0 %v4251
        %v4462 = vpop.f32.mrf.mxu0
        %v4463 = vadd.f32 0.0, %v4462
        %v4464 = vpop.f32.mrf.mxu0
        %v4465 = vadd.f32 0.0, %v4464
        %4466 = vmatprep.mubr.f32.mxu0 0.0
        %4467 = vmatmul.mubr.f32.gmra.mxu0 %v4268
        %v4468 = vpop.f32.mrf.mxu0
        %v4469 = vadd.f32 0.0, %v4468
        %v4470 = vpop.f32.mrf.mxu0
        %v4471 = vadd.f32 0.0, %v4470
        %4472 = vmatprep.mubr.f32.mxu0 0.0
        %4473 = vmatmul.mubr.f32.gmra.mxu0 %v4285
        %v4474 = vpop.f32.mrf.mxu0
        %v4475 = vadd.f32 0.0, %v4474
        %v4476 = vpop.f32.mrf.mxu0
        %v4477 = vadd.f32 0.0, %v4476
        %4478 = vmatprep.mubr.f32.mxu0 0.0
        %4479 = vmatmul.mubr.f32.gmra.mxu0 %v4302
        %v4480 = vpop.f32.mrf.mxu0
        %v4481 = vadd.f32 0.0, %v4480
        %v4482 = vpop.f32.mrf.mxu0
        %v4483 = vadd.f32 0.0, %v4482
        %4484 = vmatprep.mubr.f32.mxu0 0.0
        %4485 = vmatmul.mubr.f32.gmra.mxu0 %v4319
        %v4486 = vpop.f32.mrf.mxu0
        %v4487 = vadd.f32 0.0, %v4486
        %v4488 = vpop.f32.mrf.mxu0
        %v4489 = vadd.f32 0.0, %v4488
        %4490 = vmatprep.mubr.f32.mxu0 0.0
        %4491 = vmatmul.mubr.f32.gmra.mxu0 %v4336
        %v4492 = vpop.f32.mrf.mxu0
        %v4493 = vadd.f32 0.0, %v4492
        %v4494 = vpop.f32.mrf.mxu0
        %v4495 = vadd.f32 0.0, %v4494
        %4496 = vmatprep.mubr.f32.mxu0 0.0
        %4497 = vmatmul.mubr.f32.gmra.mxu0 %v4353
        %v4498 = vpop.f32.mrf.mxu0
        %v4499 = vadd.f32 0.0, %v4498
        %v4500 = vpop.f32.mrf.mxu0
        %v4501 = vadd.f32 0.0, %v4500
        %4502 = vdwg.mxu0
        %4503 = vmatprep.subr.mxu0 %v4095
        %4504 = vmatpush1.msra.mxu0 %v4094
        %4505 = vmatprep.subr.mxu0 %v4085
        %4506 = vmatpush1.msra.mxu0 %v4084
        %4507 = vmatprep.subr.mxu0 %v4075
        %4508 = vmatpush1.msra.mxu0 %v4074
        %4509 = vmatprep.subr.mxu0 %v4065
        %4510 = vmatpush1.msra.mxu0 %v4064
        %4511 = vmatprep.subr.mxu0 %v4055
        %4512 = vmatpush1.msra.mxu0 %v4054
        %4513 = vmatprep.subr.mxu0 %v4045
        %4514 = vmatpush1.msra.mxu0 %v4044
        %4515 = vmatprep.subr.mxu0 %v4035
        %4516 = vmatpush1.msra.mxu0 %v4034
        %4517 = vmatprep.subr.mxu0 %v4025
        %4518 = vmatpush1.msra.mxu0 %v4024
        %4519 = vmatprep.subr.mxu0 %v4015
        %4520 = vmatpush1.msra.mxu0 %v4014
        %4521 = vmatprep.subr.mxu0 %v4005
        %4522 = vmatpush1.msra.mxu0 %v4004
        %4523 = vmatprep.subr.mxu0 %v3995
        %4524 = vmatpush1.msra.mxu0 %v3994
        %4525 = vmatprep.subr.mxu0 %v3985
        %4526 = vmatpush1.msra.mxu0 %v3984
        %4527 = vmatprep.subr.mxu0 %v3975
        %4528 = vmatpush1.msra.mxu0 %v3974
        %4529 = vmatprep.subr.mxu0 %v3965
        %4530 = vmatpush1.msra.mxu0 %v3964
        %4531 = vmatprep.subr.mxu0 %v3955
        %4532 = vmatpush1.msra.mxu0 %v3954
        %4533 = vmatprep.subr.mxu0 %v3945
        %4534 = vmatpush1.msra.mxu0 %v3944
        %4535 = vmatprep.subr.mxu0 0.0
        %4536 = vmatpush2.msra.mxu0 0.0
        %4537 = vmatprep.subr.mxu0 0.0
        %4538 = vmatpush2.msra.mxu0 0.0
        %4539 = vmatprep.subr.mxu0 0.0
        %4540 = vmatpush2.msra.mxu0 0.0
        %4541 = vmatprep.subr.mxu0 0.0
        %4542 = vmatpush2.msra.mxu0 0.0
        %4543 = vmatprep.subr.mxu0 0.0
        %4544 = vmatpush2.msra.mxu0 0.0
        %4545 = vmatprep.subr.mxu0 0.0
        %4546 = vmatpush2.msra.mxu0 0.0
        %4547 = vmatprep.subr.mxu0 0.0
        %4548 = vmatpush2.msra.mxu0 0.0
        %4549 = vmatprep.subr.mxu0 0.0
        %4550 = vmatpush2.msra.mxu0 0.0
        %4551 = vmatprep.subr.mxu0 0.0
        %4552 = vmatpush2.msra.mxu0 0.0
        %4553 = vmatprep.subr.mxu0 0.0
        %4554 = vmatpush2.msra.mxu0 0.0
        %4555 = vmatprep.subr.mxu0 0.0
        %4556 = vmatpush2.msra.mxu0 0.0
        %4557 = vmatprep.subr.mxu0 0.0
        %4558 = vmatpush2.msra.mxu0 0.0
        %4559 = vmatprep.subr.mxu0 0.0
        %4560 = vmatpush2.msra.mxu0 0.0
        %4561 = vmatprep.subr.mxu0 0.0
        %4562 = vmatpush2.msra.mxu0 0.0
        %4563 = vmatprep.subr.mxu0 0.0
        %4564 = vmatpush2.msra.mxu0 0.0
        %4565 = vmatprep.subr.mxu0 0.0
        %4566 = vmatpush2.msra.mxu0 0.0
        %4567 = vmatprep.mubr.f32.mxu0 0.0
        %4568 = vmatmul.mubr.f32.gmra.mxu0 %v4166
        %v4569 = vpop.f32.mrf.mxu0
        %v4570 = vadd.f32 0.0, %v4569
        %v4571 = vpop.f32.mrf.mxu0
        %v4572 = vadd.f32 0.0, %v4571
        %4573 = vmatprep.mubr.f32.mxu0 0.0
        %4574 = vmatmul.mubr.f32.gmra.mxu0 %v4183
        %v4575 = vpop.f32.mrf.mxu0
        %v4576 = vadd.f32 0.0, %v4575
        %v4577 = vpop.f32.mrf.mxu0
        %v4578 = vadd.f32 0.0, %v4577
        %4579 = vmatprep.mubr.f32.mxu0 0.0
        %4580 = vmatmul.mubr.f32.gmra.mxu0 %v4200
        %v4581 = vpop.f32.mrf.mxu0
        %v4582 = vadd.f32 0.0, %v4581
        %v4583 = vpop.f32.mrf.mxu0
        %v4584 = vadd.f32 0.0, %v4583
        %4585 = vmatprep.mubr.f32.mxu0 0.0
        %4586 = vmatmul.mubr.f32.gmra.mxu0 %v4217
        %v4587 = vpop.f32.mrf.mxu0
        %v4588 = vadd.f32 0.0, %v4587
        %v4589 = vpop.f32.mrf.mxu0
        %v4590 = vadd.f32 0.0, %v4589
        %4591 = vmatprep.mubr.f32.mxu0 0.0
        %4592 = vmatmul.mubr.f32.gmra.mxu0 %v4234
        %v4593 = vpop.f32.mrf.mxu0
        %v4594 = vadd.f32 0.0, %v4593
        %v4595 = vpop.f32.mrf.mxu0
        %v4596 = vadd.f32 0.0, %v4595
        %4597 = vmatprep.mubr.f32.mxu0 0.0
        %4598 = vmatmul.mubr.f32.gmra.mxu0 %v4251
        %v4599 = vpop.f32.mrf.mxu0
        %v4600 = vadd.f32 0.0, %v4599
        %v4601 = vpop.f32.mrf.mxu0
        %v4602 = vadd.f32 0.0, %v4601
        %4603 = vmatprep.mubr.f32.mxu0 0.0
        %4604 = vmatmul.mubr.f32.gmra.mxu0 %v4268
        %v4605 = vpop.f32.mrf.mxu0
        %v4606 = vadd.f32 0.0, %v4605
        %v4607 = vpop.f32.mrf.mxu0
        %v4608 = vadd.f32 0.0, %v4607
        %4609 = vmatprep.mubr.f32.mxu0 0.0
        %4610 = vmatmul.mubr.f32.gmra.mxu0 %v4285
        %v4611 = vpop.f32.mrf.mxu0
        %v4612 = vadd.f32 0.0, %v4611
        %v4613 = vpop.f32.mrf.mxu0
        %v4614 = vadd.f32 0.0, %v4613
        %4615 = vmatprep.mubr.f32.mxu0 0.0
        %4616 = vmatmul.mubr.f32.gmra.mxu0 %v4302
        %v4617 = vpop.f32.mrf.mxu0
        %v4618 = vadd.f32 0.0, %v4617
        %v4619 = vpop.f32.mrf.mxu0
        %v4620 = vadd.f32 0.0, %v4619
        %4621 = vmatprep.mubr.f32.mxu0 0.0
        %4622 = vmatmul.mubr.f32.gmra.mxu0 %v4319
        %v4623 = vpop.f32.mrf.mxu0
        %v4624 = vadd.f32 0.0, %v4623
        %v4625 = vpop.f32.mrf.mxu0
        %v4626 = vadd.f32 0.0, %v4625
        %4627 = vmatprep.mubr.f32.mxu0 0.0
        %4628 = vmatmul.mubr.f32.gmra.mxu0 %v4336
        %v4629 = vpop.f32.mrf.mxu0
        %v4630 = vadd.f32 0.0, %v4629
        %v4631 = vpop.f32.mrf.mxu0
        %v4632 = vadd.f32 0.0, %v4631
        %4633 = vmatprep.mubr.f32.mxu0 0.0
        %4634 = vmatmul.mubr.f32.gmra.mxu0 %v4353
        %v4635 = vpop.f32.mrf.mxu0
        %v4636 = vadd.f32 0.0, %v4635
        %v4637 = vpop.f32.mrf.mxu0
        %v4638 = vadd.f32 0.0, %v4637
        %4639 = vdwg.mxu0
        %4640 = vmatprep.subr.mxu0 %v4097
        %4641 = vmatpush1.msra.mxu0 %v4096
        %4642 = vmatprep.subr.mxu0 %v4087
        %4643 = vmatpush1.msra.mxu0 %v4086
        %4644 = vmatprep.subr.mxu0 %v4077
        %4645 = vmatpush1.msra.mxu0 %v4076
        %4646 = vmatprep.subr.mxu0 %v4067
        %4647 = vmatpush1.msra.mxu0 %v4066
        %4648 = vmatprep.subr.mxu0 %v4057
        %4649 = vmatpush1.msra.mxu0 %v4056
        %4650 = vmatprep.subr.mxu0 %v4047
        %4651 = vmatpush1.msra.mxu0 %v4046
        %4652 = vmatprep.subr.mxu0 %v4037
        %4653 = vmatpush1.msra.mxu0 %v4036
        %4654 = vmatprep.subr.mxu0 %v4027
        %4655 = vmatpush1.msra.mxu0 %v4026
        %4656 = vmatprep.subr.mxu0 %v4017
        %4657 = vmatpush1.msra.mxu0 %v4016
        %4658 = vmatprep.subr.mxu0 %v4007
        %4659 = vmatpush1.msra.mxu0 %v4006
        %4660 = vmatprep.subr.mxu0 %v3997
        %4661 = vmatpush1.msra.mxu0 %v3996
        %4662 = vmatprep.subr.mxu0 %v3987
        %4663 = vmatpush1.msra.mxu0 %v3986
        %4664 = vmatprep.subr.mxu0 %v3977
        %4665 = vmatpush1.msra.mxu0 %v3976
        %4666 = vmatprep.subr.mxu0 %v3967
        %4667 = vmatpush1.msra.mxu0 %v3966
        %4668 = vmatprep.subr.mxu0 %v3957
        %4669 = vmatpush1.msra.mxu0 %v3956
        %4670 = vmatprep.subr.mxu0 %v3947
        %4671 = vmatpush1.msra.mxu0 %v3946
        %4672 = vmatprep.subr.mxu0 0.0
        %4673 = vmatpush2.msra.mxu0 0.0
        %4674 = vmatprep.subr.mxu0 0.0
        %4675 = vmatpush2.msra.mxu0 0.0
        %4676 = vmatprep.subr.mxu0 0.0
        %4677 = vmatpush2.msra.mxu0 0.0
        %4678 = vmatprep.subr.mxu0 0.0
        %4679 = vmatpush2.msra.mxu0 0.0
        %4680 = vmatprep.subr.mxu0 0.0
        %4681 = vmatpush2.msra.mxu0 0.0
        %4682 = vmatprep.subr.mxu0 0.0
        %4683 = vmatpush2.msra.mxu0 0.0
        %4684 = vmatprep.subr.mxu0 0.0
        %4685 = vmatpush2.msra.mxu0 0.0
        %4686 = vmatprep.subr.mxu0 0.0
        %4687 = vmatpush2.msra.mxu0 0.0
        %4688 = vmatprep.subr.mxu0 0.0
        %4689 = vmatpush2.msra.mxu0 0.0
        %4690 = vmatprep.subr.mxu0 0.0
        %4691 = vmatpush2.msra.mxu0 0.0
        %4692 = vmatprep.subr.mxu0 0.0
        %4693 = vmatpush2.msra.mxu0 0.0
        %4694 = vmatprep.subr.mxu0 0.0
        %4695 = vmatpush2.msra.mxu0 0.0
        %4696 = vmatprep.subr.mxu0 0.0
        %4697 = vmatpush2.msra.mxu0 0.0
        %4698 = vmatprep.subr.mxu0 0.0
        %4699 = vmatpush2.msra.mxu0 0.0
        %4700 = vmatprep.subr.mxu0 0.0
        %4701 = vmatpush2.msra.mxu0 0.0
        %4702 = vmatprep.subr.mxu0 0.0
        %4703 = vmatpush2.msra.mxu0 0.0
        %4704 = vmatprep.mubr.f32.mxu0 0.0
        %4705 = vmatmul.mubr.f32.gmra.mxu0 %v4166
        %v4706 = vpop.f32.mrf.mxu0
        %v4707 = vadd.f32 0.0, %v4706
        %v4708 = vpop.f32.mrf.mxu0
        %v4709 = vadd.f32 0.0, %v4708
        %4710 = vmatprep.mubr.f32.mxu0 0.0
        %4711 = vmatmul.mubr.f32.gmra.mxu0 %v4183
        %v4712 = vpop.f32.mrf.mxu0
        %v4713 = vadd.f32 0.0, %v4712
        %v4714 = vpop.f32.mrf.mxu0
        %v4715 = vadd.f32 0.0, %v4714
        %4716 = vmatprep.mubr.f32.mxu0 0.0
        %4717 = vmatmul.mubr.f32.gmra.mxu0 %v4200
        %v4718 = vpop.f32.mrf.mxu0
        %v4719 = vadd.f32 0.0, %v4718
        %v4720 = vpop.f32.mrf.mxu0
        %v4721 = vadd.f32 0.0, %v4720
        %4722 = vmatprep.mubr.f32.mxu0 0.0
        %4723 = vmatmul.mubr.f32.gmra.mxu0 %v4217
        %v4724 = vpop.f32.mrf.mxu0
        %v4725 = vadd.f32 0.0, %v4724
        %v4726 = vpop.f32.mrf.mxu0
        %v4727 = vadd.f32 0.0, %v4726
        %4728 = vmatprep.mubr.f32.mxu0 0.0
        %4729 = vmatmul.mubr.f32.gmra.mxu0 %v4234
        %v4730 = vpop.f32.mrf.mxu0
        %v4731 = vadd.f32 0.0, %v4730
        %v4732 = vpop.f32.mrf.mxu0
        %v4733 = vadd.f32 0.0, %v4732
        %4734 = vmatprep.mubr.f32.mxu0 0.0
        %4735 = vmatmul.mubr.f32.gmra.mxu0 %v4251
        %v4736 = vpop.f32.mrf.mxu0
        %v4737 = vadd.f32 0.0, %v4736
        %v4738 = vpop.f32.mrf.mxu0
        %v4739 = vadd.f32 0.0, %v4738
        %4740 = vmatprep.mubr.f32.mxu0 0.0
        %4741 = vmatmul.mubr.f32.gmra.mxu0 %v4268
        %v4742 = vpop.f32.mrf.mxu0
        %v4743 = vadd.f32 0.0, %v4742
        %v4744 = vpop.f32.mrf.mxu0
        %v4745 = vadd.f32 0.0, %v4744
        %4746 = vmatprep.mubr.f32.mxu0 0.0
        %4747 = vmatmul.mubr.f32.gmra.mxu0 %v4285
        %v4748 = vpop.f32.mrf.mxu0
        %v4749 = vadd.f32 0.0, %v4748
        %v4750 = vpop.f32.mrf.mxu0
        %v4751 = vadd.f32 0.0, %v4750
        %4752 = vmatprep.mubr.f32.mxu0 0.0
        %4753 = vmatmul.mubr.f32.gmra.mxu0 %v4302
        %v4754 = vpop.f32.mrf.mxu0
        %v4755 = vadd.f32 0.0, %v4754
        %v4756 = vpop.f32.mrf.mxu0
        %v4757 = vadd.f32 0.0, %v4756
        %4758 = vmatprep.mubr.f32.mxu0 0.0
        %4759 = vmatmul.mubr.f32.gmra.mxu0 %v4319
        %v4760 = vpop.f32.mrf.mxu0
        %v4761 = vadd.f32 0.0, %v4760
        %v4762 = vpop.f32.mrf.mxu0
        %v4763 = vadd.f32 0.0, %v4762
        %4764 = vmatprep.mubr.f32.mxu0 0.0
        %4765 = vmatmul.mubr.f32.gmra.mxu0 %v4336
        %v4766 = vpop.f32.mrf.mxu0
        %v4767 = vadd.f32 0.0, %v4766
        %v4768 = vpop.f32.mrf.mxu0
        %v4769 = vadd.f32 0.0, %v4768
        %4770 = vmatprep.mubr.f32.mxu0 0.0
        %4771 = vmatmul.mubr.f32.gmra.mxu0 %v4353
        %v4772 = vpop.f32.mrf.mxu0
        %v4773 = vadd.f32 0.0, %v4772
        %v4774 = vpop.f32.mrf.mxu0
        %v4775 = vadd.f32 0.0, %v4774
        %4776 = vdwg.mxu0
        %4777 = vmatprep.subr.mxu0 %v4099
        %4778 = vmatpush1.msra.mxu0 %v4098
        %4779 = vmatprep.subr.mxu0 %v4089
        %4780 = vmatpush1.msra.mxu0 %v4088
        %4781 = vmatprep.subr.mxu0 %v4079
        %4782 = vmatpush1.msra.mxu0 %v4078
        %4783 = vmatprep.subr.mxu0 %v4069
        %4784 = vmatpush1.msra.mxu0 %v4068
        %4785 = vmatprep.subr.mxu0 %v4059
        %4786 = vmatpush1.msra.mxu0 %v4058
        %4787 = vmatprep.subr.mxu0 %v4049
        %4788 = vmatpush1.msra.mxu0 %v4048
        %4789 = vmatprep.subr.mxu0 %v4039
        %4790 = vmatpush1.msra.mxu0 %v4038
        %4791 = vmatprep.subr.mxu0 %v4029
        %4792 = vmatpush1.msra.mxu0 %v4028
        %4793 = vmatprep.subr.mxu0 %v4019
        %4794 = vmatpush1.msra.mxu0 %v4018
        %4795 = vmatprep.subr.mxu0 %v4009
        %4796 = vmatpush1.msra.mxu0 %v4008
        %4797 = vmatprep.subr.mxu0 %v3999
        %4798 = vmatpush1.msra.mxu0 %v3998
        %4799 = vmatprep.subr.mxu0 %v3989
        %4800 = vmatpush1.msra.mxu0 %v3988
        %4801 = vmatprep.subr.mxu0 %v3979
        %4802 = vmatpush1.msra.mxu0 %v3978
        %4803 = vmatprep.subr.mxu0 %v3969
        %4804 = vmatpush1.msra.mxu0 %v3968
        %4805 = vmatprep.subr.mxu0 %v3959
        %4806 = vmatpush1.msra.mxu0 %v3958
        %4807 = vmatprep.subr.mxu0 %v3949
        %4808 = vmatpush1.msra.mxu0 %v3948
        %4809 = vmatprep.subr.mxu0 0.0
        %4810 = vmatpush2.msra.mxu0 0.0
        %4811 = vmatprep.subr.mxu0 0.0
        %4812 = vmatpush2.msra.mxu0 0.0
        %4813 = vmatprep.subr.mxu0 0.0
        %4814 = vmatpush2.msra.mxu0 0.0
        %4815 = vmatprep.subr.mxu0 0.0
        %4816 = vmatpush2.msra.mxu0 0.0
        %4817 = vmatprep.subr.mxu0 0.0
        %4818 = vmatpush2.msra.mxu0 0.0
        %4819 = vmatprep.subr.mxu0 0.0
        %4820 = vmatpush2.msra.mxu0 0.0
        %4821 = vmatprep.subr.mxu0 0.0
        %4822 = vmatpush2.msra.mxu0 0.0
        %4823 = vmatprep.subr.mxu0 0.0
        %4824 = vmatpush2.msra.mxu0 0.0
        %4825 = vmatprep.subr.mxu0 0.0
        %4826 = vmatpush2.msra.mxu0 0.0
        %4827 = vmatprep.subr.mxu0 0.0
        %4828 = vmatpush2.msra.mxu0 0.0
        %4829 = vmatprep.subr.mxu0 0.0
        %4830 = vmatpush2.msra.mxu0 0.0
        %4831 = vmatprep.subr.mxu0 0.0
        %4832 = vmatpush2.msra.mxu0 0.0
        %4833 = vmatprep.subr.mxu0 0.0
        %4834 = vmatpush2.msra.mxu0 0.0
        %4835 = vmatprep.subr.mxu0 0.0
        %4836 = vmatpush2.msra.mxu0 0.0
        %4837 = vmatprep.subr.mxu0 0.0
        %4838 = vmatpush2.msra.mxu0 0.0
        %4839 = vmatprep.subr.mxu0 0.0
        %4840 = vmatpush2.msra.mxu0 0.0
        %4841 = vmatprep.mubr.f32.mxu0 0.0
        %4842 = vmatmul.mubr.f32.gmra.mxu0 %v4166
        %v4843 = vpop.f32.mrf.mxu0
        %v4844 = vadd.f32 0.0, %v4843
        %v4845 = vpop.f32.mrf.mxu0
        %v4846 = vadd.f32 0.0, %v4845
        %4847 = vmatprep.mubr.f32.mxu0 0.0
        %4848 = vmatmul.mubr.f32.gmra.mxu0 %v4183
        %v4849 = vpop.f32.mrf.mxu0
        %v4850 = vadd.f32 0.0, %v4849
        %v4851 = vpop.f32.mrf.mxu0
        %v4852 = vadd.f32 0.0, %v4851
        %4853 = vmatprep.mubr.f32.mxu0 0.0
        %4854 = vmatmul.mubr.f32.gmra.mxu0 %v4200
        %v4855 = vpop.f32.mrf.mxu0
        %v4856 = vadd.f32 0.0, %v4855
        %v4857 = vpop.f32.mrf.mxu0
        %v4858 = vadd.f32 0.0, %v4857
        %4859 = vmatprep.mubr.f32.mxu0 0.0
        %4860 = vmatmul.mubr.f32.gmra.mxu0 %v4217
        %v4861 = vpop.f32.mrf.mxu0
        %v4862 = vadd.f32 0.0, %v4861
        %v4863 = vpop.f32.mrf.mxu0
        %v4864 = vadd.f32 0.0, %v4863
        %4865 = vmatprep.mubr.f32.mxu0 0.0
        %4866 = vmatmul.mubr.f32.gmra.mxu0 %v4234
        %v4867 = vpop.f32.mrf.mxu0
        %v4868 = vadd.f32 0.0, %v4867
        %v4869 = vpop.f32.mrf.mxu0
        %v4870 = vadd.f32 0.0, %v4869
        %4871 = vmatprep.mubr.f32.mxu0 0.0
        %4872 = vmatmul.mubr.f32.gmra.mxu0 %v4251
        %v4873 = vpop.f32.mrf.mxu0
        %v4874 = vadd.f32 0.0, %v4873
        %v4875 = vpop.f32.mrf.mxu0
        %v4876 = vadd.f32 0.0, %v4875
        %4877 = vmatprep.mubr.f32.mxu0 0.0
        %4878 = vmatmul.mubr.f32.gmra.mxu0 %v4268
        %v4879 = vpop.f32.mrf.mxu0
        %v4880 = vadd.f32 0.0, %v4879
        %v4881 = vpop.f32.mrf.mxu0
        %v4882 = vadd.f32 0.0, %v4881
        %4883 = vmatprep.mubr.f32.mxu0 0.0
        %4884 = vmatmul.mubr.f32.gmra.mxu0 %v4285
        %v4885 = vpop.f32.mrf.mxu0
        %v4886 = vadd.f32 0.0, %v4885
        %v4887 = vpop.f32.mrf.mxu0
        %v4888 = vadd.f32 0.0, %v4887
        %4889 = vmatprep.mubr.f32.mxu0 0.0
        %4890 = vmatmul.mubr.f32.gmra.mxu0 %v4302
        %v4891 = vpop.f32.mrf.mxu0
        %v4892 = vadd.f32 0.0, %v4891
        %v4893 = vpop.f32.mrf.mxu0
        %v4894 = vadd.f32 0.0, %v4893
        %4895 = vmatprep.mubr.f32.mxu0 0.0
        %4896 = vmatmul.mubr.f32.gmra.mxu0 %v4319
        %v4897 = vpop.f32.mrf.mxu0
        %v4898 = vadd.f32 0.0, %v4897
        %v4899 = vpop.f32.mrf.mxu0
        %v4900 = vadd.f32 0.0, %v4899
        %4901 = vmatprep.mubr.f32.mxu0 0.0
        %4902 = vmatmul.mubr.f32.gmra.mxu0 %v4336
        %v4903 = vpop.f32.mrf.mxu0
        %v4904 = vadd.f32 0.0, %v4903
        %v4905 = vpop.f32.mrf.mxu0
        %v4906 = vadd.f32 0.0, %v4905
        %4907 = vmatprep.mubr.f32.mxu0 0.0
        %4908 = vmatmul.mubr.f32.gmra.mxu0 %v4353
        %v4909 = vpop.f32.mrf.mxu0
        %v4910 = vadd.f32 0.0, %v4909
        %v4911 = vpop.f32.mrf.mxu0
        %v4912 = vadd.f32 0.0, %v4911
        %4913 = vdwg.mxu0
        %4914 = vmatprep.subr.mxu0 %v4101
        %4915 = vmatpush1.msra.mxu0 %v4100
        %4916 = vmatprep.subr.mxu0 %v4091
        %4917 = vmatpush1.msra.mxu0 %v4090
        %4918 = vmatprep.subr.mxu0 %v4081
        %4919 = vmatpush1.msra.mxu0 %v4080
        %4920 = vmatprep.subr.mxu0 %v4071
        %4921 = vmatpush1.msra.mxu0 %v4070
        %4922 = vmatprep.subr.mxu0 %v4061
        %4923 = vmatpush1.msra.mxu0 %v4060
        %4924 = vmatprep.subr.mxu0 %v4051
        %4925 = vmatpush1.msra.mxu0 %v4050
        %4926 = vmatprep.subr.mxu0 %v4041
        %4927 = vmatpush1.msra.mxu0 %v4040
        %4928 = vmatprep.subr.mxu0 %v4031
        %4929 = vmatpush1.msra.mxu0 %v4030
        %4930 = vmatprep.subr.mxu0 %v4021
        %4931 = vmatpush1.msra.mxu0 %v4020
        %4932 = vmatprep.subr.mxu0 %v4011
        %4933 = vmatpush1.msra.mxu0 %v4010
        %4934 = vmatprep.subr.mxu0 %v4001
        %4935 = vmatpush1.msra.mxu0 %v4000
        %4936 = vmatprep.subr.mxu0 %v3991
        %4937 = vmatpush1.msra.mxu0 %v3990
        %4938 = vmatprep.subr.mxu0 %v3981
        %4939 = vmatpush1.msra.mxu0 %v3980
        %4940 = vmatprep.subr.mxu0 %v3971
        %4941 = vmatpush1.msra.mxu0 %v3970
        %4942 = vmatprep.subr.mxu0 %v3961
        %4943 = vmatpush1.msra.mxu0 %v3960
        %4944 = vmatprep.subr.mxu0 %v3951
        %4945 = vmatpush1.msra.mxu0 %v3950
        %4946 = vmatprep.subr.mxu0 0.0
        %4947 = vmatpush2.msra.mxu0 0.0
        %4948 = vmatprep.subr.mxu0 0.0
        %4949 = vmatpush2.msra.mxu0 0.0
        %4950 = vmatprep.subr.mxu0 0.0
        %4951 = vmatpush2.msra.mxu0 0.0
        %4952 = vmatprep.subr.mxu0 0.0
        %4953 = vmatpush2.msra.mxu0 0.0
        %4954 = vmatprep.subr.mxu0 0.0
        %4955 = vmatpush2.msra.mxu0 0.0
        %4956 = vmatprep.subr.mxu0 0.0
        %4957 = vmatpush2.msra.mxu0 0.0
        %4958 = vmatprep.subr.mxu0 0.0
        %4959 = vmatpush2.msra.mxu0 0.0
        %4960 = vmatprep.subr.mxu0 0.0
        %4961 = vmatpush2.msra.mxu0 0.0
        %4962 = vmatprep.subr.mxu0 0.0
        %4963 = vmatpush2.msra.mxu0 0.0
        %4964 = vmatprep.subr.mxu0 0.0
        %4965 = vmatpush2.msra.mxu0 0.0
        %4966 = vmatprep.subr.mxu0 0.0
        %4967 = vmatpush2.msra.mxu0 0.0
        %4968 = vmatprep.subr.mxu0 0.0
        %4969 = vmatpush2.msra.mxu0 0.0
        %4970 = vmatprep.subr.mxu0 0.0
        %4971 = vmatpush2.msra.mxu0 0.0
        %4972 = vmatprep.subr.mxu0 0.0
        %4973 = vmatpush2.msra.mxu0 0.0
        %4974 = vmatprep.subr.mxu0 0.0
        %4975 = vmatpush2.msra.mxu0 0.0
        %4976 = vmatprep.subr.mxu0 0.0
        %4977 = vmatpush2.msra.mxu0 0.0
        %4978 = vmatprep.mubr.f32.mxu0 0.0
        %4979 = vmatmul.mubr.f32.gmra.mxu0 %v4166
        %v4980 = vpop.f32.mrf.mxu0
        %v4981 = vadd.f32 0.0, %v4980
        %v4982 = vpop.f32.mrf.mxu0
        %v4983 = vadd.f32 0.0, %v4982
        %4984 = vmatprep.mubr.f32.mxu0 0.0
        %4985 = vmatmul.mubr.f32.gmra.mxu0 %v4183
        %v4986 = vpop.f32.mrf.mxu0
        %v4987 = vadd.f32 0.0, %v4986
        %v4988 = vpop.f32.mrf.mxu0
        %v4989 = vadd.f32 0.0, %v4988
        %4990 = vmatprep.mubr.f32.mxu0 0.0
        %4991 = vmatmul.mubr.f32.gmra.mxu0 %v4200
        %v4992 = vpop.f32.mrf.mxu0
        %v4993 = vadd.f32 0.0, %v4992
        %v4994 = vpop.f32.mrf.mxu0
        %v4995 = vadd.f32 0.0, %v4994
        %4996 = vmatprep.mubr.f32.mxu0 0.0
        %4997 = vmatmul.mubr.f32.gmra.mxu0 %v4217
        %v4998 = vpop.f32.mrf.mxu0
        %v4999 = vadd.f32 0.0, %v4998
        %v5000 = vpop.f32.mrf.mxu0
        %v5001 = vadd.f32 0.0, %v5000
        %5002 = vmatprep.mubr.f32.mxu0 0.0
        %5003 = vmatmul.mubr.f32.gmra.mxu0 %v4234
        %v5004 = vpop.f32.mrf.mxu0
        %v5005 = vadd.f32 0.0, %v5004
        %v5006 = vpop.f32.mrf.mxu0
        %v5007 = vadd.f32 0.0, %v5006
        %5008 = vmatprep.mubr.f32.mxu0 0.0
        %5009 = vmatmul.mubr.f32.gmra.mxu0 %v4251
        %v5010 = vpop.f32.mrf.mxu0
        %v5011 = vadd.f32 0.0, %v5010
        %v5012 = vpop.f32.mrf.mxu0
        %v5013 = vadd.f32 0.0, %v5012
        %5014 = vmatprep.mubr.f32.mxu0 0.0
        %5015 = vmatmul.mubr.f32.gmra.mxu0 %v4268
        %v5016 = vpop.f32.mrf.mxu0
        %v5017 = vadd.f32 0.0, %v5016
        %v5018 = vpop.f32.mrf.mxu0
        %v5019 = vadd.f32 0.0, %v5018
        %5020 = vmatprep.mubr.f32.mxu0 0.0
        %5021 = vmatmul.mubr.f32.gmra.mxu0 %v4285
        %v5022 = vpop.f32.mrf.mxu0
        %v5023 = vadd.f32 0.0, %v5022
        %v5024 = vpop.f32.mrf.mxu0
        %v5025 = vadd.f32 0.0, %v5024
        %5026 = vmatprep.mubr.f32.mxu0 0.0
        %5027 = vmatmul.mubr.f32.gmra.mxu0 %v4302
        %v5028 = vpop.f32.mrf.mxu0
        %v5029 = vadd.f32 0.0, %v5028
        %v5030 = vpop.f32.mrf.mxu0
        %v5031 = vadd.f32 0.0, %v5030
        %5032 = vmatprep.mubr.f32.mxu0 0.0
        %5033 = vmatmul.mubr.f32.gmra.mxu0 %v4319
        %v5034 = vpop.f32.mrf.mxu0
        %v5035 = vadd.f32 0.0, %v5034
        %v5036 = vpop.f32.mrf.mxu0
        %v5037 = vadd.f32 0.0, %v5036
        %5038 = vmatprep.mubr.f32.mxu0 0.0
        %5039 = vmatmul.mubr.f32.gmra.mxu0 %v4336
        %v5040 = vpop.f32.mrf.mxu0
        %v5041 = vadd.f32 0.0, %v5040
        %v5042 = vpop.f32.mrf.mxu0
        %v5043 = vadd.f32 0.0, %v5042
        %5044 = vmatprep.mubr.f32.mxu0 0.0
        %5045 = vmatmul.mubr.f32.gmra.mxu0 %v4353
        %v5046 = vpop.f32.mrf.mxu0
        %v5047 = vadd.f32 0.0, %v5046
        %v5048 = vpop.f32.mrf.mxu0
        %v5049 = vadd.f32 0.0, %v5048
        %5050 = vdwg.mxu0
        %v5171 = vcombine.low %v4433, %v4435
        %v5172 = vcombine.high %v4433, %v4435
        %v5173 = vcombine.low %v4570, %v4572
        %v5174 = vcombine.high %v4570, %v4572
        %v5175 = vcombine.low %v4707, %v4709
        %v5176 = vcombine.high %v4707, %v4709
        %v5177 = vcombine.low %v4844, %v4846
        %v5178 = vcombine.high %v4844, %v4846
        %v5179 = vcombine.high %v4981, %v4983
        %v5180 = vcombine.high %v4439, %v4441
        %v5181 = vcombine.low %v4576, %v4578
        %v5182 = vcombine.high %v4576, %v4578
        %v5183 = vcombine.low %v4713, %v4715
        %v5184 = vcombine.high %v4713, %v4715
        %v5185 = vcombine.low %v4850, %v4852
        %v5186 = vcombine.high %v4850, %v4852
        %v5187 = vcombine.low %v4987, %v4989
        %v5188 = vcombine.low %v4445, %v4447
        %v5189 = vcombine.low %v4582, %v4584
        %v5190 = vcombine.high %v4582, %v4584
        %v5191 = vcombine.low %v4719, %v4721
        %v5192 = vcombine.high %v4719, %v4721
        %v5193 = vcombine.low %v4856, %v4858
        %v5194 = vcombine.high %v4856, %v4858
        %v5195 = vcombine.low %v4993, %v4995
        %v5196 = vcombine.high %v4993, %v4995
        %v5197 = vcombine.low %v4451, %v4453
        %v5198 = vcombine.high %v4451, %v4453
        %v5199 = vcombine.low %v4588, %v4590
        %v5200 = vcombine.high %v4588, %v4590
        %v5201 = vcombine.low %v4725, %v4727
        %v5202 = vcombine.high %v4725, %v4727
        %v5203 = vcombine.low %v4862, %v4864
        %v5204 = vcombine.high %v4862, %v4864
        %v5205 = vcombine.high %v4999, %v5001
        %v5206 = vcombine.high %v4457, %v4459
        %v5207 = vcombine.low %v4594, %v4596
        %v5208 = vcombine.high %v4594, %v4596
        %v5209 = vcombine.low %v4731, %v4733
        %v5210 = vcombine.high %v4731, %v4733
        %v5211 = vcombine.low %v4868, %v4870
        %v5212 = vcombine.high %v4868, %v4870
        %v5213 = vcombine.low %v5005, %v5007
        %v5214 = vcombine.low %v4463, %v4465
        %v5215 = vcombine.low %v4600, %v4602
        %v5216 = vcombine.high %v4600, %v4602
        %v5217 = vcombine.low %v4737, %v4739
        %v5218 = vcombine.high %v4737, %v4739
        %v5219 = vcombine.low %v4874, %v4876
        %v5220 = vcombine.high %v4874, %v4876
        %v5221 = vcombine.low %v5011, %v5013
        %v5222 = vcombine.high %v5011, %v5013
        %v5223 = vcombine.low %v4469, %v4471
        %v5224 = vcombine.high %v4469, %v4471
        %v5225 = vcombine.low %v4606, %v4608
        %v5226 = vcombine.high %v4606, %v4608
        %v5227 = vcombine.low %v4743, %v4745
        %v5228 = vcombine.high %v4743, %v4745
        %v5229 = vcombine.low %v4880, %v4882
        %v5230 = vcombine.high %v4880, %v4882
        %v5231 = vcombine.high %v5017, %v5019
        %v5232 = vcombine.high %v4475, %v4477
        %v5233 = vcombine.low %v4612, %v4614
        %v5234 = vcombine.high %v4612, %v4614
        %v5235 = vcombine.low %v4749, %v4751
        %v5236 = vcombine.high %v4749, %v4751
        %v5237 = vcombine.low %v4886, %v4888
        %v5238 = vcombine.high %v4886, %v4888
        %v5239 = vcombine.low %v5023, %v5025
        %v5240 = vcombine.low %v4481, %v4483
        %v5241 = vcombine.low %v4618, %v4620
        %v5242 = vcombine.high %v4618, %v4620
        %v5243 = vcombine.low %v4755, %v4757
        %v5244 = vcombine.high %v4755, %v4757
        %v5245 = vcombine.low %v4892, %v4894
        %v5246 = vcombine.high %v4892, %v4894
        %v5247 = vcombine.low %v5029, %v5031
        %v5248 = vcombine.high %v5029, %v5031
        %v5249 = vcombine.low %v4487, %v4489
        %v5250 = vcombine.high %v4487, %v4489
        %v5251 = vcombine.low %v4624, %v4626
        %v5252 = vcombine.high %v4624, %v4626
        %v5253 = vcombine.low %v4761, %v4763
        %v5254 = vcombine.high %v4761, %v4763
        %v5255 = vcombine.low %v4898, %v4900
        %v5256 = vcombine.high %v4898, %v4900
        %v5257 = vcombine.high %v5035, %v5037
        %v5258 = vcombine.high %v4493, %v4495
        %v5259 = vcombine.low %v4630, %v4632
        %v5260 = vcombine.high %v4630, %v4632
        %v5261 = vcombine.low %v4767, %v4769
        %v5262 = vcombine.high %v4767, %v4769
        %v5263 = vcombine.low %v4904, %v4906
        %v5264 = vcombine.high %v4904, %v4906
        %v5265 = vcombine.low %v5041, %v5043
        %v5266 = vcombine.low %v4499, %v4501
        %v5267 = vcombine.low %v4636, %v4638
        %v5268 = vcombine.high %v4636, %v4638
        %v5269 = vcombine.low %v4773, %v4775
        %v5270 = vcombine.high %v4773, %v4775
        %v5271 = vcombine.low %v4910, %v4912
        %v5272 = vcombine.high %v4910, %v4912
        %v5273 = vcombine.low %v5047, %v5049
        %v5274 = vcombine.high %v5047, %v5049
        %v5307 = vrot.slane %v5173, 5
        %v5308 = vrot.slane %v5307, 4
        %v5309 = vrot.slane %v5174, 5
        %v5310 = vsel %vm2300, %v5308, %v5309
        %v5311 = vrot.slane %v5309, 4
        %v5312 = vrot.slane %v5181, 5
        %v5313 = vsel %vm2300, %v5311, %v5312
        %v5314 = vrot.slane %v5182, 5
        %v5315 = vrot.slane %v5314, 4
        %v5316 = vrot.slane %v5189, 5
        %v5317 = vsel %vm2300, %v5315, %v5316
        %v5318 = vrot.slane %v5316, 4
        %v5319 = vrot.slane %v5190, 5
        %v5320 = vsel %vm2300, %v5318, %v5319
        %v5321 = vrot.slane %v5199, 5
        %v5322 = vrot.slane %v5321, 4
        %v5323 = vrot.slane %v5200, 5
        %v5324 = vsel %vm2300, %v5322, %v5323
        %v5325 = vrot.slane %v5323, 4
        %v5326 = vrot.slane %v5207, 5
        %v5327 = vsel %vm2300, %v5325, %v5326
        %v5328 = vrot.slane %v5208, 5
        %v5329 = vrot.slane %v5328, 4
        %v5330 = vrot.slane %v5215, 5
        %v5331 = vsel %vm2300, %v5329, %v5330
        %v5332 = vrot.slane %v5330, 4
        %v5333 = vrot.slane %v5216, 5
        %v5334 = vsel %vm2300, %v5332, %v5333
        %v5335 = vrot.slane %v5225, 5
        %v5336 = vrot.slane %v5335, 4
        %v5337 = vrot.slane %v5226, 5
        %v5338 = vsel %vm2300, %v5336, %v5337
        %v5339 = vrot.slane %v5337, 4
        %v5340 = vrot.slane %v5233, 5
        %v5341 = vsel %vm2300, %v5339, %v5340
        %v5342 = vrot.slane %v5234, 5
        %v5343 = vrot.slane %v5342, 4
        %v5344 = vrot.slane %v5241, 5
        %v5345 = vsel %vm2300, %v5343, %v5344
        %v5346 = vrot.slane %v5344, 4
        %v5347 = vrot.slane %v5242, 5
        %v5348 = vsel %vm2300, %v5346, %v5347
        %v5349 = vrot.slane %v5251, 5
        %v5350 = vrot.slane %v5349, 4
        %v5351 = vrot.slane %v5252, 5
        %v5352 = vsel %vm2300, %v5350, %v5351
        %v5353 = vrot.slane %v5351, 4
        %v5354 = vrot.slane %v5259, 5
        %v5355 = vsel %vm2300, %v5353, %v5354
        %v5356 = vrot.slane %v5260, 5
        %v5357 = vrot.slane %v5356, 4
        %v5358 = vrot.slane %v5267, 5
        %v5359 = vsel %vm2300, %v5357, %v5358
        %v5360 = vrot.slane %v5358, 4
        %v5361 = vrot.slane %v5268, 5
        %v5362 = vsel %vm2300, %v5360, %v5361
        %v5379 = vadd.f32 %v5171, %v5310
        %v5380 = vadd.f32 %v5172, %v5313
        %v5381 = vadd.f32 %v5180, %v5317
        %v5382 = vadd.f32 %v5188, %v5320
        %v5383 = vadd.f32 %v5197, %v5324
        %v5384 = vadd.f32 %v5198, %v5327
        %v5385 = vadd.f32 %v5206, %v5331
        %v5386 = vadd.f32 %v5214, %v5334
        %v5387 = vadd.f32 %v5223, %v5338
        %v5388 = vadd.f32 %v5224, %v5341
        %v5389 = vadd.f32 %v5232, %v5345
        %v5390 = vadd.f32 %v5240, %v5348
        %v5391 = vadd.f32 %v5249, %v5352
        %v5392 = vadd.f32 %v5250, %v5355
        %v5393 = vadd.f32 %v5258, %v5359
        %v5394 = vadd.f32 %v5266, %v5362
        %v5395 = vrot.slane %v5175, 6
        %v5396 = vrot.slane %v5395, 4
        %v5397 = vrot.slane %v5176, 6
        %v5398 = vsel %vm2551, %v5396, %v5397
        %v5399 = vrot.slane %v5397, 4
        %v5400 = vrot.slane %v5183, 6
        %v5401 = vsel %vm2551, %v5399, %v5400
        %v5402 = vrot.slane %v5184, 6
        %v5403 = vrot.slane %v5402, 4
        %v5404 = vrot.slane %v5191, 6
        %v5405 = vsel %vm2551, %v5403, %v5404
        %v5406 = vrot.slane %v5404, 4
        %v5407 = vrot.slane %v5192, 6
        %v5408 = vsel %vm2551, %v5406, %v5407
        %v5409 = vrot.slane %v5201, 6
        %v5410 = vrot.slane %v5409, 4
        %v5411 = vrot.slane %v5202, 6
        %v5412 = vsel %vm2551, %v5410, %v5411
        %v5413 = vrot.slane %v5411, 4
        %v5414 = vrot.slane %v5209, 6
        %v5415 = vsel %vm2551, %v5413, %v5414
        %v5416 = vrot.slane %v5210, 6
        %v5417 = vrot.slane %v5416, 4
        %v5418 = vrot.slane %v5217, 6
        %v5419 = vsel %vm2551, %v5417, %v5418
        %v5420 = vrot.slane %v5418, 4
        %v5421 = vrot.slane %v5218, 6
        %v5422 = vsel %vm2551, %v5420, %v5421
        %v5423 = vrot.slane %v5227, 6
        %v5424 = vrot.slane %v5423, 4
        %v5425 = vrot.slane %v5228, 6
        %v5426 = vsel %vm2551, %v5424, %v5425
        %v5427 = vrot.slane %v5425, 4
        %v5428 = vrot.slane %v5235, 6
        %v5429 = vsel %vm2551, %v5427, %v5428
        %v5430 = vrot.slane %v5236, 6
        %v5431 = vrot.slane %v5430, 4
        %v5432 = vrot.slane %v5243, 6
        %v5433 = vsel %vm2551, %v5431, %v5432
        %v5434 = vrot.slane %v5432, 4
        %v5435 = vrot.slane %v5244, 6
        %v5436 = vsel %vm2551, %v5434, %v5435
        %v5437 = vrot.slane %v5253, 6
        %v5438 = vrot.slane %v5437, 4
        %v5439 = vrot.slane %v5254, 6
        %v5440 = vsel %vm2551, %v5438, %v5439
        %v5441 = vrot.slane %v5439, 4
        %v5442 = vrot.slane %v5261, 6
        %v5443 = vsel %vm2551, %v5441, %v5442
        %v5444 = vrot.slane %v5262, 6
        %v5445 = vrot.slane %v5444, 4
        %v5446 = vrot.slane %v5269, 6
        %v5447 = vsel %vm2551, %v5445, %v5446
        %v5448 = vrot.slane %v5446, 4
        %v5449 = vrot.slane %v5270, 6
        %v5450 = vsel %vm2551, %v5448, %v5449
        %v5467 = vadd.f32 %v5379, %v5398
        %v5468 = vadd.f32 %v5380, %v5401
        %v5469 = vadd.f32 %v5381, %v5405
        %v5470 = vadd.f32 %v5382, %v5408
        %v5471 = vadd.f32 %v5383, %v5412
        %v5472 = vadd.f32 %v5384, %v5415
        %v5473 = vadd.f32 %v5385, %v5419
        %v5474 = vadd.f32 %v5386, %v5422
        %v5475 = vadd.f32 %v5387, %v5426
        %v5476 = vadd.f32 %v5388, %v5429
        %v5477 = vadd.f32 %v5389, %v5433
        %v5478 = vadd.f32 %v5390, %v5436
        %v5479 = vadd.f32 %v5391, %v5440
        %v5480 = vadd.f32 %v5392, %v5443
        %v5481 = vadd.f32 %v5393, %v5447
        %v5482 = vadd.f32 %v5394, %v5450
        %v5483 = vrot.slane %v5177, 7
        %v5484 = vrot.slane %v5483, 4
        %v5485 = vrot.slane %v5178, 7
        %v5486 = vsel %vm2802, %v5484, %v5485
        %v5487 = vrot.slane %v5485, 4
        %v5488 = vrot.slane %v5185, 7
        %v5489 = vsel %vm2802, %v5487, %v5488
        %v5490 = vrot.slane %v5186, 7
        %v5491 = vrot.slane %v5490, 4
        %v5492 = vrot.slane %v5193, 7
        %v5493 = vsel %vm2802, %v5491, %v5492
        %v5494 = vrot.slane %v5492, 4
        %v5495 = vrot.slane %v5194, 7
        %v5496 = vsel %vm2802, %v5494, %v5495
        %v5497 = vrot.slane %v5203, 7
        %v5498 = vrot.slane %v5497, 4
        %v5499 = vrot.slane %v5204, 7
        %v5500 = vsel %vm2802, %v5498, %v5499
        %v5501 = vrot.slane %v5499, 4
        %v5502 = vrot.slane %v5211, 7
        %v5503 = vsel %vm2802, %v5501, %v5502
        %v5504 = vrot.slane %v5212, 7
        %v5505 = vrot.slane %v5504, 4
        %v5506 = vrot.slane %v5219, 7
        %v5507 = vsel %vm2802, %v5505, %v5506
        %v5508 = vrot.slane %v5506, 4
        %v5509 = vrot.slane %v5220, 7
        %v5510 = vsel %vm2802, %v5508, %v5509
        %v5511 = vrot.slane %v5229, 7
        %v5512 = vrot.slane %v5511, 4
        %v5513 = vrot.slane %v5230, 7
        %v5514 = vsel %vm2802, %v5512, %v5513
        %v5515 = vrot.slane %v5513, 4
        %v5516 = vrot.slane %v5237, 7
        %v5517 = vsel %vm2802, %v5515, %v5516
        %v5518 = vrot.slane %v5238, 7
        %v5519 = vrot.slane %v5518, 4
        %v5520 = vrot.slane %v5245, 7
        %v5521 = vsel %vm2802, %v5519, %v5520
        %v5522 = vrot.slane %v5520, 4
        %v5523 = vrot.slane %v5246, 7
        %v5524 = vsel %vm2802, %v5522, %v5523
        %v5525 = vrot.slane %v5255, 7
        %v5526 = vrot.slane %v5525, 4
        %v5527 = vrot.slane %v5256, 7
        %v5528 = vsel %vm2802, %v5526, %v5527
        %v5529 = vrot.slane %v5527, 4
        %v5530 = vrot.slane %v5263, 7
        %v5531 = vsel %vm2802, %v5529, %v5530
        %v5532 = vrot.slane %v5264, 7
        %v5533 = vrot.slane %v5532, 4
        %v5534 = vrot.slane %v5271, 7
        %v5535 = vsel %vm2802, %v5533, %v5534
        %v5536 = vrot.slane %v5534, 4
        %v5537 = vrot.slane %v5272, 7
        %v5538 = vsel %vm2802, %v5536, %v5537
        %v5555 = vadd.f32 %v5467, %v5486
        %v5556 = vadd.f32 %v5468, %v5489
        %v5557 = vadd.f32 %v5469, %v5493
        %v5558 = vadd.f32 %v5470, %v5496
        %v5559 = vadd.f32 %v5471, %v5500
        %v5560 = vadd.f32 %v5472, %v5503
        %v5561 = vadd.f32 %v5473, %v5507
        %v5562 = vadd.f32 %v5474, %v5510
        %v5563 = vadd.f32 %v5475, %v5514
        %v5564 = vadd.f32 %v5476, %v5517
        %v5565 = vadd.f32 %v5477, %v5521
        %v5566 = vadd.f32 %v5478, %v5524
        %v5567 = vadd.f32 %v5479, %v5528
        %v5568 = vadd.f32 %v5480, %v5531
        %v5569 = vadd.f32 %v5481, %v5535
        %v5570 = vadd.f32 %v5482, %v5538
        %v5571 = vadd.f32 %v5555, %v5179
        %v5572 = vadd.f32 %v5556, %v5187
        %v5573 = vadd.f32 %v5557, %v5195
        %v5574 = vadd.f32 %v5558, %v5196
        %v5575 = vadd.f32 %v5559, %v5205
        %v5576 = vadd.f32 %v5560, %v5213
        %v5577 = vadd.f32 %v5561, %v5221
        %v5578 = vadd.f32 %v5562, %v5222
        %v5579 = vadd.f32 %v5563, %v5231
        %v5580 = vadd.f32 %v5564, %v5239
        %v5581 = vadd.f32 %v5565, %v5247
        %v5582 = vadd.f32 %v5566, %v5248
        %v5583 = vadd.f32 %v5567, %v5257
        %v5584 = vadd.f32 %v5568, %v5265
        %v5585 = vadd.f32 %v5569, %v5273
        %v5586 = vadd.f32 %v5570, %v5274
        %v5588 = vunpack.c.l.s4 1966171168
        %v5589 = vunpack.c.0.s8 %v5588
        %v5590 = vlaneseq
        %v5591 = vshrl.u32 %v5590, 7
        %v5592 = vsub.s32 %v5589, %v5591
        %v5593 = vrot.slane %v5571, %v5592
        %v5595 = vunpack.c.l.s4 1966171168
        %v5596 = vunpack.c.0.s8 %v5595
        %v5597 = vlaneseq
        %v5598 = vshrl.u32 %v5597, 7
        %v5599 = vsub.s32 %v5596, %v5598
        %v5600 = vrot.slane %v5572, %v5599
        %v5602 = vunpack.c.l.s4 1966171168
        %v5603 = vunpack.c.0.s8 %v5602
        %v5604 = vlaneseq
        %v5605 = vshrl.u32 %v5604, 7
        %v5606 = vsub.s32 %v5603, %v5605
        %v5607 = vrot.slane %v5573, %v5606
        %v5609 = vunpack.c.l.s4 1966171168
        %v5610 = vunpack.c.0.s8 %v5609
        %v5611 = vlaneseq
        %v5612 = vshrl.u32 %v5611, 7
        %v5613 = vsub.s32 %v5610, %v5612
        %v5614 = vrot.slane %v5574, %v5613
        %v5616 = vunpack.c.l.s4 1966171168
        %v5617 = vunpack.c.0.s8 %v5616
        %v5618 = vlaneseq
        %v5619 = vshrl.u32 %v5618, 7
        %v5620 = vsub.s32 %v5617, %v5619
        %v5621 = vrot.slane %v5575, %v5620
        %v5623 = vunpack.c.l.s4 1966171168
        %v5624 = vunpack.c.0.s8 %v5623
        %v5625 = vlaneseq
        %v5626 = vshrl.u32 %v5625, 7
        %v5627 = vsub.s32 %v5624, %v5626
        %v5628 = vrot.slane %v5576, %v5627
        %v5630 = vunpack.c.l.s4 1966171168
        %v5631 = vunpack.c.0.s8 %v5630
        %v5632 = vlaneseq
        %v5633 = vshrl.u32 %v5632, 7
        %v5634 = vsub.s32 %v5631, %v5633
        %v5635 = vrot.slane %v5577, %v5634
        %v5637 = vunpack.c.l.s4 1966171168
        %v5638 = vunpack.c.0.s8 %v5637
        %v5639 = vlaneseq
        %v5640 = vshrl.u32 %v5639, 7
        %v5641 = vsub.s32 %v5638, %v5640
        %v5642 = vrot.slane %v5578, %v5641
        %v5644 = vunpack.c.l.s4 1966171168
        %v5645 = vunpack.c.0.s8 %v5644
        %v5646 = vlaneseq
        %v5647 = vshrl.u32 %v5646, 7
        %v5648 = vsub.s32 %v5645, %v5647
        %v5649 = vrot.slane %v5579, %v5648
        %v5651 = vunpack.c.l.s4 1966171168
        %v5652 = vunpack.c.0.s8 %v5651
        %v5653 = vlaneseq
        %v5654 = vshrl.u32 %v5653, 7
        %v5655 = vsub.s32 %v5652, %v5654
        %v5656 = vrot.slane %v5580, %v5655
        %v5658 = vunpack.c.l.s4 1966171168
        %v5659 = vunpack.c.0.s8 %v5658
        %v5660 = vlaneseq
        %v5661 = vshrl.u32 %v5660, 7
        %v5662 = vsub.s32 %v5659, %v5661
        %v5663 = vrot.slane %v5581, %v5662
        %v5665 = vunpack.c.l.s4 1966171168
        %v5666 = vunpack.c.0.s8 %v5665
        %v5667 = vlaneseq
        %v5668 = vshrl.u32 %v5667, 7
        %v5669 = vsub.s32 %v5666, %v5668
        %v5670 = vrot.slane %v5582, %v5669
        %v5672 = vunpack.c.l.s4 1966171168
        %v5673 = vunpack.c.0.s8 %v5672
        %v5674 = vlaneseq
        %v5675 = vshrl.u32 %v5674, 7
        %v5676 = vsub.s32 %v5673, %v5675
        %v5677 = vrot.slane %v5583, %v5676
        %v5679 = vunpack.c.l.s4 1966171168
        %v5680 = vunpack.c.0.s8 %v5679
        %v5681 = vlaneseq
        %v5682 = vshrl.u32 %v5681, 7
        %v5683 = vsub.s32 %v5680, %v5682
        %v5684 = vrot.slane %v5584, %v5683
        %v5686 = vunpack.c.l.s4 1966171168
        %v5687 = vunpack.c.0.s8 %v5686
        %v5688 = vlaneseq
        %v5689 = vshrl.u32 %v5688, 7
        %v5690 = vsub.s32 %v5687, %v5689
        %v5691 = vrot.slane %v5585, %v5690
        %v5693 = vunpack.c.l.s4 1966171168
        %v5694 = vunpack.c.0.s8 %v5693
        %v5695 = vlaneseq
        %v5696 = vshrl.u32 %v5695, 7
        %v5697 = vsub.s32 %v5694, %v5696
        %v5698 = vrot.slane %v5586, %v5697
        %v5715 = vrot.slane %v5593, 4
        %v5716 = vrot.slane %v5600, 4
        %v5717 = vrot.slane %v5607, 4
        %v5718 = vrot.slane %v5614, 4
        %v5719 = vrot.slane %v5621, 4
        %v5720 = vrot.slane %v5628, 4
        %v5721 = vrot.slane %v5635, 4
        %v5722 = vrot.slane %v5642, 4
        %v5723 = vrot.slane %v5649, 4
        %v5724 = vrot.slane %v5656, 4
        %v5725 = vrot.slane %v5663, 4
        %v5726 = vrot.slane %v5670, 4
        %v5727 = vrot.slane %v5677, 4
        %v5728 = vrot.slane %v5684, 4
        %v5729 = vrot.slane %v5691, 4
        %v5730 = vrot.slane %v5698, 4
        %v5747 = vmax.f32 %v5593, %v5715
        %v5748 = vmax.f32 %v5600, %v5716
        %v5749 = vmax.f32 %v5607, %v5717
        %v5750 = vmax.f32 %v5614, %v5718
        %v5751 = vmax.f32 %v5621, %v5719
        %v5752 = vmax.f32 %v5628, %v5720
        %v5753 = vmax.f32 %v5635, %v5721
        %v5754 = vmax.f32 %v5642, %v5722
        %v5755 = vmax.f32 %v5649, %v5723
        %v5756 = vmax.f32 %v5656, %v5724
        %v5757 = vmax.f32 %v5663, %v5725
        %v5758 = vmax.f32 %v5670, %v5726
        %v5759 = vmax.f32 %v5677, %v5727
        %v5760 = vmax.f32 %v5684, %v5728
        %v5761 = vmax.f32 %v5691, %v5729
        %v5762 = vmax.f32 %v5698, %v5730
        %v5779 = vrot.slane %v5747, 2
        %v5780 = vrot.slane %v5748, 2
        %v5781 = vrot.slane %v5749, 2
        %v5782 = vrot.slane %v5750, 2
        %v5783 = vrot.slane %v5751, 2
        %v5784 = vrot.slane %v5752, 2
        %v5785 = vrot.slane %v5753, 2
        %v5786 = vrot.slane %v5754, 2
        %v5787 = vrot.slane %v5755, 2
        %v5788 = vrot.slane %v5756, 2
        %v5789 = vrot.slane %v5757, 2
        %v5790 = vrot.slane %v5758, 2
        %v5791 = vrot.slane %v5759, 2
        %v5792 = vrot.slane %v5760, 2
        %v5793 = vrot.slane %v5761, 2
        %v5794 = vrot.slane %v5762, 2
        %v5811 = vmax.f32 %v5747, %v5779
        %v5812 = vmax.f32 %v5748, %v5780
        %v5813 = vmax.f32 %v5749, %v5781
        %v5814 = vmax.f32 %v5750, %v5782
        %v5815 = vmax.f32 %v5751, %v5783
        %v5816 = vmax.f32 %v5752, %v5784
        %v5817 = vmax.f32 %v5753, %v5785
        %v5818 = vmax.f32 %v5754, %v5786
        %v5819 = vmax.f32 %v5755, %v5787
        %v5820 = vmax.f32 %v5756, %v5788
        %v5821 = vmax.f32 %v5757, %v5789
        %v5822 = vmax.f32 %v5758, %v5790
        %v5823 = vmax.f32 %v5759, %v5791
        %v5824 = vmax.f32 %v5760, %v5792
        %v5825 = vmax.f32 %v5761, %v5793
        %v5826 = vmax.f32 %v5762, %v5794
        %v5827 = vld [vmem:[%s4] sm:$0x1]
        %v5829 = vlaneseq
        %v5830 = vshrl.u32 %v5829, 7
        %v5831 = vsub.s32 0, %v5830
        %v5832 = vrot.slane %v5827, %v5831
        %v5833 = vcombine.high %v5832, %v5832
        %v5835 = vunpack.c.l.s4 1983009808
        %v5836 = vunpack.c.0.s8 %v5835
        %v5837 = vlaneseq
        %v5838 = vshrl.u32 %v5837, 7
        %v5839 = vsub.s32 %v5836, %v5838
        %v5840 = vrot.slane %v5832, %v5839
        %v5842 = vunpack.c.l.s4 1983009808
        %v5843 = vunpack.c.0.s8 %v5842
        %v5844 = vlaneseq
        %v5845 = vshrl.u32 %v5844, 7
        %v5846 = vsub.s32 %v5843, %v5845
        %v5847 = vrot.slane %v5833, %v5846
        %v5848 = vcombine.high %v5840, %v5840
        %v5849 = vcombine.high %v5847, %v5847
        %v5854 = vadd.f32 %v5811, %v5840
        %v5855 = vadd.f32 %v5812, %v5848
        %v5856 = vadd.f32 %v5813, %v5847
        %v5857 = vadd.f32 %v5814, %v5849
        %v5858 = vadd.f32 %v5815, %v5840
        %v5859 = vadd.f32 %v5816, %v5848
        %v5860 = vadd.f32 %v5817, %v5847
        %v5861 = vadd.f32 %v5818, %v5849
        %v5862 = vadd.f32 %v5819, %v5840
        %v5863 = vadd.f32 %v5820, %v5848
        %v5864 = vadd.f32 %v5821, %v5847
        %v5865 = vadd.f32 %v5822, %v5849
        %v5866 = vadd.f32 %v5823, %v5840
        %v5867 = vadd.f32 %v5824, %v5848
        %v5868 = vadd.f32 %v5825, %v5847
        %v5869 = vadd.f32 %v5826, %v5849
        %v5870 = vmax.f32 %v5854, 0.0
        %v5871 = vmax.f32 %v5855, 0.0
        %v5872 = vmax.f32 %v5856, 0.0
        %v5873 = vmax.f32 %v5857, 0.0
        %v5874 = vmax.f32 %v5858, 0.0
        %v5875 = vmax.f32 %v5859, 0.0
        %v5876 = vmax.f32 %v5860, 0.0
        %v5877 = vmax.f32 %v5861, 0.0
        %v5878 = vmax.f32 %v5862, 0.0
        %v5879 = vmax.f32 %v5863, 0.0
        %v5880 = vmax.f32 %v5864, 0.0
        %v5881 = vmax.f32 %v5865, 0.0
        %v5882 = vmax.f32 %v5866, 0.0
        %v5883 = vmax.f32 %v5867, 0.0
        %v5884 = vmax.f32 %v5868, 0.0
        %v5885 = vmax.f32 %v5869, 0.0
        %v5902 = vcombine.low %v5870, %v5871
        %v5903 = vcombine.low %v5872, %v5873
        %v5905 = vunpack.c.l.s4 1983009808
        %v5906 = vunpack.c.0.s8 %v5905
        %v5907 = vlaneseq
        %v5908 = vshrl.u32 %v5907, 7
        %v5909 = vsub.s32 %v5906, %v5908
        %v5910 = vrot.slane %v5902, %v5909
        %v5912 = vunpack.c.l.s4 1983009808
        %v5913 = vunpack.c.0.s8 %v5912
        %v5914 = vlaneseq
        %v5915 = vshrl.u32 %v5914, 7
        %v5916 = vsub.s32 %v5913, %v5915
        %v5917 = vrot.slane %v5903, %v5916
        %v5918 = vcombine.low %v5910, %v5917
        %v5919 = vcombine.low %v5874, %v5875
        %v5920 = vcombine.low %v5876, %v5877
        %v5922 = vunpack.c.l.s4 1983009808
        %v5923 = vunpack.c.0.s8 %v5922
        %v5924 = vlaneseq
        %v5925 = vshrl.u32 %v5924, 7
        %v5926 = vsub.s32 %v5923, %v5925
        %v5927 = vrot.slane %v5919, %v5926
        %v5929 = vunpack.c.l.s4 1983009808
        %v5930 = vunpack.c.0.s8 %v5929
        %v5931 = vlaneseq
        %v5932 = vshrl.u32 %v5931, 7
        %v5933 = vsub.s32 %v5930, %v5932
        %v5934 = vrot.slane %v5920, %v5933
        %v5935 = vcombine.low %v5927, %v5934
        %v5936 = vcombine.low %v5878, %v5879
        %v5937 = vcombine.low %v5880, %v5881
        %v5939 = vunpack.c.l.s4 1983009808
        %v5940 = vunpack.c.0.s8 %v5939
        %v5941 = vlaneseq
        %v5942 = vshrl.u32 %v5941, 7
        %v5943 = vsub.s32 %v5940, %v5942
        %v5944 = vrot.slane %v5936, %v5943
        %v5946 = vunpack.c.l.s4 1983009808
        %v5947 = vunpack.c.0.s8 %v5946
        %v5948 = vlaneseq
        %v5949 = vshrl.u32 %v5948, 7
        %v5950 = vsub.s32 %v5947, %v5949
        %v5951 = vrot.slane %v5937, %v5950
        %v5952 = vcombine.low %v5944, %v5951
        %v5953 = vcombine.low %v5882, %v5883
        %v5954 = vcombine.low %v5884, %v5885
        %v5956 = vunpack.c.l.s4 1983009808
        %v5957 = vunpack.c.0.s8 %v5956
        %v5958 = vlaneseq
        %v5959 = vshrl.u32 %v5958, 7
        %v5960 = vsub.s32 %v5957, %v5959
        %v5961 = vrot.slane %v5953, %v5960
        %v5963 = vunpack.c.l.s4 1983009808
        %v5964 = vunpack.c.0.s8 %v5963
        %v5965 = vlaneseq
        %v5966 = vshrl.u32 %v5965, 7
        %v5967 = vsub.s32 %v5964, %v5966
        %v5968 = vrot.slane %v5954, %v5967
        %v5969 = vcombine.low %v5961, %v5968
        %v5975 = vunpack.c.l.s4 1935823168
        %v5976 = vunpack.c.0.s8 %v5975
        %v5977 = vlaneseq
        %v5978 = vshrl.u32 %v5977, 7
        %v5979 = vsub.s32 %v5976, %v5978
        %v5980 = vrot.slane %v5918, %v5979
        %v5982 = vunpack.c.l.s4 1935823168
        %v5983 = vunpack.c.0.s8 %v5982
        %v5984 = vlaneseq
        %v5985 = vshrl.u32 %v5984, 7
        %v5986 = vsub.s32 %v5983, %v5985
        %v5987 = vrot.slane %v5935, %v5986
        %v5989 = vunpack.c.l.s4 1935823168
        %v5990 = vunpack.c.0.s8 %v5989
        %v5991 = vlaneseq
        %v5992 = vshrl.u32 %v5991, 7
        %v5993 = vsub.s32 %v5990, %v5992
        %v5994 = vrot.slane %v5952, %v5993
        %v5996 = vunpack.c.l.s4 1935823168
        %v5997 = vunpack.c.0.s8 %v5996
        %v5998 = vlaneseq
        %v5999 = vshrl.u32 %v5998, 7
        %v6000 = vsub.s32 %v5997, %v5999
        %v6001 = vrot.slane %v5969, %v6000
        %v6002 = vld [vmem:[%s5] sm:$0xff]
        %v6003 = vld [vmem:[%s5 + $0x8] sm:$0xff]
        %v6004 = vld [vmem:[%s5 + $0x10] sm:$0xff]
        %v6005 = vld [vmem:[%s5 + $0x18] sm:$0xff]
        %v6006 = vld [vmem:[%s5 + $0x20] sm:$0xff]
        %v6007 = vld [vmem:[%s5 + $0x28] sm:$0xff]
        %v6008 = vld [vmem:[%s5 + $0x30] sm:$0xff]
        %v6009 = vld [vmem:[%s5 + $0x38] sm:$0xff]
        %v6010 = vld [vmem:[%s5 + $0x40] sm:$0xff]
        %v6011 = vld [vmem:[%s5 + $0x48] sm:$0xff]
        %v6012 = vld [vmem:[%s5 + $0x50] sm:$0xff]
        %v6013 = vld [vmem:[%s5 + $0x58] sm:$0xff]
        %v6014 = vld [vmem:[%s5 + $0x60] sm:$0xff]
        %v6015 = vld [vmem:[%s5 + $0x68] sm:$0xff]
        %v6016 = vld [vmem:[%s5 + $0x70] sm:$0xff]
        %v6017 = vld [vmem:[%s5 + $0x78] sm:$0xff]
        %v6018 = vld [vmem:[%s5 + $0x80] sm:$0xff]
        %v6019 = vld [vmem:[%s5 + $0x88] sm:$0xff]
        %v6020 = vld [vmem:[%s5 + $0x90] sm:$0xff]
        %v6021 = vld [vmem:[%s5 + $0x98] sm:$0xff]
        %v6022 = vld [vmem:[%s5 + $0xa0] sm:$0xff]
        %v6023 = vld [vmem:[%s5 + $0xa8] sm:$0xff]
        %v6024 = vld [vmem:[%s5 + $0xb0] sm:$0xff]
        %v6025 = vld [vmem:[%s5 + $0xb8] sm:$0xff]
        %v6026 = vld [vmem:[%s5 + $0xc0] sm:$0xff]
        %v6027 = vld [vmem:[%s5 + $0xc8] sm:$0xff]
        %v6028 = vld [vmem:[%s5 + $0xd0] sm:$0xff]
        %v6029 = vld [vmem:[%s5 + $0xd8] sm:$0xff]
        %v6030 = vld [vmem:[%s5 + $0xe0] sm:$0xff]
        %v6031 = vld [vmem:[%s5 + $0xe8] sm:$0xff]
        %v6032 = vld [vmem:[%s5 + $0xf0] sm:$0xff]
        %v6033 = vld [vmem:[%s5 + $0xf8] sm:$0xff]
        %v6034 = vld [vmem:[%s5 + $0x100] sm:$0xff]
        %v6035 = vld [vmem:[%s5 + $0x108] sm:$0xff]
        %v6036 = vld [vmem:[%s5 + $0x110] sm:$0xff]
        %v6037 = vld [vmem:[%s5 + $0x118] sm:$0xff]
        %v6038 = vld [vmem:[%s5 + $0x120] sm:$0xff]
        %v6039 = vld [vmem:[%s5 + $0x128] sm:$0xff]
        %v6040 = vld [vmem:[%s5 + $0x130] sm:$0xff]
        %v6041 = vld [vmem:[%s5 + $0x138] sm:$0xff]
        %v6042 = vld [vmem:[%s5 + $0x140] sm:$0xff]
        %v6043 = vld [vmem:[%s5 + $0x148] sm:$0xff]
        %v6044 = vld [vmem:[%s5 + $0x150] sm:$0xff]
        %v6045 = vld [vmem:[%s5 + $0x158] sm:$0xff]
        %v6046 = vld [vmem:[%s5 + $0x160] sm:$0xff]
        %v6047 = vld [vmem:[%s5 + $0x168] sm:$0xff]
        %v6048 = vld [vmem:[%s5 + $0x170] sm:$0xff]
        %v6049 = vld [vmem:[%s5 + $0x178] sm:$0xff]
        %v6050 = vld [vmem:[%s5 + $0x180] sm:$0xff]
        %v6051 = vld [vmem:[%s5 + $0x188] sm:$0xff]
        %v6052 = vld [vmem:[%s5 + $0x190] sm:$0xff]
        %v6053 = vld [vmem:[%s5 + $0x198] sm:$0xff]
        %v6054 = vld [vmem:[%s5 + $0x1a0] sm:$0xff]
        %v6055 = vld [vmem:[%s5 + $0x1a8] sm:$0xff]
        %v6056 = vld [vmem:[%s5 + $0x1b0] sm:$0xff]
        %v6057 = vld [vmem:[%s5 + $0x1b8] sm:$0xff]
        %v6058 = vld [vmem:[%s5 + $0x1c0] sm:$0xff]
        %v6059 = vld [vmem:[%s5 + $0x1c8] sm:$0xff]
        %v6060 = vld [vmem:[%s5 + $0x1d0] sm:$0xff]
        %v6061 = vld [vmem:[%s5 + $0x1d8] sm:$0xff]
        %v6062 = vld [vmem:[%s5 + $0x1e0] sm:$0xff]
        %v6063 = vld [vmem:[%s5 + $0x1e8] sm:$0xff]
        %v6064 = vld [vmem:[%s5 + $0x1f0] sm:$0xff]
        %v6065 = vld [vmem:[%s5 + $0x1f8] sm:$0xff]
        %v6066 = vld [vmem:[%s6] sm:$0x1]
        %v6068 = vlaneseq
        %v6069 = vshrl.u32 %v6068, 7
        %v6070 = vsub.s32 0, %v6069
        %v6071 = vrot.slane %v6066, %v6070
        %v6077 = vcombine.low %v5980, %v5987
        %v6078 = vcombine.high %v5980, %v5987
        %v6079 = vcombine.low %v5994, %v6001
        %v6080 = vcombine.high %v5994, %v6001
        %v6082 = vunpack.c.l.s4 1983009808
        %v6083 = vunpack.c.0.s8 %v6082
        %v6084 = vlaneseq
        %v6085 = vshrl.u32 %v6084, 7
        %v6086 = vsub.s32 %v6083, %v6085
        %v6087 = vrot.slane %v6077, %v6086
        %v6089 = vunpack.c.l.s4 1983009808
        %v6090 = vunpack.c.0.s8 %v6089
        %v6091 = vlaneseq
        %v6092 = vshrl.u32 %v6091, 7
        %v6093 = vsub.s32 %v6090, %v6092
        %v6094 = vrot.slane %v6078, %v6093
        %v6096 = vunpack.c.l.s4 1983009808
        %v6097 = vunpack.c.0.s8 %v6096
        %v6098 = vlaneseq
        %v6099 = vshrl.u32 %v6098, 7
        %v6100 = vsub.s32 %v6097, %v6099
        %v6101 = vrot.slane %v6079, %v6100
        %v6103 = vunpack.c.l.s4 1983009808
        %v6104 = vunpack.c.0.s8 %v6103
        %v6105 = vlaneseq
        %v6106 = vshrl.u32 %v6105, 7
        %v6107 = vsub.s32 %v6104, %v6106
        %v6108 = vrot.slane %v6080, %v6107
        %v6109 = vcombine.low %v6087, %v6101
        %v6110 = vcombine.high %v6087, %v6101
        %v6111 = vcombine.low %v6094, %v6108
        %v6112 = vcombine.high %v6094, %v6108
        %6117 = vmatprep.subr.mxu0 0.0
        %6118 = vmatpush1.msra.mxu0 %v6017
        %6119 = vmatprep.subr.mxu0 0.0
        %6120 = vmatpush1.msra.mxu0 %v6016
        %6121 = vmatprep.subr.mxu0 0.0
        %6122 = vmatpush1.msra.mxu0 %v6015
        %6123 = vmatprep.subr.mxu0 0.0
        %6124 = vmatpush1.msra.mxu0 %v6014
        %6125 = vmatprep.subr.mxu0 0.0
        %6126 = vmatpush1.msra.mxu0 %v6013
        %6127 = vmatprep.subr.mxu0 0.0
        %6128 = vmatpush1.msra.mxu0 %v6012
        %6129 = vmatprep.subr.mxu0 0.0
        %6130 = vmatpush1.msra.mxu0 %v6011
        %6131 = vmatprep.subr.mxu0 0.0
        %6132 = vmatpush1.msra.mxu0 %v6010
        %6133 = vmatprep.subr.mxu0 0.0
        %6134 = vmatpush1.msra.mxu0 %v6009
        %6135 = vmatprep.subr.mxu0 0.0
        %6136 = vmatpush1.msra.mxu0 %v6008
        %6137 = vmatprep.subr.mxu0 0.0
        %6138 = vmatpush1.msra.mxu0 %v6007
        %6139 = vmatprep.subr.mxu0 0.0
        %6140 = vmatpush1.msra.mxu0 %v6006
        %6141 = vmatprep.subr.mxu0 0.0
        %6142 = vmatpush1.msra.mxu0 %v6005
        %6143 = vmatprep.subr.mxu0 0.0
        %6144 = vmatpush1.msra.mxu0 %v6004
        %6145 = vmatprep.subr.mxu0 0.0
        %6146 = vmatpush1.msra.mxu0 %v6003
        %6147 = vmatprep.subr.mxu0 0.0
        %6148 = vmatpush1.msra.mxu0 %v6002
        %6149 = vmatprep.subr.mxu0 0.0
        %6150 = vmatpush2.msra.mxu0 %v6033
        %6151 = vmatprep.subr.mxu0 0.0
        %6152 = vmatpush2.msra.mxu0 %v6032
        %6153 = vmatprep.subr.mxu0 0.0
        %6154 = vmatpush2.msra.mxu0 %v6031
        %6155 = vmatprep.subr.mxu0 0.0
        %6156 = vmatpush2.msra.mxu0 %v6030
        %6157 = vmatprep.subr.mxu0 0.0
        %6158 = vmatpush2.msra.mxu0 %v6029
        %6159 = vmatprep.subr.mxu0 0.0
        %6160 = vmatpush2.msra.mxu0 %v6028
        %6161 = vmatprep.subr.mxu0 0.0
        %6162 = vmatpush2.msra.mxu0 %v6027
        %6163 = vmatprep.subr.mxu0 0.0
        %6164 = vmatpush2.msra.mxu0 %v6026
        %6165 = vmatprep.subr.mxu0 0.0
        %6166 = vmatpush2.msra.mxu0 %v6025
        %6167 = vmatprep.subr.mxu0 0.0
        %6168 = vmatpush2.msra.mxu0 %v6024
        %6169 = vmatprep.subr.mxu0 0.0
        %6170 = vmatpush2.msra.mxu0 %v6023
        %6171 = vmatprep.subr.mxu0 0.0
        %6172 = vmatpush2.msra.mxu0 %v6022
        %6173 = vmatprep.subr.mxu0 0.0
        %6174 = vmatpush2.msra.mxu0 %v6021
        %6175 = vmatprep.subr.mxu0 0.0
        %6176 = vmatpush2.msra.mxu0 %v6020
        %6177 = vmatprep.subr.mxu0 0.0
        %6178 = vmatpush2.msra.mxu0 %v6019
        %6179 = vmatprep.subr.mxu0 0.0
        %6180 = vmatpush2.msra.mxu0 %v6018
        %6181 = vmatprep.mubr.f32.mxu0 %v6110
        %6182 = vmatmul.mubr.f32.gmra.mxu0 %v6109
        %v6183 = vpop.f32.mrf.mxu0
        %v6184 = vadd.f32 %v6071, %v6183
        %v6185 = vpop.f32.mrf.mxu0
        %6186 = vdwg.mxu0
        %6187 = vmatprep.subr.mxu0 0.0
        %6188 = vmatpush1.msra.mxu0 %v6049
        %6189 = vmatprep.subr.mxu0 0.0
        %6190 = vmatpush1.msra.mxu0 %v6048
        %6191 = vmatprep.subr.mxu0 0.0
        %6192 = vmatpush1.msra.mxu0 %v6047
        %6193 = vmatprep.subr.mxu0 0.0
        %6194 = vmatpush1.msra.mxu0 %v6046
        %6195 = vmatprep.subr.mxu0 0.0
        %6196 = vmatpush1.msra.mxu0 %v6045
        %6197 = vmatprep.subr.mxu0 0.0
        %6198 = vmatpush1.msra.mxu0 %v6044
        %6199 = vmatprep.subr.mxu0 0.0
        %6200 = vmatpush1.msra.mxu0 %v6043
        %6201 = vmatprep.subr.mxu0 0.0
        %6202 = vmatpush1.msra.mxu0 %v6042
        %6203 = vmatprep.subr.mxu0 0.0
        %6204 = vmatpush1.msra.mxu0 %v6041
        %6205 = vmatprep.subr.mxu0 0.0
        %6206 = vmatpush1.msra.mxu0 %v6040
        %6207 = vmatprep.subr.mxu0 0.0
        %6208 = vmatpush1.msra.mxu0 %v6039
        %6209 = vmatprep.subr.mxu0 0.0
        %6210 = vmatpush1.msra.mxu0 %v6038
        %6211 = vmatprep.subr.mxu0 0.0
        %6212 = vmatpush1.msra.mxu0 %v6037
        %6213 = vmatprep.subr.mxu0 0.0
        %6214 = vmatpush1.msra.mxu0 %v6036
        %6215 = vmatprep.subr.mxu0 0.0
        %6216 = vmatpush1.msra.mxu0 %v6035
        %6217 = vmatprep.subr.mxu0 0.0
        %6218 = vmatpush1.msra.mxu0 %v6034
        %6219 = vmatprep.subr.mxu0 0.0
        %6220 = vmatpush2.msra.mxu0 %v6065
        %6221 = vmatprep.subr.mxu0 0.0
        %6222 = vmatpush2.msra.mxu0 %v6064
        %6223 = vmatprep.subr.mxu0 0.0
        %6224 = vmatpush2.msra.mxu0 %v6063
        %6225 = vmatprep.subr.mxu0 0.0
        %6226 = vmatpush2.msra.mxu0 %v6062
        %6227 = vmatprep.subr.mxu0 0.0
        %6228 = vmatpush2.msra.mxu0 %v6061
        %6229 = vmatprep.subr.mxu0 0.0
        %6230 = vmatpush2.msra.mxu0 %v6060
        %6231 = vmatprep.subr.mxu0 0.0
        %6232 = vmatpush2.msra.mxu0 %v6059
        %6233 = vmatprep.subr.mxu0 0.0
        %6234 = vmatpush2.msra.mxu0 %v6058
        %6235 = vmatprep.subr.mxu0 0.0
        %6236 = vmatpush2.msra.mxu0 %v6057
        %6237 = vmatprep.subr.mxu0 0.0
        %6238 = vmatpush2.msra.mxu0 %v6056
        %6239 = vmatprep.subr.mxu0 0.0
        %6240 = vmatpush2.msra.mxu0 %v6055
        %6241 = vmatprep.subr.mxu0 0.0
        %6242 = vmatpush2.msra.mxu0 %v6054
        %6243 = vmatprep.subr.mxu0 0.0
        %6244 = vmatpush2.msra.mxu0 %v6053
        %6245 = vmatprep.subr.mxu0 0.0
        %6246 = vmatpush2.msra.mxu0 %v6052
        %6247 = vmatprep.subr.mxu0 0.0
        %6248 = vmatpush2.msra.mxu0 %v6051
        %6249 = vmatprep.subr.mxu0 0.0
        %6250 = vmatpush2.msra.mxu0 %v6050
        %6251 = vmatprep.mubr.f32.mxu0 %v6112
        %6252 = vmatmul.mubr.f32.gmra.mxu0 %v6111
        %v6253 = vpop.f32.mrf.mxu0
        %v6254 = vadd.f32 %v6184, %v6253
        %v6255 = vpop.f32.mrf.mxu0
        %6256 = vdwg.mxu0
        %v6257 = vmax.f32 %v6254, 0.0
        %vm6258 = vcmask 408576
        %6259 = vst.msk [vmem:[%s302] sm:$0xff] %vm6258, %v6257
        %s6260 = sand.u32 %s183, 1
        %s6261 = scalar_lea.sflag [#allocation4], %s6260
        %s6262 = sand.u32 %s183, 1
        %s6263 = smul.addr %s6262, 8
        %s6264 = scalar_lea.vmem [#allocation7], %s6263
        // Predicated region
        $region57: #{cnn_forward.1} parent=47 // pred_check
          %p6265 = pneg %p193
        $region58: #{cnn_forward.1} parent=47 // pred_check_branch
          %6267 = sbr.rel (%p6265) target = $region60
        $region59: #{cnn_forward.1} parent=47 // pred_region
          %s6269 = ssub.s32 128, 128
          %6270 = vsyncadd %s6261, %s6269
          %s6271 = smul.addr %s23, 128
          %s6272 = scalar_lea.hbm %s7, %s6271
          %s6274 = sshll.u32 %s6264, 4
          %s6275 = int_to_ptr.vmem [resolvable:$true] %s6274
          %6277 = dma.vmem_to_hbm [thread:$0]  %s6275, 128, %s6272, %s6261
        $region60: #{cnn_forward.1} parent=47 // pred_fallthru
          _
      $region48: #{cnn_forward.1} parent=5 // pred_fallthru
        _
      %p6278 = scmp.le.s32.totalorder 2, %s18
      // Predicated region
      $region61: #{cnn_forward.1} parent=5 // pred_check
        %p6279 = pneg %p6278
      $region62: #{cnn_forward.1} parent=5 // pred_check_branch
        %6281 = sbr.rel (%p6279) target = $region64
      $region63: #{cnn_forward.1} parent=5 // pred_region
        %s6282 = ssub.s32 %s18, 2
        // Predicated region
        $region65: #{cnn_forward.1} parent=63 // pred_check
          %p6283 = pneg %p199
        $region66: #{cnn_forward.1} parent=63 // pred_check_branch
          %6285 = sbr.rel (%p6283) target = $region68
        $region67: #{cnn_forward.1} parent=63 // pred_region
          %s6286 = sand.u32 %s184, 1
          %s6287 = scalar_lea.sflag [#allocation4], %s6286
          %s6288 = sand.u32 %s184, 1
          %s6289 = smul.addr %s6288, 8
          %s6290 = scalar_lea.vmem [#allocation7], %s6289
          %6291 = dma.done %s6287, 128
        $region68: #{cnn_forward.1} parent=63 // pred_fallthru
          _
      $region64: #{cnn_forward.1} parent=5 // pred_fallthru
        _
    $region6: #{cnn_forward.1} parent=1 // loop_footer
      %s22 = sadd.s32 1, %s18
    $region7: #{cnn_forward.1} parent=1 // loop_footer_branch
      %17 = sbr.rel target = $region3
    $region8: #{cnn_forward.1} parent=1 // loop_exit
      _
    %6292 = vsyncpa [#allocation3], 1
    %s6293 = scalar_lea.sflag [#allocation3], 1
    %6294 = vsyncpa %s6293, 1
    %6295 = vsyncpa [#allocation6], 1
    %6296 = vsyncpa [#allocation4], 1
    %s6297 = scalar_lea.sflag [#allocation4], 1
    %6298 = vsyncpa %s6297, 1

</llo_original>
